<compile_context>
chip_gen: v5e
topology: v5e:2x2
jax: 0.10.0
libtpu: 0.0.40
codegen_flags: <defaults>
</compile_context>

<pallas_src>
import jax
import jax.numpy as jnp
from jax.experimental import pallas as pl
from jax.experimental.pallas import tpu as pltpu


def _round_up(x, m):
    return (x + m - 1) // m * m


def _pad2d(a, rows, cols):
    return jnp.pad(a, ((0, rows - a.shape[0]), (0, cols - a.shape[1])))


# ----------------------------------------------------------------------------- fused kernel

def _gcn_fused_kernel(
    a_ref, x_ref,
    w1_ref, b1_ref, w2_ref, b2_ref, w3_ref, b3_ref,
    sel_ref, wagg_ref, bagg_ref,
    vec_ref, wv_ref, bv_ref,
    g1a_ref, t1a_ref, g1b_ref, t1b_ref, wc1a_ref, wc1b_ref, bc1_ref,
    g2_ref, t2_ref, wc2_ref, bc2_ref,
    g3_ref, t3_ref,
    o_ref,
):
    f32 = jnp.float32
    bf16 = jnp.bfloat16

    def silu(z):
        return z * jax.nn.sigmoid(z)

    def ln(z, g, t, eps=1e-5):
        mu = jnp.mean(z, axis=-1, keepdims=True)
        var = jnp.mean(jnp.square(z - mu), axis=-1, keepdims=True)
        return (z - mu) * jax.lax.rsqrt(var + eps) * g + t

    # --- 3x GCNConv + ReLU: h = relu(A_hat @ (h @ W) + b) --------------------------------
    # bf16 operands on the MXU, f32 accumulation / elementwise.
    a = a_ref[...]                                   # bf16 [N_pad, N_pad]

    def gcn(h16, w_ref, b_ref):
        xw = jnp.dot(h16, w_ref[...], preferred_element_type=f32)            # [N_pad, C] f32
        prop = jnp.dot(a, xw.astype(bf16), preferred_element_type=f32)       # [N_pad, C] f32
        return jnp.maximum(prop + b_ref[...], 0.0)

    h = gcn(x_ref[...], w1_ref, b1_ref)
    h = gcn(h.astype(bf16), w2_ref, b2_ref)
    h = gcn(h.astype(bf16), w3_ref, b3_ref)

    # --- MLPAggregation: to_dense_batch -> flatten -> Linear(6*C, 32) --------------------
    # Two matmuls (review item): hs = sel_flat @ h gives the k-th node of each graph in
    # row block k; lane-concat the 6 blocks -> [B_pad, 6*C]; one matmul against W_agg.
    b_pad = o_ref.shape[0]
    c = h.shape[-1]
    max_nodes = sel_ref.shape[0] // b_pad

    hs = jnp.dot(sel_ref[...], h.astype(bf16), preferred_element_type=f32)   # [6*B_pad, C]
    dense = jnp.concatenate(
        [hs[k * b_pad:(k + 1) * b_pad, :] for k in range(max_nodes)], axis=-1)  # [B_pad, 6*C]
    agg = (jnp.dot(dense.astype(bf16), wagg_ref[...], preferred_element_type=f32)
           + bagg_ref[...])                                                   # [B_pad, 32]

    # --- vector branch: Linear(6, 256) ----------------------------------------------------
    v = jnp.dot(vec_ref[...], wv_ref[...], preferred_element_type=f32) + bv_ref[...]

    # --- classifier -----------------------------------------------------------------------
    # LayerNorm(288) over the *virtual* concat [agg | v] without materializing a
    # lane-misaligned concatenation (exact two-pass mean/var over both halves, f32).
    d_cat = agg.shape[-1] + v.shape[-1]
    mu = (jnp.sum(agg, axis=-1, keepdims=True) + jnp.sum(v, axis=-1, keepdims=True)) / d_cat
    var = (jnp.sum(jnp.square(agg - mu), axis=-1, keepdims=True)
           + jnp.sum(jnp.square(v - mu), axis=-1, keepdims=True)) / d_cat
    inv = jax.lax.rsqrt(var + 1e-5)

    agg_n = silu((agg - mu) * inv * g1a_ref[...] + t1a_ref[...])
    v_n = silu((v - mu) * inv * g1b_ref[...] + t1b_ref[...])

    # Linear(288, 512) split across the two halves of the virtual concat.
    h1 = (jnp.dot(agg_n.astype(bf16), wc1a_ref[...], preferred_element_type=f32)
          + jnp.dot(v_n.astype(bf16), wc1b_ref[...], preferred_element_type=f32)
          + bc1_ref[...])
    h1 = silu(ln(h1, g2_ref[...], t2_ref[...]))
    h2 = jnp.dot(h1.astype(bf16), wc2_ref[...], preferred_element_type=f32) + bc2_ref[...]
    o_ref[...] = silu(ln(h2, g3_ref[...], t3_ref[...]))


# ----------------------------------------------------------------------------- graph prep (once)

def build_gcn_adj(edge_index, n):
    """Dense D^-1/2 (A + I) D^-1/2 matching PyG GCNConv default normalization
    (add_self_loops=True, improved=False, uniform edge weights)."""
    loops = jnp.arange(n, dtype=edge_index.dtype)
    src = jnp.concatenate([edge_index[0], loops])
    dst = jnp.concatenate([edge_index[1], loops])
    w = jnp.ones_like(src, dtype=jnp.float32)
    deg = jnp.zeros((n,), jnp.float32).at[dst].add(w)
    dinv = jnp.where(deg > 0, 1.0 / jnp.sqrt(deg), 0.0)
    norm = dinv[src] * dinv[dst]
    return jnp.zeros((n, n), jnp.float32).at[dst, src].add(norm)


def build_node_select(batch_index, num_graphs, max_nodes, n_pad, b_pad):
    """sel[k, b, n] = 1 iff node n is the k-th node (k < max_nodes) of graph b.

    Nodes beyond max_nodes per graph are dropped (same as PyG to_dense_batch
    truncation). O(N * B) -- no N x N intermediate.
    """
    n = batch_index.shape[0]
    one_hot = (batch_index[:, None] == jnp.arange(num_graphs)[None, :]).astype(jnp.int32)
    pos = jnp.cumsum(one_hot, axis=0) - one_hot      # exclusive per-graph running count
    pos = jnp.take_along_axis(pos, batch_index[:, None].astype(jnp.int32), axis=1)[:, 0]
    sel = ((pos[None, None, :] == jnp.arange(max_nodes)[:, None, None])
           & (batch_index[None, None, :] == jnp.arange(num_graphs)[None, :, None]))
    sel = sel.astype(jnp.float32)
    return jnp.pad(sel, ((0, 0), (0, b_pad - num_graphs), (0, n_pad - n)))


def prepare_graph(edge_index, batch_index, n, num_graphs, max_nodes):
    """Hoisted per-topology prep: normalized adjacency + dense-batch selector (bf16)."""
    n_pad = _round_up(n, 8)
    b_pad = _round_up(num_graphs, 8)
    a_hat = _pad2d(build_gcn_adj(edge_index, n), n_pad, n_pad).astype(jnp.bfloat16)
    sel = build_node_select(batch_index, num_graphs, max_nodes, n_pad, b_pad)
    sel_flat = sel.reshape(max_nodes * b_pad, n_pad).astype(jnp.bfloat16)   # row = k*b_pad + b
    return a_hat, sel_flat


def prepare_params(params, cin):
    """Hoisted per-params prep: pad, split, and cast weights (bf16) / biases & LN (f32)."""
    c = params["w1"].shape[1]
    agg_out = params["w_agg"].shape[1]
    cin_pad = _round_up(cin, 8)
    vdim = params["w_v"].shape[0]
    v_pad = _round_up(vdim, 8)
    bf = jnp.bfloat16
    r = lambda a: a.reshape(1, -1).astype(jnp.float32)
    return dict(
        w1=_pad2d(params["w1"], cin_pad, c).astype(bf), b1=r(params["b1"]),
        w2=params["w2"].astype(bf), b2=r(params["b2"]),
        w3=params["w3"].astype(bf), b3=r(params["b3"]),
        wagg=params["w_agg"].astype(bf), bagg=r(params["b_agg"]),
        wv=_pad2d(params["w_v"], v_pad, c).astype(bf), bv=r(params["b_v"]),
        g1a=r(params["ln1_g"][:agg_out]), t1a=r(params["ln1_b"][:agg_out]),
        g1b=r(params["ln1_g"][agg_out:]), t1b=r(params["ln1_b"][agg_out:]),
        wc1a=params["wc1"][:agg_out].astype(bf), wc1b=params["wc1"][agg_out:].astype(bf),
        bc1=r(params["bc1"]),
        g2=r(params["ln2_g"]), t2=r(params["ln2_b"]),
        wc2=params["wc2"].astype(bf), bc2=r(params["bc2"]),
        g3=r(params["ln3_g"]), t3=r(params["ln3_b"]),
    )


# ----------------------------------------------------------------------------- forward (per call)

def gcn_forward(prepped, a_hat, sel_flat, x, vector, num_graphs):
    c = prepped["w2"].shape[0]             # hidden width (256)
    agg_out = prepped["wagg"].shape[1]     # 32
    out_dim = prepped["wc2"].shape[1]      # 512
    cin_pad = prepped["w1"].shape[0]
    v_pad = prepped["wv"].shape[0]
    n_pad = a_hat.shape[0]
    b_pad = _round_up(num_graphs, 8)
    max_nodes = sel_flat.shape[0] // b_pad

    x_p = _pad2d(x.astype(jnp.float32), n_pad, cin_pad).astype(jnp.bfloat16)
    vec_p = _pad2d(vector.astype(jnp.float32), b_pad, v_pad).astype(jnp.bfloat16)

    args = (
        a_hat, x_p,
        prepped["w1"], prepped["b1"], prepped["w2"], prepped["b2"],
        prepped["w3"], prepped["b3"],
        sel_flat, prepped["wagg"], prepped["bagg"],
        vec_p, prepped["wv"], prepped["bv"],
        prepped["g1a"], prepped["t1a"], prepped["g1b"], prepped["t1b"],
        prepped["wc1a"], prepped["wc1b"], prepped["bc1"],
        prepped["g2"], prepped["t2"], prepped["wc2"], prepped["bc2"],
        prepped["g3"], prepped["t3"],
    )

    flops = (
        2 * n_pad * cin_pad * c + 2 * 2 * n_pad * c * c            # X@W of the 3 conv layers
        + 3 * 2 * n_pad * n_pad * c                                 # A_hat propagation
        + 2 * (max_nodes * b_pad) * n_pad * c                       # sel_flat @ h
        + 2 * b_pad * (max_nodes * c) * agg_out                     # dense @ W_agg
        + 2 * b_pad * v_pad * c                                     # vector linear
        + 2 * b_pad * (agg_out + c) * out_dim                       # classifier linear 1
        + 2 * b_pad * out_dim * out_dim                             # classifier linear 2
    )
    transcendentals = b_pad * (agg_out + c + 2 * out_dim)           # sigmoids
    bytes_accessed = (sum(int(a.size) * a.dtype.itemsize for a in args)
                      + b_pad * out_dim * 4)

    out = pl.pallas_call(
        _gcn_fused_kernel,
        out_shape=jax.ShapeDtypeStruct((b_pad, out_dim), jnp.float32),
        cost_estimate=pl.CostEstimate(
            flops=flops, transcendentals=transcendentals, bytes_accessed=bytes_accessed),
        compiler_params=pltpu.CompilerParams(vmem_limit_bytes=32 * 1024 * 1024),
    )(*args)
    return out[:num_graphs]


# ----------------------------------------------------------------------------- params

def init_params(key):
    ks = jax.random.split(key, 14)

    def lin_init(kw, kb, fin, fout):
        bound = 1.0 / (fin ** 0.5)
        w = jax.random.uniform(kw, (fin, fout), jnp.float32, -bound, bound)
        b = jax.random.uniform(kb, (fout,), jnp.float32, -bound, bound)
        return w, b

    p = {}
    p["w1"], p["b1"] = lin_init(ks[0], ks[1], 1, 256)
    p["w2"], p["b2"] = lin_init(ks[2], ks[3], 256, 256)
    p["w3"], p["b3"] = lin_init(ks[4], ks[5], 256, 256)
    p["w_agg"], p["b_agg"] = lin_init(ks[6], ks[7], 6 * 256, 32)
    p["w_v"], p["b_v"] = lin_init(ks[8], ks[9], 6, 256)
    p["ln1_g"], p["ln1_b"] = jnp.ones((288,), jnp.float32), jnp.zeros((288,), jnp.float32)
    p["wc1"], p["bc1"] = lin_init(ks[10], ks[11], 288, 512)
    p["ln2_g"], p["ln2_b"] = jnp.ones((512,), jnp.float32), jnp.zeros((512,), jnp.float32)
    p["wc2"], p["bc2"] = lin_init(ks[12], ks[13], 512, 512)
    p["ln3_g"], p["ln3_b"] = jnp.ones((512,), jnp.float32), jnp.zeros((512,), jnp.float32)
    return p


# ----------------------------------------------------------------------------- main

if __name__ == "__main__":
    key = jax.random.PRNGKey(0)
    k_x, k_v, k_p = jax.random.split(key, 3)

    num_graphs, nodes_per_graph = 2, 6          # MLPAggregation max_num_elements is 6
    n_nodes = num_graphs * nodes_per_graph

    x = jax.random.normal(k_x, (n_nodes, 1), jnp.float32)

    # Undirected chain inside each graph (both edge directions, PyG style).
    src, dst = [], []
    for g in range(num_graphs):
        off = g * nodes_per_graph
        for i in range(nodes_per_graph - 1):
            src += [off + i, off + i + 1]
            dst += [off + i + 1, off + i]
    edge_index = jnp.array([src, dst], dtype=jnp.int32)                 # [2, 20]
    batch_index = jnp.repeat(jnp.arange(num_graphs, dtype=jnp.int32), nodes_per_graph)
    vector = jax.random.normal(k_v, (num_graphs, 6), jnp.float32)

    params = init_params(k_p)

    # Hoisted, once-per-topology / once-per-params prep (review items).
    a_hat, sel_flat = prepare_graph(edge_index, batch_index, n_nodes,
                                    num_graphs, nodes_per_graph)
    prepped = prepare_params(params, cin=x.shape[1])

    fwd = jax.jit(gcn_forward, static_argnums=(5,))
    out = fwd(prepped, a_hat, sel_flat, x, vector, num_graphs)
    out = jax.block_until_ready(out)

    assert out.shape == (num_graphs, 512), out.shape
    assert bool(jnp.all(jnp.isfinite(out)))
    print("KERNEL_OK")
</pallas_src>

<mosaic_0001>
module attributes {stable_mosaic.version = 11 : i64} {
  func.func @_gcn_fused_kernel(%arg0: memref<16x16xbf16, #tpu.memory_space<vmem>>, %arg1: memref<16x8xbf16, #tpu.memory_space<vmem>>, %arg2: memref<8x256xbf16, #tpu.memory_space<vmem>>, %arg3: memref<1x256xf32, #tpu.memory_space<vmem>>, %arg4: memref<256x256xbf16, #tpu.memory_space<vmem>>, %arg5: memref<1x256xf32, #tpu.memory_space<vmem>>, %arg6: memref<256x256xbf16, #tpu.memory_space<vmem>>, %arg7: memref<1x256xf32, #tpu.memory_space<vmem>>, %arg8: memref<48x16xbf16, #tpu.memory_space<vmem>>, %arg9: memref<1536x32xbf16, #tpu.memory_space<vmem>>, %arg10: memref<1x32xf32, #tpu.memory_space<vmem>>, %arg11: memref<8x8xbf16, #tpu.memory_space<vmem>>, %arg12: memref<8x256xbf16, #tpu.memory_space<vmem>>, %arg13: memref<1x256xf32, #tpu.memory_space<vmem>>, %arg14: memref<1x32xf32, #tpu.memory_space<vmem>>, %arg15: memref<1x32xf32, #tpu.memory_space<vmem>>, %arg16: memref<1x256xf32, #tpu.memory_space<vmem>>, %arg17: memref<1x256xf32, #tpu.memory_space<vmem>>, %arg18: memref<32x512xbf16, #tpu.memory_space<vmem>>, %arg19: memref<256x512xbf16, #tpu.memory_space<vmem>>, %arg20: memref<1x512xf32, #tpu.memory_space<vmem>>, %arg21: memref<1x512xf32, #tpu.memory_space<vmem>>, %arg22: memref<1x512xf32, #tpu.memory_space<vmem>>, %arg23: memref<512x512xbf16, #tpu.memory_space<vmem>>, %arg24: memref<1x512xf32, #tpu.memory_space<vmem>>, %arg25: memref<1x512xf32, #tpu.memory_space<vmem>>, %arg26: memref<1x512xf32, #tpu.memory_space<vmem>>, %arg27: memref<8x512xf32, #tpu.memory_space<vmem>>) attributes {dimension_semantics = [], scalar_prefetch = 0 : i64, scratch_operands = 0 : i64, tpu.core_type = #tpu.core_type<tc>} {
    %c0 = arith.constant 0 : index
    %c0_0 = arith.constant 0 : index
    %0 = vector.load %arg0[%c0, %c0_0] : memref<16x16xbf16, #tpu.memory_space<vmem>>, vector<16x16xbf16>
    %c0_1 = arith.constant 0 : index
    %c0_2 = arith.constant 0 : index
    %1 = vector.load %arg1[%c0_1, %c0_2] : memref<16x8xbf16, #tpu.memory_space<vmem>>, vector<16x8xbf16>
    %c0_3 = arith.constant 0 : index
    %c0_4 = arith.constant 0 : index
    %2 = vector.load %arg2[%c0_3, %c0_4] : memref<8x256xbf16, #tpu.memory_space<vmem>>, vector<8x256xbf16>
    %cst = arith.constant dense<0.000000e+00> : vector<16x256xf32>
    %3 = tpu.matmul %1, %2, %cst {dimension_numbers = #tpu.dot_dimension_numbers<[1], [0], [0], [1], [0, 0, 1, 1], [], []>} : vector<16x8xbf16>, vector<8x256xbf16>, vector<16x256xf32> -> vector<16x256xf32>
    %4 = arith.truncf %3 : vector<16x256xf32> to vector<16x256xbf16>
    %cst_5 = arith.constant dense<0.000000e+00> : vector<16x256xf32>
    %5 = tpu.matmul %0, %4, %cst_5 {dimension_numbers = #tpu.dot_dimension_numbers<[1], [0], [0], [1], [0, 0, 1, 1], [], []>} : vector<16x16xbf16>, vector<16x256xbf16>, vector<16x256xf32> -> vector<16x256xf32>
    %c0_6 = arith.constant 0 : index
    %c0_7 = arith.constant 0 : index
    %6 = vector.load %arg3[%c0_6, %c0_7] : memref<1x256xf32, #tpu.memory_space<vmem>>, vector<1x256xf32>
    %7 = vector.broadcast %6 : vector<1x256xf32> to vector<16x256xf32>
    %8 = arith.addf %5, %7 : vector<16x256xf32>
    %cst_8 = arith.constant 0.000000e+00 : f32
    %9 = vector.broadcast %cst_8 : f32 to vector<16x256xf32>
    %10 = arith.maximumf %8, %9 : vector<16x256xf32>
    %11 = arith.truncf %10 : vector<16x256xf32> to vector<16x256xbf16>
    %c0_9 = arith.constant 0 : index
    %c0_10 = arith.constant 0 : index
    %12 = vector.load %arg4[%c0_9, %c0_10] : memref<256x256xbf16, #tpu.memory_space<vmem>>, vector<256x256xbf16>
    %cst_11 = arith.constant dense<0.000000e+00> : vector<16x256xf32>
    %13 = tpu.matmul %11, %12, %cst_11 {dimension_numbers = #tpu.dot_dimension_numbers<[1], [0], [0], [1], [0, 0, 1, 1], [], []>} : vector<16x256xbf16>, vector<256x256xbf16>, vector<16x256xf32> -> vector<16x256xf32>
    %14 = arith.truncf %13 : vector<16x256xf32> to vector<16x256xbf16>
    %cst_12 = arith.constant dense<0.000000e+00> : vector<16x256xf32>
    %15 = tpu.matmul %0, %14, %cst_12 {dimension_numbers = #tpu.dot_dimension_numbers<[1], [0], [0], [1], [0, 0, 1, 1], [], []>} : vector<16x16xbf16>, vector<16x256xbf16>, vector<16x256xf32> -> vector<16x256xf32>
    %c0_13 = arith.constant 0 : index
    %c0_14 = arith.constant 0 : index
    %16 = vector.load %arg5[%c0_13, %c0_14] : memref<1x256xf32, #tpu.memory_space<vmem>>, vector<1x256xf32>
    %17 = vector.broadcast %16 : vector<1x256xf32> to vector<16x256xf32>
    %18 = arith.addf %15, %17 : vector<16x256xf32>
    %cst_15 = arith.constant 0.000000e+00 : f32
    %19 = vector.broadcast %cst_15 : f32 to vector<16x256xf32>
    %20 = arith.maximumf %18, %19 : vector<16x256xf32>
    %21 = arith.truncf %20 : vector<16x256xf32> to vector<16x256xbf16>
    %c0_16 = arith.constant 0 : index
    %c0_17 = arith.constant 0 : index
    %22 = vector.load %arg6[%c0_16, %c0_17] : memref<256x256xbf16, #tpu.memory_space<vmem>>, vector<256x256xbf16>
    %cst_18 = arith.constant dense<0.000000e+00> : vector<16x256xf32>
    %23 = tpu.matmul %21, %22, %cst_18 {dimension_numbers = #tpu.dot_dimension_numbers<[1], [0], [0], [1], [0, 0, 1, 1], [], []>} : vector<16x256xbf16>, vector<256x256xbf16>, vector<16x256xf32> -> vector<16x256xf32>
    %24 = arith.truncf %23 : vector<16x256xf32> to vector<16x256xbf16>
    %cst_19 = arith.constant dense<0.000000e+00> : vector<16x256xf32>
    %25 = tpu.matmul %0, %24, %cst_19 {dimension_numbers = #tpu.dot_dimension_numbers<[1], [0], [0], [1], [0, 0, 1, 1], [], []>} : vector<16x16xbf16>, vector<16x256xbf16>, vector<16x256xf32> -> vector<16x256xf32>
    %c0_20 = arith.constant 0 : index
    %c0_21 = arith.constant 0 : index
    %26 = vector.load %arg7[%c0_20, %c0_21] : memref<1x256xf32, #tpu.memory_space<vmem>>, vector<1x256xf32>
    %27 = vector.broadcast %26 : vector<1x256xf32> to vector<16x256xf32>
    %28 = arith.addf %25, %27 : vector<16x256xf32>
    %cst_22 = arith.constant 0.000000e+00 : f32
    %29 = vector.broadcast %cst_22 : f32 to vector<16x256xf32>
    %30 = arith.maximumf %28, %29 : vector<16x256xf32>
    %c0_23 = arith.constant 0 : index
    %c0_24 = arith.constant 0 : index
    %31 = vector.load %arg8[%c0_23, %c0_24] : memref<48x16xbf16, #tpu.memory_space<vmem>>, vector<48x16xbf16>
    %32 = arith.truncf %30 : vector<16x256xf32> to vector<16x256xbf16>
    %cst_25 = arith.constant dense<0.000000e+00> : vector<48x256xf32>
    %33 = tpu.matmul %31, %32, %cst_25 {dimension_numbers = #tpu.dot_dimension_numbers<[1], [0], [0], [1], [0, 0, 1, 1], [], []>} : vector<48x16xbf16>, vector<16x256xbf16>, vector<48x256xf32> -> vector<48x256xf32>
    %34 = vector.extract_strided_slice %33 {offsets = [0, 0], sizes = [8, 256], strides = [1, 1]} : vector<48x256xf32> to vector<8x256xf32>
    %35 = vector.extract_strided_slice %33 {offsets = [8, 0], sizes = [8, 256], strides = [1, 1]} : vector<48x256xf32> to vector<8x256xf32>
    %36 = vector.extract_strided_slice %33 {offsets = [16, 0], sizes = [8, 256], strides = [1, 1]} : vector<48x256xf32> to vector<8x256xf32>
    %37 = vector.extract_strided_slice %33 {offsets = [24, 0], sizes = [8, 256], strides = [1, 1]} : vector<48x256xf32> to vector<8x256xf32>
    %38 = vector.extract_strided_slice %33 {offsets = [32, 0], sizes = [8, 256], strides = [1, 1]} : vector<48x256xf32> to vector<8x256xf32>
    %39 = vector.extract_strided_slice %33 {offsets = [40, 0], sizes = [8, 256], strides = [1, 1]} : vector<48x256xf32> to vector<8x256xf32>
    %40 = tpu.concatenate %34, %35, %36, %37, %38, %39 in 1 : vector<8x256xf32>, vector<8x256xf32>, vector<8x256xf32>, vector<8x256xf32>, vector<8x256xf32>, vector<8x256xf32> -> vector<8x1536xf32>
    %41 = arith.truncf %40 : vector<8x1536xf32> to vector<8x1536xbf16>
    %c0_26 = arith.constant 0 : index
    %c0_27 = arith.constant 0 : index
    %42 = vector.load %arg9[%c0_26, %c0_27] : memref<1536x32xbf16, #tpu.memory_space<vmem>>, vector<1536x32xbf16>
    %cst_28 = arith.constant dense<0.000000e+00> : vector<8x32xf32>
    %43 = tpu.matmul %41, %42, %cst_28 {dimension_numbers = #tpu.dot_dimension_numbers<[1], [0], [0], [1], [0, 0, 1, 1], [], []>} : vector<8x1536xbf16>, vector<1536x32xbf16>, vector<8x32xf32> -> vector<8x32xf32>
    %c0_29 = arith.constant 0 : index
    %c0_30 = arith.constant 0 : index
    %44 = vector.load %arg10[%c0_29, %c0_30] : memref<1x32xf32, #tpu.memory_space<vmem>>, vector<1x32xf32>
    %45 = vector.broadcast %44 : vector<1x32xf32> to vector<8x32xf32>
    %46 = arith.addf %43, %45 : vector<8x32xf32>
    %c0_31 = arith.constant 0 : index
    %c0_32 = arith.constant 0 : index
    %47 = vector.load %arg11[%c0_31, %c0_32] : memref<8x8xbf16, #tpu.memory_space<vmem>>, vector<8x8xbf16>
    %c0_33 = arith.constant 0 : index
    %c0_34 = arith.constant 0 : index
    %48 = vector.load %arg12[%c0_33, %c0_34] : memref<8x256xbf16, #tpu.memory_space<vmem>>, vector<8x256xbf16>
    %cst_35 = arith.constant dense<0.000000e+00> : vector<8x256xf32>
    %49 = tpu.matmul %47, %48, %cst_35 {dimension_numbers = #tpu.dot_dimension_numbers<[1], [0], [0], [1], [0, 0, 1, 1], [], []>} : vector<8x8xbf16>, vector<8x256xbf16>, vector<8x256xf32> -> vector<8x256xf32>
    %c0_36 = arith.constant 0 : index
    %c0_37 = arith.constant 0 : index
    %50 = vector.load %arg13[%c0_36, %c0_37] : memref<1x256xf32, #tpu.memory_space<vmem>>, vector<1x256xf32>
    %51 = vector.broadcast %50 : vector<1x256xf32> to vector<8x256xf32>
    %52 = arith.addf %49, %51 : vector<8x256xf32>
    %cst_38 = arith.constant dense<0.000000e+00> : vector<8xf32>
    %53 = vector.multi_reduction <add>, %46, %cst_38 [1] : vector<8x32xf32> to vector<8xf32>
    %54 = vector.shape_cast %53 : vector<8xf32> to vector<8x1xf32>
    %cst_39 = arith.constant dense<0.000000e+00> : vector<8xf32>
    %55 = vector.multi_reduction <add>, %52, %cst_39 [1] : vector<8x256xf32> to vector<8xf32>
    %56 = vector.shape_cast %55 : vector<8xf32> to vector<8x1xf32>
    %57 = arith.addf %54, %56 : vector<8x1xf32>
    %cst_40 = arith.constant 2.880000e+02 : f32
    %58 = vector.broadcast %cst_40 : f32 to vector<8x1xf32>
    %59 = arith.divf %57, %58 : vector<8x1xf32>
    %60 = vector.broadcast %59 : vector<8x1xf32> to vector<8x32xf32>
    %61 = arith.subf %46, %60 : vector<8x32xf32>
    %62 = arith.mulf %61, %61 : vector<8x32xf32>
    %cst_41 = arith.constant dense<0.000000e+00> : vector<8xf32>
    %63 = vector.multi_reduction <add>, %62, %cst_41 [1] : vector<8x32xf32> to vector<8xf32>
    %64 = vector.shape_cast %63 : vector<8xf32> to vector<8x1xf32>
    %65 = vector.broadcast %59 : vector<8x1xf32> to vector<8x256xf32>
    %66 = arith.subf %52, %65 : vector<8x256xf32>
    %67 = arith.mulf %66, %66 : vector<8x256xf32>
    %cst_42 = arith.constant dense<0.000000e+00> : vector<8xf32>
    %68 = vector.multi_reduction <add>, %67, %cst_42 [1] : vector<8x256xf32> to vector<8xf32>
    %69 = vector.shape_cast %68 : vector<8xf32> to vector<8x1xf32>
    %70 = arith.addf %64, %69 : vector<8x1xf32>
    %cst_43 = arith.constant 2.880000e+02 : f32
    %71 = vector.broadcast %cst_43 : f32 to vector<8x1xf32>
    %72 = arith.divf %70, %71 : vector<8x1xf32>
    %cst_44 = arith.constant 9.99999974E-6 : f32
    %73 = vector.broadcast %cst_44 : f32 to vector<8x1xf32>
    %74 = arith.addf %72, %73 : vector<8x1xf32>
    %75 = math.rsqrt %74 : vector<8x1xf32>
    %76 = vector.broadcast %59 : vector<8x1xf32> to vector<8x32xf32>
    %77 = arith.subf %46, %76 : vector<8x32xf32>
    %78 = vector.broadcast %75 : vector<8x1xf32> to vector<8x32xf32>
    %79 = arith.mulf %77, %78 : vector<8x32xf32>
    %c0_45 = arith.constant 0 : index
    %c0_46 = arith.constant 0 : index
    %80 = vector.load %arg14[%c0_45, %c0_46] : memref<1x32xf32, #tpu.memory_space<vmem>>, vector<1x32xf32>
    %81 = vector.broadcast %80 : vector<1x32xf32> to vector<8x32xf32>
    %82 = arith.mulf %79, %81 : vector<8x32xf32>
    %c0_47 = arith.constant 0 : index
    %c0_48 = arith.constant 0 : index
    %83 = vector.load %arg15[%c0_47, %c0_48] : memref<1x32xf32, #tpu.memory_space<vmem>>, vector<1x32xf32>
    %84 = vector.broadcast %83 : vector<1x32xf32> to vector<8x32xf32>
    %85 = arith.addf %82, %84 : vector<8x32xf32>
    %86 = arith.negf %85 : vector<8x32xf32>
    %87 = math.exp %86 : vector<8x32xf32>
    %cst_49 = arith.constant 1.000000e+00 : f32
    %88 = vector.broadcast %cst_49 : f32 to vector<8x32xf32>
    %89 = arith.addf %88, %87 : vector<8x32xf32>
    %90 = arith.divf %88, %89 : vector<8x32xf32>
    %91 = arith.mulf %85, %90 : vector<8x32xf32>
    %92 = vector.broadcast %59 : vector<8x1xf32> to vector<8x256xf32>
    %93 = arith.subf %52, %92 : vector<8x256xf32>
    %94 = vector.broadcast %75 : vector<8x1xf32> to vector<8x256xf32>
    %95 = arith.mulf %93, %94 : vector<8x256xf32>
    %c0_50 = arith.constant 0 : index
    %c0_51 = arith.constant 0 : index
    %96 = vector.load %arg16[%c0_50, %c0_51] : memref<1x256xf32, #tpu.memory_space<vmem>>, vector<1x256xf32>
    %97 = vector.broadcast %96 : vector<1x256xf32> to vector<8x256xf32>
    %98 = arith.mulf %95, %97 : vector<8x256xf32>
    %c0_52 = arith.constant 0 : index
    %c0_53 = arith.constant 0 : index
    %99 = vector.load %arg17[%c0_52, %c0_53] : memref<1x256xf32, #tpu.memory_space<vmem>>, vector<1x256xf32>
    %100 = vector.broadcast %99 : vector<1x256xf32> to vector<8x256xf32>
    %101 = arith.addf %98, %100 : vector<8x256xf32>
    %102 = arith.negf %101 : vector<8x256xf32>
    %103 = math.exp %102 : vector<8x256xf32>
    %cst_54 = arith.constant 1.000000e+00 : f32
    %104 = vector.broadcast %cst_54 : f32 to vector<8x256xf32>
    %105 = arith.addf %104, %103 : vector<8x256xf32>
    %106 = arith.divf %104, %105 : vector<8x256xf32>
    %107 = arith.mulf %101, %106 : vector<8x256xf32>
    %108 = arith.truncf %91 : vector<8x32xf32> to vector<8x32xbf16>
    %c0_55 = arith.constant 0 : index
    %c0_56 = arith.constant 0 : index
    %109 = vector.load %arg18[%c0_55, %c0_56] : memref<32x512xbf16, #tpu.memory_space<vmem>>, vector<32x512xbf16>
    %cst_57 = arith.constant dense<0.000000e+00> : vector<8x512xf32>
    %110 = tpu.matmul %108, %109, %cst_57 {dimension_numbers = #tpu.dot_dimension_numbers<[1], [0], [0], [1], [0, 0, 1, 1], [], []>} : vector<8x32xbf16>, vector<32x512xbf16>, vector<8x512xf32> -> vector<8x512xf32>
    %111 = arith.truncf %107 : vector<8x256xf32> to vector<8x256xbf16>
    %c0_58 = arith.constant 0 : index
    %c0_59 = arith.constant 0 : index
    %112 = vector.load %arg19[%c0_58, %c0_59] : memref<256x512xbf16, #tpu.memory_space<vmem>>, vector<256x512xbf16>
    %cst_60 = arith.constant dense<0.000000e+00> : vector<8x512xf32>
    %113 = tpu.matmul %111, %112, %cst_60 {dimension_numbers = #tpu.dot_dimension_numbers<[1], [0], [0], [1], [0, 0, 1, 1], [], []>} : vector<8x256xbf16>, vector<256x512xbf16>, vector<8x512xf32> -> vector<8x512xf32>
    %114 = arith.addf %110, %113 : vector<8x512xf32>
    %c0_61 = arith.constant 0 : index
    %c0_62 = arith.constant 0 : index
    %115 = vector.load %arg20[%c0_61, %c0_62] : memref<1x512xf32, #tpu.memory_space<vmem>>, vector<1x512xf32>
    %116 = vector.broadcast %115 : vector<1x512xf32> to vector<8x512xf32>
    %117 = arith.addf %114, %116 : vector<8x512xf32>
    %c0_63 = arith.constant 0 : index
    %c0_64 = arith.constant 0 : index
    %118 = vector.load %arg21[%c0_63, %c0_64] : memref<1x512xf32, #tpu.memory_space<vmem>>, vector<1x512xf32>
    %c0_65 = arith.constant 0 : index
    %c0_66 = arith.constant 0 : index
    %119 = vector.load %arg22[%c0_65, %c0_66] : memref<1x512xf32, #tpu.memory_space<vmem>>, vector<1x512xf32>
    %cst_67 = arith.constant dense<0.000000e+00> : vector<8xf32>
    %120 = vector.multi_reduction <add>, %117, %cst_67 [1] : vector<8x512xf32> to vector<8xf32>
    %121 = vector.shape_cast %120 : vector<8xf32> to vector<8x1xf32>
    %cst_68 = arith.constant 5.120000e+02 : f32
    %122 = vector.broadcast %cst_68 : f32 to vector<8x1xf32>
    %123 = arith.divf %121, %122 : vector<8x1xf32>
    %124 = vector.broadcast %123 : vector<8x1xf32> to vector<8x512xf32>
    %125 = arith.subf %117, %124 : vector<8x512xf32>
    %126 = arith.mulf %125, %125 : vector<8x512xf32>
    %cst_69 = arith.constant dense<0.000000e+00> : vector<8xf32>
    %127 = vector.multi_reduction <add>, %126, %cst_69 [1] : vector<8x512xf32> to vector<8xf32>
    %128 = vector.shape_cast %127 : vector<8xf32> to vector<8x1xf32>
    %cst_70 = arith.constant 5.120000e+02 : f32
    %129 = vector.broadcast %cst_70 : f32 to vector<8x1xf32>
    %130 = arith.divf %128, %129 : vector<8x1xf32>
    %131 = vector.broadcast %123 : vector<8x1xf32> to vector<8x512xf32>
    %132 = arith.subf %117, %131 : vector<8x512xf32>
    %cst_71 = arith.constant 9.99999974E-6 : f32
    %133 = vector.broadcast %cst_71 : f32 to vector<8x1xf32>
    %134 = arith.addf %130, %133 : vector<8x1xf32>
    %135 = math.rsqrt %134 : vector<8x1xf32>
    %136 = vector.broadcast %135 : vector<8x1xf32> to vector<8x512xf32>
    %137 = arith.mulf %132, %136 : vector<8x512xf32>
    %138 = vector.broadcast %118 : vector<1x512xf32> to vector<8x512xf32>
    %139 = arith.mulf %137, %138 : vector<8x512xf32>
    %140 = vector.broadcast %119 : vector<1x512xf32> to vector<8x512xf32>
    %141 = arith.addf %139, %140 : vector<8x512xf32>
    %142 = arith.negf %141 : vector<8x512xf32>
    %143 = math.exp %142 : vector<8x512xf32>
    %cst_72 = arith.constant 1.000000e+00 : f32
    %144 = vector.broadcast %cst_72 : f32 to vector<8x512xf32>
    %145 = arith.addf %144, %143 : vector<8x512xf32>
    %146 = arith.divf %144, %145 : vector<8x512xf32>
    %147 = arith.mulf %141, %146 : vector<8x512xf32>
    %148 = arith.truncf %147 : vector<8x512xf32> to vector<8x512xbf16>
    %c0_73 = arith.constant 0 : index
    %c0_74 = arith.constant 0 : index
    %149 = vector.load %arg23[%c0_73, %c0_74] : memref<512x512xbf16, #tpu.memory_space<vmem>>, vector<512x512xbf16>
    %cst_75 = arith.constant dense<0.000000e+00> : vector<8x512xf32>
    %150 = tpu.matmul %148, %149, %cst_75 {dimension_numbers = #tpu.dot_dimension_numbers<[1], [0], [0], [1], [0, 0, 1, 1], [], []>} : vector<8x512xbf16>, vector<512x512xbf16>, vector<8x512xf32> -> vector<8x512xf32>
    %c0_76 = arith.constant 0 : index
    %c0_77 = arith.constant 0 : index
    %151 = vector.load %arg24[%c0_76, %c0_77] : memref<1x512xf32, #tpu.memory_space<vmem>>, vector<1x512xf32>
    %152 = vector.broadcast %151 : vector<1x512xf32> to vector<8x512xf32>
    %153 = arith.addf %150, %152 : vector<8x512xf32>
    %c0_78 = arith.constant 0 : index
    %c0_79 = arith.constant 0 : index
    %154 = vector.load %arg25[%c0_78, %c0_79] : memref<1x512xf32, #tpu.memory_space<vmem>>, vector<1x512xf32>
    %c0_80 = arith.constant 0 : index
    %c0_81 = arith.constant 0 : index
    %155 = vector.load %arg26[%c0_80, %c0_81] : memref<1x512xf32, #tpu.memory_space<vmem>>, vector<1x512xf32>
    %cst_82 = arith.constant dense<0.000000e+00> : vector<8xf32>
    %156 = vector.multi_reduction <add>, %153, %cst_82 [1] : vector<8x512xf32> to vector<8xf32>
    %157 = vector.shape_cast %156 : vector<8xf32> to vector<8x1xf32>
    %cst_83 = arith.constant 5.120000e+02 : f32
    %158 = vector.broadcast %cst_83 : f32 to vector<8x1xf32>
    %159 = arith.divf %157, %158 : vector<8x1xf32>
    %160 = vector.broadcast %159 : vector<8x1xf32> to vector<8x512xf32>
    %161 = arith.subf %153, %160 : vector<8x512xf32>
    %162 = arith.mulf %161, %161 : vector<8x512xf32>
    %cst_84 = arith.constant dense<0.000000e+00> : vector<8xf32>
    %163 = vector.multi_reduction <add>, %162, %cst_84 [1] : vector<8x512xf32> to vector<8xf32>
    %164 = vector.shape_cast %163 : vector<8xf32> to vector<8x1xf32>
    %cst_85 = arith.constant 5.120000e+02 : f32
    %165 = vector.broadcast %cst_85 : f32 to vector<8x1xf32>
    %166 = arith.divf %164, %165 : vector<8x1xf32>
    %167 = vector.broadcast %159 : vector<8x1xf32> to vector<8x512xf32>
    %168 = arith.subf %153, %167 : vector<8x512xf32>
    %cst_86 = arith.constant 9.99999974E-6 : f32
    %169 = vector.broadcast %cst_86 : f32 to vector<8x1xf32>
    %170 = arith.addf %166, %169 : vector<8x1xf32>
    %171 = math.rsqrt %170 : vector<8x1xf32>
    %172 = vector.broadcast %171 : vector<8x1xf32> to vector<8x512xf32>
    %173 = arith.mulf %168, %172 : vector<8x512xf32>
    %174 = vector.broadcast %154 : vector<1x512xf32> to vector<8x512xf32>
    %175 = arith.mulf %173, %174 : vector<8x512xf32>
    %176 = vector.broadcast %155 : vector<1x512xf32> to vector<8x512xf32>
    %177 = arith.addf %175, %176 : vector<8x512xf32>
    %178 = arith.negf %177 : vector<8x512xf32>
    %179 = math.exp %178 : vector<8x512xf32>
    %cst_87 = arith.constant 1.000000e+00 : f32
    %180 = vector.broadcast %cst_87 : f32 to vector<8x512xf32>
    %181 = arith.addf %180, %179 : vector<8x512xf32>
    %182 = arith.divf %180, %181 : vector<8x512xf32>
    %183 = arith.mulf %177, %182 : vector<8x512xf32>
    %c0_88 = arith.constant 0 : index
    %c0_89 = arith.constant 0 : index
    %184 = vector.load %arg27[%c0_88, %c0_89] : memref<8x512xf32, #tpu.memory_space<vmem>>, vector<8x512xf32>
    tpu.vector_store %arg27[%c0_88, %c0_89], %183 {strides = array<i32>} : memref<8x512xf32, #tpu.memory_space<vmem>>, vector<8x512xf32>,
    return
  }
}

</mosaic_0001>

<llo_original>
// kernel: gcn_forward.1
$region0: #{gcn_forward.1}
  #allocation0 [shape = 'u32[]', space=smem, size = 0x4, offset = 0x4, fixed_abs, tag = 'smem constant byte address 0x4 - core index']
  #allocation1 [shape = 'u32[72,128]{1,0:T(1,128)}', space=vmem, size = 0x9000, scoped, tag = 'internal scratch']
  %s0 = inlined_call_operand.vmem [shape: bf16[16,16], index: 0, kind: input, shape index: {}]
  %s1 = inlined_call_operand.vmem [shape: bf16[16,8], index: 1, kind: input, shape index: {}]
  %s2 = inlined_call_operand.vmem [shape: bf16[8,256], index: 2, kind: input, shape index: {}]
  %s3 = inlined_call_operand.hbm [shape: f32[1,256], index: 3, kind: input, shape index: {}]
  %s4 = inlined_call_operand.hbm [shape: bf16[256,256], index: 4, kind: input, shape index: {}]
  %s5 = inlined_call_operand.hbm [shape: f32[1,256], index: 5, kind: input, shape index: {}]
  %s6 = inlined_call_operand.hbm [shape: bf16[256,256], index: 6, kind: input, shape index: {}]
  %s7 = inlined_call_operand.hbm [shape: f32[1,256], index: 7, kind: input, shape index: {}]
  %s8 = inlined_call_operand.vmem [shape: bf16[48,16], index: 8, kind: input, shape index: {}]
  %s9 = inlined_call_operand.vmem [shape: bf16[1536,32], index: 9, kind: input, shape index: {}]
  %s10 = inlined_call_operand.hbm [shape: f32[1,32], index: 10, kind: input, shape index: {}]
  %s11 = inlined_call_operand.vmem [shape: bf16[8,8], index: 11, kind: input, shape index: {}]
  %s12 = inlined_call_operand.hbm [shape: bf16[8,256], index: 12, kind: input, shape index: {}]
  %s13 = inlined_call_operand.hbm [shape: f32[1,256], index: 13, kind: input, shape index: {}]
  %s14 = inlined_call_operand.hbm [shape: f32[1,32], index: 14, kind: input, shape index: {}]
  %s15 = inlined_call_operand.hbm [shape: f32[1,32], index: 15, kind: input, shape index: {}]
  %s16 = inlined_call_operand.hbm [shape: f32[1,256], index: 16, kind: input, shape index: {}]
  %s17 = inlined_call_operand.hbm [shape: f32[1,256], index: 17, kind: input, shape index: {}]
  %s18 = inlined_call_operand.hbm [shape: bf16[32,512], index: 18, kind: input, shape index: {}]
  %s19 = inlined_call_operand.hbm [shape: bf16[256,512], index: 19, kind: input, shape index: {}]
  %s20 = inlined_call_operand.hbm [shape: f32[1,512], index: 20, kind: input, shape index: {}]
  %s21 = inlined_call_operand.hbm [shape: f32[1,512], index: 21, kind: input, shape index: {}]
  %s22 = inlined_call_operand.hbm [shape: f32[1,512], index: 22, kind: input, shape index: {}]
  %s23 = inlined_call_operand.vmem [shape: bf16[512,512], index: 23, kind: input, shape index: {}]
  %s24 = inlined_call_operand.hbm [shape: f32[1,512], index: 24, kind: input, shape index: {}]
  %s25 = inlined_call_operand.hbm [shape: f32[1,512], index: 25, kind: input, shape index: {}]
  %s26 = inlined_call_operand.hbm [shape: f32[1,512], index: 26, kind: input, shape index: {}]
  %s27 = inlined_call_operand.vmem [shape: f32[8,512], index: 27, kind: output, shape index: {}]
  %s28 = sld [smem:[#allocation0]]
  $region198: #{gcn_forward.1} parent=0
    _
  %s30 = ssub.s32 1, %s28
  %s31 = scalar_select 0, %s30, %s28
  $region1: #{gcn_forward.1} parent=0
    #allocation2 [shape = 'u8[1024]{0}', space=vmem, size = 0x400, scoped, tag = 'input window, operand 3, single buffered']
    #allocation3 [shape = 's32[1]{0}', space=sflag, size = 0x4, scoped, tag = 'scoped memory for gcn_forward.1']
    #allocation4 [shape = 'u8[131072]{0}', space=vmem, size = 0x20000, scoped, tag = 'input window, operand 4, single buffered']
    #allocation5 [shape = 's32[1]{0}', space=sflag, size = 0x4, scoped, tag = 'scoped memory for gcn_forward.1']
    #allocation6 [shape = 'u8[1024]{0}', space=vmem, size = 0x400, scoped, tag = 'input window, operand 5, single buffered']
    #allocation7 [shape = 'u8[131072]{0}', space=vmem, size = 0x20000, scoped, tag = 'input window, operand 6, single buffered']
    #allocation8 [shape = 's32[1]{0}', space=sflag, size = 0x4, scoped, tag = 'scoped memory for gcn_forward.1']
    #allocation9 [shape = 'u8[1024]{0}', space=vmem, size = 0x400, scoped, tag = 'input window, operand 7, single buffered']
    #allocation10 [shape = 'u8[512]{0}', space=vmem, size = 0x400, scoped, tag = 'input window, operand 10, single buffered']
    #allocation11 [shape = 's32[1]{0}', space=sflag, size = 0x4, scoped, tag = 'scoped memory for gcn_forward.1']
    #allocation12 [shape = 'u8[4096]{0}', space=vmem, size = 0x1000, scoped, tag = 'input window, operand 12, single buffered']
    #allocation13 [shape = 'u8[1024]{0}', space=vmem, size = 0x400, scoped, tag = 'input window, operand 13, single buffered']
    #allocation14 [shape = 's32[1]{0}', space=sflag, size = 0x4, scoped, tag = 'scoped memory for gcn_forward.1']
    #allocation15 [shape = 'u8[512]{0}', space=vmem, size = 0x400, scoped, tag = 'input window, operand 14, single buffered']
    #allocation16 [shape = 'u8[512]{0}', space=vmem, size = 0x400, scoped, tag = 'input window, operand 15, single buffered']
    #allocation17 [shape = 's32[1]{0}', space=sflag, size = 0x4, scoped, tag = 'scoped memory for gcn_forward.1']
    #allocation18 [shape = 'u8[1024]{0}', space=vmem, size = 0x400, scoped, tag = 'input window, operand 16, single buffered']
    #allocation19 [shape = 'u8[1024]{0}', space=vmem, size = 0x400, scoped, tag = 'input window, operand 17, single buffered']
    #allocation20 [shape = 's32[1]{0}', space=sflag, size = 0x4, scoped, tag = 'scoped memory for gcn_forward.1']
    #allocation21 [shape = 'u8[32768]{0}', space=vmem, size = 0x8000, scoped, tag = 'input window, operand 18, single buffered']
    #allocation22 [shape = 'u8[262144]{0}', space=vmem, size = 0x40000, scoped, tag = 'input window, operand 19, single buffered']
    #allocation23 [shape = 's32[1]{0}', space=sflag, size = 0x4, scoped, tag = 'scoped memory for gcn_forward.1']
    #allocation24 [shape = 'u8[2048]{0}', space=vmem, size = 0x800, scoped, tag = 'input window, operand 20, single buffered']
    #allocation25 [shape = 'u8[2048]{0}', space=vmem, size = 0x800, scoped, tag = 'input window, operand 21, single buffered']
    #allocation26 [shape = 's32[1]{0}', space=sflag, size = 0x4, scoped, tag = 'scoped memory for gcn_forward.1']
    #allocation27 [shape = 'u8[2048]{0}', space=vmem, size = 0x800, scoped, tag = 'input window, operand 22, single buffered']
    #allocation28 [shape = 'u8[2048]{0}', space=vmem, size = 0x800, scoped, tag = 'input window, operand 24, single buffered']
    #allocation29 [shape = 's32[1]{0}', space=sflag, size = 0x4, scoped, tag = 'scoped memory for gcn_forward.1']
    #allocation30 [shape = 'u8[2048]{0}', space=vmem, size = 0x800, scoped, tag = 'input window, operand 25, single buffered']
    #allocation31 [shape = 'u8[2048]{0}', space=vmem, size = 0x800, scoped, tag = 'input window, operand 26, single buffered']
    #allocation32 [shape = 's32[1]{0}', space=sflag, size = 0x4, scoped, tag = 'scoped memory for gcn_forward.1']
    %32 = vsyncpa [#allocation3], 0
    %33 = vsyncpa [#allocation5], 0
    %34 = vsyncpa [#allocation8], 0
    %35 = vsyncpa [#allocation11], 0
    %36 = vsyncpa [#allocation14], 0
    %37 = vsyncpa [#allocation17], 0
    %38 = vsyncpa [#allocation20], 0
    %39 = vsyncpa [#allocation23], 0
    %40 = vsyncpa [#allocation26], 0
    %41 = vsyncpa [#allocation29], 0
    %42 = vsyncpa [#allocation32], 0
    // Predicated region
    $region2: #{gcn_forward.1} parent=1 // pred_check
      _
    $region3: #{gcn_forward.1} parent=1 // pred_check_branch
      %44 = sbr.rel (0) target = $region5
    $region4: #{gcn_forward.1} parent=1 // pred_region
      _
    $region5: #{gcn_forward.1} parent=1 // pred_fallthru
      _
    // Predicated region
    $region6: #{gcn_forward.1} parent=1 // pred_check
      _
    $region7: #{gcn_forward.1} parent=1 // pred_check_branch
      %46 = sbr.rel (0) target = $region9
    $region8: #{gcn_forward.1} parent=1 // pred_region
      _
    $region9: #{gcn_forward.1} parent=1 // pred_fallthru
      _
    // Predicated region
    $region10: #{gcn_forward.1} parent=1 // pred_check
      _
    $region11: #{gcn_forward.1} parent=1 // pred_check_branch
      %48 = sbr.rel (0) target = $region13
    $region12: #{gcn_forward.1} parent=1 // pred_region
      _
    $region13: #{gcn_forward.1} parent=1 // pred_fallthru
      _
    // Predicated region
    $region14: #{gcn_forward.1} parent=1 // pred_check
      _
    $region15: #{gcn_forward.1} parent=1 // pred_check_branch
      %50 = sbr.rel (0) target = $region17
    $region16: #{gcn_forward.1} parent=1 // pred_region
      %52 = vsyncadd [#allocation3], 0
      %s54 = sshll.u32 %s3, 4
      %s55 = int_to_ptr.hbm [resolvable:$true] %s54
      %s56 = sshll.u32 [#allocation2], 4
      %s57 = int_to_ptr.vmem [resolvable:$true] %s56
      %59 = dma.hbm_to_vmem [thread:$0]  %s55, 32, %s57, [#allocation3]
    $region17: #{gcn_forward.1} parent=1 // pred_fallthru
      _
    // Predicated region
    $region18: #{gcn_forward.1} parent=1 // pred_check
      _
    $region19: #{gcn_forward.1} parent=1 // pred_check_branch
      %61 = sbr.rel (0) target = $region21
    $region20: #{gcn_forward.1} parent=1 // pred_region
      %63 = vsyncadd [#allocation5], 0
      %s64 = sshll.u32 %s4, 4
      %s65 = int_to_ptr.hbm [resolvable:$true] %s64
      %s66 = sshll.u32 [#allocation4], 4
      %s67 = int_to_ptr.vmem [resolvable:$true] %s66
      %72 = dma.hbm_to_vmem [thread:$0]  %s65, 4096, %s67, [#allocation5], 128, 128, 8
    $region21: #{gcn_forward.1} parent=1 // pred_fallthru
      _
    // Predicated region
    $region22: #{gcn_forward.1} parent=1 // pred_check
      _
    $region23: #{gcn_forward.1} parent=1 // pred_check_branch
      %74 = sbr.rel (0) target = $region25
    $region24: #{gcn_forward.1} parent=1 // pred_region
      %76 = vsyncadd [#allocation5], 0
      %s78 = sshll.u32 %s5, 4
      %s79 = int_to_ptr.hbm [resolvable:$true] %s78
      %s80 = sshll.u32 [#allocation6], 4
      %s81 = int_to_ptr.vmem [resolvable:$true] %s80
      %83 = dma.hbm_to_vmem [thread:$0]  %s79, 32, %s81, [#allocation5]
    $region25: #{gcn_forward.1} parent=1 // pred_fallthru
      _
    // Predicated region
    $region26: #{gcn_forward.1} parent=1 // pred_check
      _
    $region27: #{gcn_forward.1} parent=1 // pred_check_branch
      %85 = sbr.rel (0) target = $region29
    $region28: #{gcn_forward.1} parent=1 // pred_region
      %87 = vsyncadd [#allocation8], 0
      %s88 = sshll.u32 %s6, 4
      %s89 = int_to_ptr.hbm [resolvable:$true] %s88
      %s90 = sshll.u32 [#allocation7], 4
      %s91 = int_to_ptr.vmem [resolvable:$true] %s90
      %96 = dma.hbm_to_vmem [thread:$0]  %s89, 4096, %s91, [#allocation8], 128, 128, 8
    $region29: #{gcn_forward.1} parent=1 // pred_fallthru
      _
    // Predicated region
    $region30: #{gcn_forward.1} parent=1 // pred_check
      _
    $region31: #{gcn_forward.1} parent=1 // pred_check_branch
      %98 = sbr.rel (0) target = $region33
    $region32: #{gcn_forward.1} parent=1 // pred_region
      %100 = vsyncadd [#allocation8], 0
      %s102 = sshll.u32 %s7, 4
      %s103 = int_to_ptr.hbm [resolvable:$true] %s102
      %s104 = sshll.u32 [#allocation9], 4
      %s105 = int_to_ptr.vmem [resolvable:$true] %s104
      %107 = dma.hbm_to_vmem [thread:$0]  %s103, 32, %s105, [#allocation8]
    $region33: #{gcn_forward.1} parent=1 // pred_fallthru
      _
    // Predicated region
    $region34: #{gcn_forward.1} parent=1 // pred_check
      _
    $region35: #{gcn_forward.1} parent=1 // pred_check_branch
      %109 = sbr.rel (0) target = $region37
    $region36: #{gcn_forward.1} parent=1 // pred_region
      _
    $region37: #{gcn_forward.1} parent=1 // pred_fallthru
      _
    // Predicated region
    $region38: #{gcn_forward.1} parent=1 // pred_check
      _
    $region39: #{gcn_forward.1} parent=1 // pred_check_branch
      %111 = sbr.rel (0) target = $region41
    $region40: #{gcn_forward.1} parent=1 // pred_region
      _
    $region41: #{gcn_forward.1} parent=1 // pred_fallthru
      _
    // Predicated region
    $region42: #{gcn_forward.1} parent=1 // pred_check
      _
    $region43: #{gcn_forward.1} parent=1 // pred_check_branch
      %113 = sbr.rel (0) target = $region45
    $region44: #{gcn_forward.1} parent=1 // pred_region
      %115 = vsyncadd [#allocation11], 0
      %s117 = sshll.u32 %s10, 4
      %s118 = int_to_ptr.hbm [resolvable:$true] %s117
      %s119 = sshll.u32 [#allocation10], 4
      %s120 = int_to_ptr.vmem [resolvable:$true] %s119
      %122 = dma.hbm_to_vmem [thread:$0]  %s118, 16, %s120, [#allocation11]
    $region45: #{gcn_forward.1} parent=1 // pred_fallthru
      _
    // Predicated region
    $region46: #{gcn_forward.1} parent=1 // pred_check
      _
    $region47: #{gcn_forward.1} parent=1 // pred_check_branch
      %124 = sbr.rel (0) target = $region49
    $region48: #{gcn_forward.1} parent=1 // pred_region
      _
    $region49: #{gcn_forward.1} parent=1 // pred_fallthru
      _
    // Predicated region
    $region50: #{gcn_forward.1} parent=1 // pred_check
      _
    $region51: #{gcn_forward.1} parent=1 // pred_check_branch
      %126 = sbr.rel (0) target = $region53
    $region52: #{gcn_forward.1} parent=1 // pred_region
      %128 = vsyncadd [#allocation11], 0
      %s130 = sshll.u32 %s12, 4
      %s131 = int_to_ptr.hbm [resolvable:$true] %s130
      %s132 = sshll.u32 [#allocation12], 4
      %s133 = int_to_ptr.vmem [resolvable:$true] %s132
      %135 = dma.hbm_to_vmem [thread:$0]  %s131, 128, %s133, [#allocation11]
    $region53: #{gcn_forward.1} parent=1 // pred_fallthru
      _
    // Predicated region
    $region54: #{gcn_forward.1} parent=1 // pred_check
      _
    $region55: #{gcn_forward.1} parent=1 // pred_check_branch
      %137 = sbr.rel (0) target = $region57
    $region56: #{gcn_forward.1} parent=1 // pred_region
      %139 = vsyncadd [#allocation14], 0
      %s141 = sshll.u32 %s13, 4
      %s142 = int_to_ptr.hbm [resolvable:$true] %s141
      %s143 = sshll.u32 [#allocation13], 4
      %s144 = int_to_ptr.vmem [resolvable:$true] %s143
      %146 = dma.hbm_to_vmem [thread:$0]  %s142, 32, %s144, [#allocation14]
    $region57: #{gcn_forward.1} parent=1 // pred_fallthru
      _
    // Predicated region
    $region58: #{gcn_forward.1} parent=1 // pred_check
      _
    $region59: #{gcn_forward.1} parent=1 // pred_check_branch
      %148 = sbr.rel (0) target = $region61
    $region60: #{gcn_forward.1} parent=1 // pred_region
      %150 = vsyncadd [#allocation14], 0
      %s152 = sshll.u32 %s14, 4
      %s153 = int_to_ptr.hbm [resolvable:$true] %s152
      %s154 = sshll.u32 [#allocation15], 4
      %s155 = int_to_ptr.vmem [resolvable:$true] %s154
      %157 = dma.hbm_to_vmem [thread:$0]  %s153, 16, %s155, [#allocation14]
    $region61: #{gcn_forward.1} parent=1 // pred_fallthru
      _
    // Predicated region
    $region62: #{gcn_forward.1} parent=1 // pred_check
      _
    $region63: #{gcn_forward.1} parent=1 // pred_check_branch
      %159 = sbr.rel (0) target = $region65
    $region64: #{gcn_forward.1} parent=1 // pred_region
      %161 = vsyncadd [#allocation17], 0
      %s163 = sshll.u32 %s15, 4
      %s164 = int_to_ptr.hbm [resolvable:$true] %s163
      %s165 = sshll.u32 [#allocation16], 4
      %s166 = int_to_ptr.vmem [resolvable:$true] %s165
      %168 = dma.hbm_to_vmem [thread:$0]  %s164, 16, %s166, [#allocation17]
    $region65: #{gcn_forward.1} parent=1 // pred_fallthru
      _
    // Predicated region
    $region66: #{gcn_forward.1} parent=1 // pred_check
      _
    $region67: #{gcn_forward.1} parent=1 // pred_check_branch
      %170 = sbr.rel (0) target = $region69
    $region68: #{gcn_forward.1} parent=1 // pred_region
      %172 = vsyncadd [#allocation17], 0
      %s174 = sshll.u32 %s16, 4
      %s175 = int_to_ptr.hbm [resolvable:$true] %s174
      %s176 = sshll.u32 [#allocation18], 4
      %s177 = int_to_ptr.vmem [resolvable:$true] %s176
      %179 = dma.hbm_to_vmem [thread:$0]  %s175, 32, %s177, [#allocation17]
    $region69: #{gcn_forward.1} parent=1 // pred_fallthru
      _
    // Predicated region
    $region70: #{gcn_forward.1} parent=1 // pred_check
      _
    $region71: #{gcn_forward.1} parent=1 // pred_check_branch
      %181 = sbr.rel (0) target = $region73
    $region72: #{gcn_forward.1} parent=1 // pred_region
      %183 = vsyncadd [#allocation20], 0
      %s185 = sshll.u32 %s17, 4
      %s186 = int_to_ptr.hbm [resolvable:$true] %s185
      %s187 = sshll.u32 [#allocation19], 4
      %s188 = int_to_ptr.vmem [resolvable:$true] %s187
      %190 = dma.hbm_to_vmem [thread:$0]  %s186, 32, %s188, [#allocation20]
    $region73: #{gcn_forward.1} parent=1 // pred_fallthru
      _
    // Predicated region
    $region74: #{gcn_forward.1} parent=1 // pred_check
      _
    $region75: #{gcn_forward.1} parent=1 // pred_check_branch
      %192 = sbr.rel (0) target = $region77
    $region76: #{gcn_forward.1} parent=1 // pred_region
      %194 = vsyncadd [#allocation20], 0
      %s195 = sshll.u32 %s18, 4
      %s196 = int_to_ptr.hbm [resolvable:$true] %s195
      %s197 = sshll.u32 [#allocation21], 4
      %s198 = int_to_ptr.vmem [resolvable:$true] %s197
      %203 = dma.hbm_to_vmem [thread:$0]  %s196, 1024, %s198, [#allocation20], 256, 256, 16
    $region77: #{gcn_forward.1} parent=1 // pred_fallthru
      _
    // Predicated region
    $region78: #{gcn_forward.1} parent=1 // pred_check
      _
    $region79: #{gcn_forward.1} parent=1 // pred_check_branch
      %205 = sbr.rel (0) target = $region81
    $region80: #{gcn_forward.1} parent=1 // pred_region
      %207 = vsyncadd [#allocation23], 0
      %s208 = sshll.u32 %s19, 4
      %s209 = int_to_ptr.hbm [resolvable:$true] %s208
      %s210 = sshll.u32 [#allocation22], 4
      %s211 = int_to_ptr.vmem [resolvable:$true] %s210
      %216 = dma.hbm_to_vmem [thread:$0]  %s209, 8192, %s211, [#allocation23], 256, 256, 16
    $region81: #{gcn_forward.1} parent=1 // pred_fallthru
      _
    // Predicated region
    $region82: #{gcn_forward.1} parent=1 // pred_check
      _
    $region83: #{gcn_forward.1} parent=1 // pred_check_branch
      %218 = sbr.rel (0) target = $region85
    $region84: #{gcn_forward.1} parent=1 // pred_region
      %220 = vsyncadd [#allocation23], 0
      %s222 = sshll.u32 %s20, 4
      %s223 = int_to_ptr.hbm [resolvable:$true] %s222
      %s224 = sshll.u32 [#allocation24], 4
      %s225 = int_to_ptr.vmem [resolvable:$true] %s224
      %227 = dma.hbm_to_vmem [thread:$0]  %s223, 64, %s225, [#allocation23]
    $region85: #{gcn_forward.1} parent=1 // pred_fallthru
      _
    // Predicated region
    $region86: #{gcn_forward.1} parent=1 // pred_check
      _
    $region87: #{gcn_forward.1} parent=1 // pred_check_branch
      %229 = sbr.rel (0) target = $region89
    $region88: #{gcn_forward.1} parent=1 // pred_region
      %231 = vsyncadd [#allocation26], 0
      %s233 = sshll.u32 %s21, 4
      %s234 = int_to_ptr.hbm [resolvable:$true] %s233
      %s235 = sshll.u32 [#allocation25], 4
      %s236 = int_to_ptr.vmem [resolvable:$true] %s235
      %238 = dma.hbm_to_vmem [thread:$0]  %s234, 64, %s236, [#allocation26]
    $region89: #{gcn_forward.1} parent=1 // pred_fallthru
      _
    // Predicated region
    $region90: #{gcn_forward.1} parent=1 // pred_check
      _
    $region91: #{gcn_forward.1} parent=1 // pred_check_branch
      %240 = sbr.rel (0) target = $region93
    $region92: #{gcn_forward.1} parent=1 // pred_region
      %242 = vsyncadd [#allocation26], 0
      %s244 = sshll.u32 %s22, 4
      %s245 = int_to_ptr.hbm [resolvable:$true] %s244
      %s246 = sshll.u32 [#allocation27], 4
      %s247 = int_to_ptr.vmem [resolvable:$true] %s246
      %249 = dma.hbm_to_vmem [thread:$0]  %s245, 64, %s247, [#allocation26]
    $region93: #{gcn_forward.1} parent=1 // pred_fallthru
      _
    // Predicated region
    $region94: #{gcn_forward.1} parent=1 // pred_check
      _
    $region95: #{gcn_forward.1} parent=1 // pred_check_branch
      %251 = sbr.rel (0) target = $region97
    $region96: #{gcn_forward.1} parent=1 // pred_region
      _
    $region97: #{gcn_forward.1} parent=1 // pred_fallthru
      _
    // Predicated region
    $region98: #{gcn_forward.1} parent=1 // pred_check
      _
    $region99: #{gcn_forward.1} parent=1 // pred_check_branch
      %253 = sbr.rel (0) target = $region101
    $region100: #{gcn_forward.1} parent=1 // pred_region
      %255 = vsyncadd [#allocation29], 0
      %s257 = sshll.u32 %s24, 4
      %s258 = int_to_ptr.hbm [resolvable:$true] %s257
      %s259 = sshll.u32 [#allocation28], 4
      %s260 = int_to_ptr.vmem [resolvable:$true] %s259
      %262 = dma.hbm_to_vmem [thread:$0]  %s258, 64, %s260, [#allocation29]
    $region101: #{gcn_forward.1} parent=1 // pred_fallthru
      _
    // Predicated region
    $region102: #{gcn_forward.1} parent=1 // pred_check
      _
    $region103: #{gcn_forward.1} parent=1 // pred_check_branch
      %264 = sbr.rel (0) target = $region105
    $region104: #{gcn_forward.1} parent=1 // pred_region
      %266 = vsyncadd [#allocation29], 0
      %s268 = sshll.u32 %s25, 4
      %s269 = int_to_ptr.hbm [resolvable:$true] %s268
      %s270 = sshll.u32 [#allocation30], 4
      %s271 = int_to_ptr.vmem [resolvable:$true] %s270
      %273 = dma.hbm_to_vmem [thread:$0]  %s269, 64, %s271, [#allocation29]
    $region105: #{gcn_forward.1} parent=1 // pred_fallthru
      _
    // Predicated region
    $region106: #{gcn_forward.1} parent=1 // pred_check
      _
    $region107: #{gcn_forward.1} parent=1 // pred_check_branch
      %275 = sbr.rel (0) target = $region109
    $region108: #{gcn_forward.1} parent=1 // pred_region
      %277 = vsyncadd [#allocation32], 0
      %s279 = sshll.u32 %s26, 4
      %s280 = int_to_ptr.hbm [resolvable:$true] %s279
      %s281 = sshll.u32 [#allocation31], 4
      %s282 = int_to_ptr.vmem [resolvable:$true] %s281
      %284 = dma.hbm_to_vmem [thread:$0]  %s280, 64, %s282, [#allocation32]
    $region109: #{gcn_forward.1} parent=1 // pred_fallthru
      _
    // Predicated region
    $region110: #{gcn_forward.1} parent=1 // pred_check
      _
    $region111: #{gcn_forward.1} parent=1 // pred_check_branch
      %286 = sbr.rel (0) target = $region113
    $region112: #{gcn_forward.1} parent=1 // pred_region
      %288 = dma.done [#allocation3], 32
    $region113: #{gcn_forward.1} parent=1 // pred_fallthru
      _
    // Predicated region
    $region114: #{gcn_forward.1} parent=1 // pred_check
      _
    $region115: #{gcn_forward.1} parent=1 // pred_check_branch
      %290 = sbr.rel (0) target = $region117
    $region116: #{gcn_forward.1} parent=1 // pred_region
      %292 = dma.done [#allocation5], 4096
    $region117: #{gcn_forward.1} parent=1 // pred_fallthru
      _
    // Predicated region
    $region118: #{gcn_forward.1} parent=1 // pred_check
      _
    $region119: #{gcn_forward.1} parent=1 // pred_check_branch
      %294 = sbr.rel (0) target = $region121
    $region120: #{gcn_forward.1} parent=1 // pred_region
      %296 = dma.done [#allocation5], 32
    $region121: #{gcn_forward.1} parent=1 // pred_fallthru
      _
    // Predicated region
    $region122: #{gcn_forward.1} parent=1 // pred_check
      _
    $region123: #{gcn_forward.1} parent=1 // pred_check_branch
      %298 = sbr.rel (0) target = $region125
    $region124: #{gcn_forward.1} parent=1 // pred_region
      %300 = dma.done [#allocation8], 4096
    $region125: #{gcn_forward.1} parent=1 // pred_fallthru
      _
    // Predicated region
    $region126: #{gcn_forward.1} parent=1 // pred_check
      _
    $region127: #{gcn_forward.1} parent=1 // pred_check_branch
      %302 = sbr.rel (0) target = $region129
    $region128: #{gcn_forward.1} parent=1 // pred_region
      %304 = dma.done [#allocation8], 32
    $region129: #{gcn_forward.1} parent=1 // pred_fallthru
      _
    // Predicated region
    $region130: #{gcn_forward.1} parent=1 // pred_check
      _
    $region131: #{gcn_forward.1} parent=1 // pred_check_branch
      %306 = sbr.rel (0) target = $region133
    $region132: #{gcn_forward.1} parent=1 // pred_region
      %308 = dma.done [#allocation11], 16
    $region133: #{gcn_forward.1} parent=1 // pred_fallthru
      _
    // Predicated region
    $region134: #{gcn_forward.1} parent=1 // pred_check
      _
    $region135: #{gcn_forward.1} parent=1 // pred_check_branch
      %310 = sbr.rel (0) target = $region137
    $region136: #{gcn_forward.1} parent=1 // pred_region
      %312 = dma.done [#allocation11], 128
    $region137: #{gcn_forward.1} parent=1 // pred_fallthru
      _
    // Predicated region
    $region138: #{gcn_forward.1} parent=1 // pred_check
      _
    $region139: #{gcn_forward.1} parent=1 // pred_check_branch
      %314 = sbr.rel (0) target = $region141
    $region140: #{gcn_forward.1} parent=1 // pred_region
      %316 = dma.done [#allocation14], 32
    $region141: #{gcn_forward.1} parent=1 // pred_fallthru
      _
    // Predicated region
    $region142: #{gcn_forward.1} parent=1 // pred_check
      _
    $region143: #{gcn_forward.1} parent=1 // pred_check_branch
      %318 = sbr.rel (0) target = $region145
    $region144: #{gcn_forward.1} parent=1 // pred_region
      %320 = dma.done [#allocation14], 16
    $region145: #{gcn_forward.1} parent=1 // pred_fallthru
      _
    // Predicated region
    $region146: #{gcn_forward.1} parent=1 // pred_check
      _
    $region147: #{gcn_forward.1} parent=1 // pred_check_branch
      %322 = sbr.rel (0) target = $region149
    $region148: #{gcn_forward.1} parent=1 // pred_region
      %324 = dma.done [#allocation17], 16
    $region149: #{gcn_forward.1} parent=1 // pred_fallthru
      _
    // Predicated region
    $region150: #{gcn_forward.1} parent=1 // pred_check
      _
    $region151: #{gcn_forward.1} parent=1 // pred_check_branch
      %326 = sbr.rel (0) target = $region153
    $region152: #{gcn_forward.1} parent=1 // pred_region
      %328 = dma.done [#allocation17], 32
    $region153: #{gcn_forward.1} parent=1 // pred_fallthru
      _
    // Predicated region
    $region154: #{gcn_forward.1} parent=1 // pred_check
      _
    $region155: #{gcn_forward.1} parent=1 // pred_check_branch
      %330 = sbr.rel (0) target = $region157
    $region156: #{gcn_forward.1} parent=1 // pred_region
      %332 = dma.done [#allocation20], 32
    $region157: #{gcn_forward.1} parent=1 // pred_fallthru
      _
    // Predicated region
    $region158: #{gcn_forward.1} parent=1 // pred_check
      _
    $region159: #{gcn_forward.1} parent=1 // pred_check_branch
      %334 = sbr.rel (0) target = $region161
    $region160: #{gcn_forward.1} parent=1 // pred_region
      %336 = dma.done [#allocation20], 1024
    $region161: #{gcn_forward.1} parent=1 // pred_fallthru
      _
    // Predicated region
    $region162: #{gcn_forward.1} parent=1 // pred_check
      _
    $region163: #{gcn_forward.1} parent=1 // pred_check_branch
      %338 = sbr.rel (0) target = $region165
    $region164: #{gcn_forward.1} parent=1 // pred_region
      %340 = dma.done [#allocation23], 8192
    $region165: #{gcn_forward.1} parent=1 // pred_fallthru
      _
    // Predicated region
    $region166: #{gcn_forward.1} parent=1 // pred_check
      _
    $region167: #{gcn_forward.1} parent=1 // pred_check_branch
      %342 = sbr.rel (0) target = $region169
    $region168: #{gcn_forward.1} parent=1 // pred_region
      %344 = dma.done [#allocation23], 64
    $region169: #{gcn_forward.1} parent=1 // pred_fallthru
      _
    // Predicated region
    $region170: #{gcn_forward.1} parent=1 // pred_check
      _
    $region171: #{gcn_forward.1} parent=1 // pred_check_branch
      %346 = sbr.rel (0) target = $region173
    $region172: #{gcn_forward.1} parent=1 // pred_region
      %348 = dma.done [#allocation26], 64
    $region173: #{gcn_forward.1} parent=1 // pred_fallthru
      _
    // Predicated region
    $region174: #{gcn_forward.1} parent=1 // pred_check
      _
    $region175: #{gcn_forward.1} parent=1 // pred_check_branch
      %350 = sbr.rel (0) target = $region177
    $region176: #{gcn_forward.1} parent=1 // pred_region
      %352 = dma.done [#allocation26], 64
    $region177: #{gcn_forward.1} parent=1 // pred_fallthru
      _
    // Predicated region
    $region178: #{gcn_forward.1} parent=1 // pred_check
      _
    $region179: #{gcn_forward.1} parent=1 // pred_check_branch
      %354 = sbr.rel (0) target = $region181
    $region180: #{gcn_forward.1} parent=1 // pred_region
      %356 = dma.done [#allocation29], 64
    $region181: #{gcn_forward.1} parent=1 // pred_fallthru
      _
    // Predicated region
    $region182: #{gcn_forward.1} parent=1 // pred_check
      _
    $region183: #{gcn_forward.1} parent=1 // pred_check_branch
      %358 = sbr.rel (0) target = $region185
    $region184: #{gcn_forward.1} parent=1 // pred_region
      %360 = dma.done [#allocation29], 64
    $region185: #{gcn_forward.1} parent=1 // pred_fallthru
      _
    // Predicated region
    $region186: #{gcn_forward.1} parent=1 // pred_check
      _
    $region187: #{gcn_forward.1} parent=1 // pred_check_branch
      %362 = sbr.rel (0) target = $region189
    $region188: #{gcn_forward.1} parent=1 // pred_region
      %364 = dma.done [#allocation32], 64
    $region189: #{gcn_forward.1} parent=1 // pred_fallthru
      _
    %v366 = vld [vmem:[%s0] sm:$0xf]
    %v367 = vld [vmem:[%s0 + $0x4] sm:$0xf]
    %v368 = vld [vmem:[%s1] sm:$0xf]
    %v369 = vld [vmem:[%s1 + $0x4] sm:$0xf]
    %v370 = vld [vmem:[%s2] sm:$0xff]
    %v373 = vunpack.c.l.b16 %v368
    %v374 = vunpack.c.l.b16 %v369
    %v375 = vpack.c.b16 %v374, %v373
    %v377 = vunpack.c.l.b16 %v370
    %v378 = vunpack.c.h.b16 %v370
    %v379 = vpack.c.b16 %v377, %v377
    %v380 = vpack.c.b16 %v378, %v378
    %vm381 = vcmask 64512
    %v383 = vsel %vm381, %v375, 0
    %vm385 = vcmask 1043456
    %v387 = vsel %vm385, %v379, 0
    %v390 = vsel %vm385, %v380, 0
    %392 = vmatpush.bf16.msra.mxu0 0
    %393 = vmatpush.bf16.msra.mxu0 0
    %394 = vmatpush.bf16.msra.mxu0 0
    %395 = vmatpush.bf16.msra.mxu0 0
    %396 = vmatpush.bf16.msra.mxu0 0
    %397 = vmatpush.bf16.msra.mxu0 0
    %398 = vmatpush.bf16.msra.mxu0 0
    %399 = vmatpush.bf16.msra.mxu0 %v387
    %400 = vmatmul.bf16.gmra.mxu0 %v383
    %v401 = vpop.f32.mrf.mxu0
    %v402 = vadd.f32 0.0, %v401
    %v403 = vpop.f32.mrf.mxu0
    %v404 = vadd.f32 0.0, %v403
    %405 = vdwg.mxu0
    %406 = vmatpush.bf16.msra.mxu0 0
    %407 = vmatpush.bf16.msra.mxu0 0
    %408 = vmatpush.bf16.msra.mxu0 0
    %409 = vmatpush.bf16.msra.mxu0 0
    %410 = vmatpush.bf16.msra.mxu0 0
    %411 = vmatpush.bf16.msra.mxu0 0
    %412 = vmatpush.bf16.msra.mxu0 0
    %413 = vmatpush.bf16.msra.mxu0 %v390
    %414 = vmatmul.bf16.gmra.mxu0 %v383
    %v415 = vpop.f32.mrf.mxu0
    %v416 = vadd.f32 0.0, %v415
    %v417 = vpop.f32.mrf.mxu0
    %v418 = vadd.f32 0.0, %v417
    %419 = vdwg.mxu0
    %v420 = vpack.c.bf16 %v404, %v402
    %v421 = vpack.c.bf16 %v418, %v416
    %v422 = vld [vmem:[#allocation2] sm:$0x3]
    %v424 = vperm.slane %v422, 0
    %v425 = vperm.slane %v422, 1
    %v430 = vunpack.c.l.b16 %v366
    %v431 = vunpack.c.l.b16 %v367
    %v432 = vpack.c.b16 %v431, %v430
    %vm433 = vcmask 130048
    %v435 = vsel %vm433, %v432, 0
    %437 = vmatpush.bf16.msra.mxu0 0
    %438 = vmatpush.bf16.msra.mxu0 0
    %439 = vmatpush.bf16.msra.mxu0 0
    %440 = vmatpush.bf16.msra.mxu0 0
    %441 = vmatpush.bf16.msra.mxu0 0
    %442 = vmatpush.bf16.msra.mxu0 0
    %443 = vmatpush.bf16.msra.mxu0 0
    %444 = vmatpush.bf16.msra.mxu0 %v420
    %445 = vmatmul.bf16.gmra.mxu0 %v435
    %v446 = vpop.f32.mrf.mxu0
    %v447 = vadd.f32 %v424, %v446
    %v448 = vpop.f32.mrf.mxu0
    %v449 = vadd.f32 %v424, %v448
    %450 = vdwg.mxu0
    %451 = vmatpush.bf16.msra.mxu0 0
    %452 = vmatpush.bf16.msra.mxu0 0
    %453 = vmatpush.bf16.msra.mxu0 0
    %454 = vmatpush.bf16.msra.mxu0 0
    %455 = vmatpush.bf16.msra.mxu0 0
    %456 = vmatpush.bf16.msra.mxu0 0
    %457 = vmatpush.bf16.msra.mxu0 0
    %458 = vmatpush.bf16.msra.mxu0 %v421
    %459 = vmatmul.bf16.gmra.mxu0 %v435
    %v460 = vpop.f32.mrf.mxu0
    %v461 = vadd.f32 %v425, %v460
    %v462 = vpop.f32.mrf.mxu0
    %v463 = vadd.f32 %v425, %v462
    %464 = vdwg.mxu0
    %v465 = vmax.f32 %v447, 0.0
    %v466 = vmax.f32 %v461, 0.0
    %v467 = vmax.f32 %v449, 0.0
    %v468 = vmax.f32 %v463, 0.0
    %v469 = vpack.c.bf16 %v467, %v465
    %v470 = vpack.c.bf16 %v468, %v466
    %v471 = vld [vmem:[#allocation4] sm:$0xff]
    %v472 = vld [vmem:[#allocation4 + $0x8] sm:$0xff]
    %v473 = vld [vmem:[#allocation4 + $0x10] sm:$0xff]
    %v474 = vld [vmem:[#allocation4 + $0x18] sm:$0xff]
    %v475 = vld [vmem:[#allocation4 + $0x20] sm:$0xff]
    %v476 = vld [vmem:[#allocation4 + $0x28] sm:$0xff]
    %v477 = vld [vmem:[#allocation4 + $0x30] sm:$0xff]
    %v478 = vld [vmem:[#allocation4 + $0x38] sm:$0xff]
    %v479 = vld [vmem:[#allocation4 + $0x40] sm:$0xff]
    %v480 = vld [vmem:[#allocation4 + $0x48] sm:$0xff]
    %v481 = vld [vmem:[#allocation4 + $0x50] sm:$0xff]
    %v482 = vld [vmem:[#allocation4 + $0x58] sm:$0xff]
    %v483 = vld [vmem:[#allocation4 + $0x60] sm:$0xff]
    %v484 = vld [vmem:[#allocation4 + $0x68] sm:$0xff]
    %v485 = vld [vmem:[#allocation4 + $0x70] sm:$0xff]
    %v486 = vld [vmem:[#allocation4 + $0x78] sm:$0xff]
    %v487 = vld [vmem:[#allocation4 + $0x80] sm:$0xff]
    %v488 = vld [vmem:[#allocation4 + $0x88] sm:$0xff]
    %v489 = vld [vmem:[#allocation4 + $0x90] sm:$0xff]
    %v490 = vld [vmem:[#allocation4 + $0x98] sm:$0xff]
    %v491 = vld [vmem:[#allocation4 + $0xa0] sm:$0xff]
    %v492 = vld [vmem:[#allocation4 + $0xa8] sm:$0xff]
    %v493 = vld [vmem:[#allocation4 + $0xb0] sm:$0xff]
    %v494 = vld [vmem:[#allocation4 + $0xb8] sm:$0xff]
    %v495 = vld [vmem:[#allocation4 + $0xc0] sm:$0xff]
    %v496 = vld [vmem:[#allocation4 + $0xc8] sm:$0xff]
    %v497 = vld [vmem:[#allocation4 + $0xd0] sm:$0xff]
    %v498 = vld [vmem:[#allocation4 + $0xd8] sm:$0xff]
    %v499 = vld [vmem:[#allocation4 + $0xe0] sm:$0xff]
    %v500 = vld [vmem:[#allocation4 + $0xe8] sm:$0xff]
    %v501 = vld [vmem:[#allocation4 + $0xf0] sm:$0xff]
    %v502 = vld [vmem:[#allocation4 + $0xf8] sm:$0xff]
    %v535 = vunpack.c.l.b16 %v471
    %v536 = vunpack.c.h.b16 %v471
    %v537 = vunpack.c.l.b16 %v472
    %v538 = vunpack.c.h.b16 %v472
    %v539 = vunpack.c.l.b16 %v473
    %v540 = vunpack.c.h.b16 %v473
    %v541 = vunpack.c.l.b16 %v474
    %v542 = vunpack.c.h.b16 %v474
    %v543 = vunpack.c.l.b16 %v475
    %v544 = vunpack.c.h.b16 %v475
    %v545 = vunpack.c.l.b16 %v476
    %v546 = vunpack.c.h.b16 %v476
    %v547 = vunpack.c.l.b16 %v477
    %v548 = vunpack.c.h.b16 %v477
    %v549 = vunpack.c.l.b16 %v478
    %v550 = vunpack.c.h.b16 %v478
    %v551 = vunpack.c.l.b16 %v479
    %v552 = vunpack.c.h.b16 %v479
    %v553 = vunpack.c.l.b16 %v480
    %v554 = vunpack.c.h.b16 %v480
    %v555 = vunpack.c.l.b16 %v481
    %v556 = vunpack.c.h.b16 %v481
    %v557 = vunpack.c.l.b16 %v482
    %v558 = vunpack.c.h.b16 %v482
    %v559 = vunpack.c.l.b16 %v483
    %v560 = vunpack.c.h.b16 %v483
    %v561 = vunpack.c.l.b16 %v484
    %v562 = vunpack.c.h.b16 %v484
    %v563 = vunpack.c.l.b16 %v485
    %v564 = vunpack.c.h.b16 %v485
    %v565 = vunpack.c.l.b16 %v486
    %v566 = vunpack.c.h.b16 %v486
    %v567 = vunpack.c.l.b16 %v487
    %v568 = vunpack.c.h.b16 %v487
    %v569 = vunpack.c.l.b16 %v488
    %v570 = vunpack.c.h.b16 %v488
    %v571 = vunpack.c.l.b16 %v489
    %v572 = vunpack.c.h.b16 %v489
    %v573 = vunpack.c.l.b16 %v490
    %v574 = vunpack.c.h.b16 %v490
    %v575 = vunpack.c.l.b16 %v491
    %v576 = vunpack.c.h.b16 %v491
    %v577 = vunpack.c.l.b16 %v492
    %v578 = vunpack.c.h.b16 %v492
    %v579 = vunpack.c.l.b16 %v493
    %v580 = vunpack.c.h.b16 %v493
    %v581 = vunpack.c.l.b16 %v494
    %v582 = vunpack.c.h.b16 %v494
    %v583 = vunpack.c.l.b16 %v495
    %v584 = vunpack.c.h.b16 %v495
    %v585 = vunpack.c.l.b16 %v496
    %v586 = vunpack.c.h.b16 %v496
    %v587 = vunpack.c.l.b16 %v497
    %v588 = vunpack.c.h.b16 %v497
    %v589 = vunpack.c.l.b16 %v498
    %v590 = vunpack.c.h.b16 %v498
    %v591 = vunpack.c.l.b16 %v499
    %v592 = vunpack.c.h.b16 %v499
    %v593 = vunpack.c.l.b16 %v500
    %v594 = vunpack.c.h.b16 %v500
    %v595 = vunpack.c.l.b16 %v501
    %v596 = vunpack.c.h.b16 %v501
    %v597 = vunpack.c.l.b16 %v502
    %v598 = vunpack.c.h.b16 %v502
    %v599 = vpack.c.b16 %v537, %v535
    %v600 = vpack.c.b16 %v538, %v536
    %v601 = vpack.c.b16 %v541, %v539
    %v602 = vpack.c.b16 %v542, %v540
    %v603 = vpack.c.b16 %v545, %v543
    %v604 = vpack.c.b16 %v546, %v544
    %v605 = vpack.c.b16 %v549, %v547
    %v606 = vpack.c.b16 %v550, %v548
    %v607 = vpack.c.b16 %v553, %v551
    %v608 = vpack.c.b16 %v554, %v552
    %v609 = vpack.c.b16 %v557, %v555
    %v610 = vpack.c.b16 %v558, %v556
    %v611 = vpack.c.b16 %v561, %v559
    %v612 = vpack.c.b16 %v562, %v560
    %v613 = vpack.c.b16 %v565, %v563
    %v614 = vpack.c.b16 %v566, %v564
    %v615 = vpack.c.b16 %v569, %v567
    %v616 = vpack.c.b16 %v570, %v568
    %v617 = vpack.c.b16 %v573, %v571
    %v618 = vpack.c.b16 %v574, %v572
    %v619 = vpack.c.b16 %v577, %v575
    %v620 = vpack.c.b16 %v578, %v576
    %v621 = vpack.c.b16 %v581, %v579
    %v622 = vpack.c.b16 %v582, %v580
    %v623 = vpack.c.b16 %v585, %v583
    %v624 = vpack.c.b16 %v586, %v584
    %v625 = vpack.c.b16 %v589, %v587
    %v626 = vpack.c.b16 %v590, %v588
    %v627 = vpack.c.b16 %v593, %v591
    %v628 = vpack.c.b16 %v594, %v592
    %v629 = vpack.c.b16 %v597, %v595
    %v630 = vpack.c.b16 %v598, %v596
    %663 = vmatpush.bf16.msra.mxu0 %v613
    %664 = vmatpush.bf16.msra.mxu0 %v611
    %665 = vmatpush.bf16.msra.mxu0 %v609
    %666 = vmatpush.bf16.msra.mxu0 %v607
    %667 = vmatpush.bf16.msra.mxu0 %v605
    %668 = vmatpush.bf16.msra.mxu0 %v603
    %669 = vmatpush.bf16.msra.mxu0 %v601
    %670 = vmatpush.bf16.msra.mxu0 %v599
    %671 = vmatmul.bf16.gmra.mxu0 %v469
    %v672 = vpop.f32.mrf.mxu0
    %v673 = vadd.f32 0.0, %v672
    %v674 = vpop.f32.mrf.mxu0
    %v675 = vadd.f32 0.0, %v674
    %676 = vdwg.mxu0
    %677 = vmatpush.bf16.msra.mxu0 %v629
    %678 = vmatpush.bf16.msra.mxu0 %v627
    %679 = vmatpush.bf16.msra.mxu0 %v625
    %680 = vmatpush.bf16.msra.mxu0 %v623
    %681 = vmatpush.bf16.msra.mxu0 %v621
    %682 = vmatpush.bf16.msra.mxu0 %v619
    %683 = vmatpush.bf16.msra.mxu0 %v617
    %684 = vmatpush.bf16.msra.mxu0 %v615
    %685 = vmatmul.bf16.gmra.mxu0 %v470
    %v686 = vpop.f32.mrf.mxu0
    %v687 = vadd.f32 %v673, %v686
    %v688 = vpop.f32.mrf.mxu0
    %v689 = vadd.f32 %v675, %v688
    %690 = vdwg.mxu0
    %691 = vmatpush.bf16.msra.mxu0 %v614
    %692 = vmatpush.bf16.msra.mxu0 %v612
    %693 = vmatpush.bf16.msra.mxu0 %v610
    %694 = vmatpush.bf16.msra.mxu0 %v608
    %695 = vmatpush.bf16.msra.mxu0 %v606
    %696 = vmatpush.bf16.msra.mxu0 %v604
    %697 = vmatpush.bf16.msra.mxu0 %v602
    %698 = vmatpush.bf16.msra.mxu0 %v600
    %699 = vmatmul.bf16.gmra.mxu0 %v469
    %v700 = vpop.f32.mrf.mxu0
    %v701 = vadd.f32 0.0, %v700
    %v702 = vpop.f32.mrf.mxu0
    %v703 = vadd.f32 0.0, %v702
    %704 = vdwg.mxu0
    %705 = vmatpush.bf16.msra.mxu0 %v630
    %706 = vmatpush.bf16.msra.mxu0 %v628
    %707 = vmatpush.bf16.msra.mxu0 %v626
    %708 = vmatpush.bf16.msra.mxu0 %v624
    %709 = vmatpush.bf16.msra.mxu0 %v622
    %710 = vmatpush.bf16.msra.mxu0 %v620
    %711 = vmatpush.bf16.msra.mxu0 %v618
    %712 = vmatpush.bf16.msra.mxu0 %v616
    %713 = vmatmul.bf16.gmra.mxu0 %v470
    %v714 = vpop.f32.mrf.mxu0
    %v715 = vadd.f32 %v701, %v714
    %v716 = vpop.f32.mrf.mxu0
    %v717 = vadd.f32 %v703, %v716
    %718 = vdwg.mxu0
    %v719 = vpack.c.bf16 %v689, %v687
    %v720 = vpack.c.bf16 %v717, %v715
    %v721 = vld [vmem:[#allocation6] sm:$0x3]
    %v723 = vperm.slane %v721, 0
    %v724 = vperm.slane %v721, 1
    %727 = vmatpush.bf16.msra.mxu0 0
    %728 = vmatpush.bf16.msra.mxu0 0
    %729 = vmatpush.bf16.msra.mxu0 0
    %730 = vmatpush.bf16.msra.mxu0 0
    %731 = vmatpush.bf16.msra.mxu0 0
    %732 = vmatpush.bf16.msra.mxu0 0
    %733 = vmatpush.bf16.msra.mxu0 0
    %734 = vmatpush.bf16.msra.mxu0 %v719
    %735 = vmatmul.bf16.gmra.mxu0 %v435
    %v736 = vpop.f32.mrf.mxu0
    %v737 = vadd.f32 %v723, %v736
    %v738 = vpop.f32.mrf.mxu0
    %v739 = vadd.f32 %v723, %v738
    %740 = vdwg.mxu0
    %741 = vmatpush.bf16.msra.mxu0 0
    %742 = vmatpush.bf16.msra.mxu0 0
    %743 = vmatpush.bf16.msra.mxu0 0
    %744 = vmatpush.bf16.msra.mxu0 0
    %745 = vmatpush.bf16.msra.mxu0 0
    %746 = vmatpush.bf16.msra.mxu0 0
    %747 = vmatpush.bf16.msra.mxu0 0
    %748 = vmatpush.bf16.msra.mxu0 %v720
    %749 = vmatmul.bf16.gmra.mxu0 %v435
    %v750 = vpop.f32.mrf.mxu0
    %v751 = vadd.f32 %v724, %v750
    %v752 = vpop.f32.mrf.mxu0
    %v753 = vadd.f32 %v724, %v752
    %754 = vdwg.mxu0
    %v755 = vmax.f32 %v737, 0.0
    %v756 = vmax.f32 %v751, 0.0
    %v757 = vmax.f32 %v739, 0.0
    %v758 = vmax.f32 %v753, 0.0
    %v759 = vpack.c.bf16 %v757, %v755
    %v760 = vpack.c.bf16 %v758, %v756
    %v761 = vld [vmem:[#allocation7] sm:$0xff]
    %v762 = vld [vmem:[#allocation7 + $0x8] sm:$0xff]
    %v763 = vld [vmem:[#allocation7 + $0x10] sm:$0xff]
    %v764 = vld [vmem:[#allocation7 + $0x18] sm:$0xff]
    %v765 = vld [vmem:[#allocation7 + $0x20] sm:$0xff]
    %v766 = vld [vmem:[#allocation7 + $0x28] sm:$0xff]
    %v767 = vld [vmem:[#allocation7 + $0x30] sm:$0xff]
    %v768 = vld [vmem:[#allocation7 + $0x38] sm:$0xff]
    %v769 = vld [vmem:[#allocation7 + $0x40] sm:$0xff]
    %v770 = vld [vmem:[#allocation7 + $0x48] sm:$0xff]
    %v771 = vld [vmem:[#allocation7 + $0x50] sm:$0xff]
    %v772 = vld [vmem:[#allocation7 + $0x58] sm:$0xff]
    %v773 = vld [vmem:[#allocation7 + $0x60] sm:$0xff]
    %v774 = vld [vmem:[#allocation7 + $0x68] sm:$0xff]
    %v775 = vld [vmem:[#allocation7 + $0x70] sm:$0xff]
    %v776 = vld [vmem:[#allocation7 + $0x78] sm:$0xff]
    %v777 = vld [vmem:[#allocation7 + $0x80] sm:$0xff]
    %v778 = vld [vmem:[#allocation7 + $0x88] sm:$0xff]
    %v779 = vld [vmem:[#allocation7 + $0x90] sm:$0xff]
    %v780 = vld [vmem:[#allocation7 + $0x98] sm:$0xff]
    %v781 = vld [vmem:[#allocation7 + $0xa0] sm:$0xff]
    %v782 = vld [vmem:[#allocation7 + $0xa8] sm:$0xff]
    %v783 = vld [vmem:[#allocation7 + $0xb0] sm:$0xff]
    %v784 = vld [vmem:[#allocation7 + $0xb8] sm:$0xff]
    %v785 = vld [vmem:[#allocation7 + $0xc0] sm:$0xff]
    %v786 = vld [vmem:[#allocation7 + $0xc8] sm:$0xff]
    %v787 = vld [vmem:[#allocation7 + $0xd0] sm:$0xff]
    %v788 = vld [vmem:[#allocation7 + $0xd8] sm:$0xff]
    %v789 = vld [vmem:[#allocation7 + $0xe0] sm:$0xff]
    %v790 = vld [vmem:[#allocation7 + $0xe8] sm:$0xff]
    %v791 = vld [vmem:[#allocation7 + $0xf0] sm:$0xff]
    %v792 = vld [vmem:[#allocation7 + $0xf8] sm:$0xff]
    %v825 = vunpack.c.l.b16 %v761
    %v826 = vunpack.c.h.b16 %v761
    %v827 = vunpack.c.l.b16 %v762
    %v828 = vunpack.c.h.b16 %v762
    %v829 = vunpack.c.l.b16 %v763
    %v830 = vunpack.c.h.b16 %v763
    %v831 = vunpack.c.l.b16 %v764
    %v832 = vunpack.c.h.b16 %v764
    %v833 = vunpack.c.l.b16 %v765
    %v834 = vunpack.c.h.b16 %v765
    %v835 = vunpack.c.l.b16 %v766
    %v836 = vunpack.c.h.b16 %v766
    %v837 = vunpack.c.l.b16 %v767
    %v838 = vunpack.c.h.b16 %v767
    %v839 = vunpack.c.l.b16 %v768
    %v840 = vunpack.c.h.b16 %v768
    %v841 = vunpack.c.l.b16 %v769
    %v842 = vunpack.c.h.b16 %v769
    %v843 = vunpack.c.l.b16 %v770
    %v844 = vunpack.c.h.b16 %v770
    %v845 = vunpack.c.l.b16 %v771
    %v846 = vunpack.c.h.b16 %v771
    %v847 = vunpack.c.l.b16 %v772
    %v848 = vunpack.c.h.b16 %v772
    %v849 = vunpack.c.l.b16 %v773
    %v850 = vunpack.c.h.b16 %v773
    %v851 = vunpack.c.l.b16 %v774
    %v852 = vunpack.c.h.b16 %v774
    %v853 = vunpack.c.l.b16 %v775
    %v854 = vunpack.c.h.b16 %v775
    %v855 = vunpack.c.l.b16 %v776
    %v856 = vunpack.c.h.b16 %v776
    %v857 = vunpack.c.l.b16 %v777
    %v858 = vunpack.c.h.b16 %v777
    %v859 = vunpack.c.l.b16 %v778
    %v860 = vunpack.c.h.b16 %v778
    %v861 = vunpack.c.l.b16 %v779
    %v862 = vunpack.c.h.b16 %v779
    %v863 = vunpack.c.l.b16 %v780
    %v864 = vunpack.c.h.b16 %v780
    %v865 = vunpack.c.l.b16 %v781
    %v866 = vunpack.c.h.b16 %v781
    %v867 = vunpack.c.l.b16 %v782
    %v868 = vunpack.c.h.b16 %v782
    %v869 = vunpack.c.l.b16 %v783
    %v870 = vunpack.c.h.b16 %v783
    %v871 = vunpack.c.l.b16 %v784
    %v872 = vunpack.c.h.b16 %v784
    %v873 = vunpack.c.l.b16 %v785
    %v874 = vunpack.c.h.b16 %v785
    %v875 = vunpack.c.l.b16 %v786
    %v876 = vunpack.c.h.b16 %v786
    %v877 = vunpack.c.l.b16 %v787
    %v878 = vunpack.c.h.b16 %v787
    %v879 = vunpack.c.l.b16 %v788
    %v880 = vunpack.c.h.b16 %v788
    %v881 = vunpack.c.l.b16 %v789
    %v882 = vunpack.c.h.b16 %v789
    %v883 = vunpack.c.l.b16 %v790
    %v884 = vunpack.c.h.b16 %v790
    %v885 = vunpack.c.l.b16 %v791
    %v886 = vunpack.c.h.b16 %v791
    %v887 = vunpack.c.l.b16 %v792
    %v888 = vunpack.c.h.b16 %v792
    %v889 = vpack.c.b16 %v827, %v825
    %v890 = vpack.c.b16 %v828, %v826
    %v891 = vpack.c.b16 %v831, %v829
    %v892 = vpack.c.b16 %v832, %v830
    %v893 = vpack.c.b16 %v835, %v833
    %v894 = vpack.c.b16 %v836, %v834
    %v895 = vpack.c.b16 %v839, %v837
    %v896 = vpack.c.b16 %v840, %v838
    %v897 = vpack.c.b16 %v843, %v841
    %v898 = vpack.c.b16 %v844, %v842
    %v899 = vpack.c.b16 %v847, %v845
    %v900 = vpack.c.b16 %v848, %v846
    %v901 = vpack.c.b16 %v851, %v849
    %v902 = vpack.c.b16 %v852, %v850
    %v903 = vpack.c.b16 %v855, %v853
    %v904 = vpack.c.b16 %v856, %v854
    %v905 = vpack.c.b16 %v859, %v857
    %v906 = vpack.c.b16 %v860, %v858
    %v907 = vpack.c.b16 %v863, %v861
    %v908 = vpack.c.b16 %v864, %v862
    %v909 = vpack.c.b16 %v867, %v865
    %v910 = vpack.c.b16 %v868, %v866
    %v911 = vpack.c.b16 %v871, %v869
    %v912 = vpack.c.b16 %v872, %v870
    %v913 = vpack.c.b16 %v875, %v873
    %v914 = vpack.c.b16 %v876, %v874
    %v915 = vpack.c.b16 %v879, %v877
    %v916 = vpack.c.b16 %v880, %v878
    %v917 = vpack.c.b16 %v883, %v881
    %v918 = vpack.c.b16 %v884, %v882
    %v919 = vpack.c.b16 %v887, %v885
    %v920 = vpack.c.b16 %v888, %v886
    %953 = vmatpush.bf16.msra.mxu0 %v903
    %954 = vmatpush.bf16.msra.mxu0 %v901
    %955 = vmatpush.bf16.msra.mxu0 %v899
    %956 = vmatpush.bf16.msra.mxu0 %v897
    %957 = vmatpush.bf16.msra.mxu0 %v895
    %958 = vmatpush.bf16.msra.mxu0 %v893
    %959 = vmatpush.bf16.msra.mxu0 %v891
    %960 = vmatpush.bf16.msra.mxu0 %v889
    %961 = vmatmul.bf16.gmra.mxu0 %v759
    %v962 = vpop.f32.mrf.mxu0
    %v963 = vadd.f32 0.0, %v962
    %v964 = vpop.f32.mrf.mxu0
    %v965 = vadd.f32 0.0, %v964
    %966 = vdwg.mxu0
    %967 = vmatpush.bf16.msra.mxu0 %v919
    %968 = vmatpush.bf16.msra.mxu0 %v917
    %969 = vmatpush.bf16.msra.mxu0 %v915
    %970 = vmatpush.bf16.msra.mxu0 %v913
    %971 = vmatpush.bf16.msra.mxu0 %v911
    %972 = vmatpush.bf16.msra.mxu0 %v909
    %973 = vmatpush.bf16.msra.mxu0 %v907
    %974 = vmatpush.bf16.msra.mxu0 %v905
    %975 = vmatmul.bf16.gmra.mxu0 %v760
    %v976 = vpop.f32.mrf.mxu0
    %v977 = vadd.f32 %v963, %v976
    %v978 = vpop.f32.mrf.mxu0
    %v979 = vadd.f32 %v965, %v978
    %980 = vdwg.mxu0
    %981 = vmatpush.bf16.msra.mxu0 %v904
    %982 = vmatpush.bf16.msra.mxu0 %v902
    %983 = vmatpush.bf16.msra.mxu0 %v900
    %984 = vmatpush.bf16.msra.mxu0 %v898
    %985 = vmatpush.bf16.msra.mxu0 %v896
    %986 = vmatpush.bf16.msra.mxu0 %v894
    %987 = vmatpush.bf16.msra.mxu0 %v892
    %988 = vmatpush.bf16.msra.mxu0 %v890
    %989 = vmatmul.bf16.gmra.mxu0 %v759
    %v990 = vpop.f32.mrf.mxu0
    %v991 = vadd.f32 0.0, %v990
    %v992 = vpop.f32.mrf.mxu0
    %v993 = vadd.f32 0.0, %v992
    %994 = vdwg.mxu0
    %995 = vmatpush.bf16.msra.mxu0 %v920
    %996 = vmatpush.bf16.msra.mxu0 %v918
    %997 = vmatpush.bf16.msra.mxu0 %v916
    %998 = vmatpush.bf16.msra.mxu0 %v914
    %999 = vmatpush.bf16.msra.mxu0 %v912
    %1000 = vmatpush.bf16.msra.mxu0 %v910
    %1001 = vmatpush.bf16.msra.mxu0 %v908
    %1002 = vmatpush.bf16.msra.mxu0 %v906
    %1003 = vmatmul.bf16.gmra.mxu0 %v760
    %v1004 = vpop.f32.mrf.mxu0
    %v1005 = vadd.f32 %v991, %v1004
    %v1006 = vpop.f32.mrf.mxu0
    %v1007 = vadd.f32 %v993, %v1006
    %1008 = vdwg.mxu0
    %v1009 = vpack.c.bf16 %v979, %v977
    %v1010 = vpack.c.bf16 %v1007, %v1005
    %v1011 = vld [vmem:[#allocation9] sm:$0x3]
    %v1013 = vperm.slane %v1011, 0
    %v1014 = vperm.slane %v1011, 1
    %1017 = vmatpush.bf16.msra.mxu0 0
    %1018 = vmatpush.bf16.msra.mxu0 0
    %1019 = vmatpush.bf16.msra.mxu0 0
    %1020 = vmatpush.bf16.msra.mxu0 0
    %1021 = vmatpush.bf16.msra.mxu0 0
    %1022 = vmatpush.bf16.msra.mxu0 0
    %1023 = vmatpush.bf16.msra.mxu0 0
    %1024 = vmatpush.bf16.msra.mxu0 %v1009
    %1025 = vmatmul.bf16.gmra.mxu0 %v435
    %v1026 = vpop.f32.mrf.mxu0
    %v1027 = vadd.f32 %v1013, %v1026
    %v1028 = vpop.f32.mrf.mxu0
    %v1029 = vadd.f32 %v1013, %v1028
    %1030 = vdwg.mxu0
    %1031 = vmatpush.bf16.msra.mxu0 0
    %1032 = vmatpush.bf16.msra.mxu0 0
    %1033 = vmatpush.bf16.msra.mxu0 0
    %1034 = vmatpush.bf16.msra.mxu0 0
    %1035 = vmatpush.bf16.msra.mxu0 0
    %1036 = vmatpush.bf16.msra.mxu0 0
    %1037 = vmatpush.bf16.msra.mxu0 0
    %1038 = vmatpush.bf16.msra.mxu0 %v1010
    %1039 = vmatmul.bf16.gmra.mxu0 %v435
    %v1040 = vpop.f32.mrf.mxu0
    %v1041 = vadd.f32 %v1014, %v1040
    %v1042 = vpop.f32.mrf.mxu0
    %v1043 = vadd.f32 %v1014, %v1042
    %1044 = vdwg.mxu0
    %v1045 = vmax.f32 %v1027, 0.0
    %v1046 = vmax.f32 %v1041, 0.0
    %v1047 = vmax.f32 %v1029, 0.0
    %v1048 = vmax.f32 %v1043, 0.0
    %v1049 = vld [vmem:[%s8] sm:$0xf]
    %v1050 = vld [vmem:[%s8 + $0x4] sm:$0xf]
    %v1051 = vld [vmem:[%s8 + $0x8] sm:$0xf]
    %v1052 = vld [vmem:[%s8 + $0xc] sm:$0xf]
    %v1053 = vld [vmem:[%s8 + $0x10] sm:$0xf]
    %v1054 = vld [vmem:[%s8 + $0x14] sm:$0xf]
    %v1055 = vpack.c.bf16 %v1047, %v1045
    %v1056 = vpack.c.bf16 %v1048, %v1046
    %v1063 = vunpack.c.l.b16 %v1049
    %v1064 = vunpack.c.l.b16 %v1050
    %v1065 = vunpack.c.l.b16 %v1051
    %v1066 = vunpack.c.l.b16 %v1052
    %v1067 = vunpack.c.l.b16 %v1053
    %v1068 = vunpack.c.l.b16 %v1054
    %v1069 = vpack.c.b16 %v1064, %v1063
    %v1070 = vpack.c.b16 %v1066, %v1065
    %v1071 = vpack.c.b16 %v1068, %v1067
    %v1073 = vsel %vm433, %v1069, 0
    %v1076 = vsel %vm433, %v1070, 0
    %v1079 = vsel %vm433, %v1071, 0
    %1081 = vmatpush.bf16.msra.mxu0 0
    %1082 = vmatpush.bf16.msra.mxu0 0
    %1083 = vmatpush.bf16.msra.mxu0 0
    %1084 = vmatpush.bf16.msra.mxu0 0
    %1085 = vmatpush.bf16.msra.mxu0 0
    %1086 = vmatpush.bf16.msra.mxu0 0
    %1087 = vmatpush.bf16.msra.mxu0 0
    %1088 = vmatpush.bf16.msra.mxu0 %v1055
    %1089 = vmatmul.bf16.gmra.mxu0 %v1073
    %v1090 = vpop.f32.mrf.mxu0
    %v1091 = vadd.f32 0.0, %v1090
    %v1092 = vpop.f32.mrf.mxu0
    %v1093 = vadd.f32 0.0, %v1092
    %1094 = vmatmul.bf16.gmra.mxu0 %v1076
    %v1095 = vpop.f32.mrf.mxu0
    %v1096 = vadd.f32 0.0, %v1095
    %v1097 = vpop.f32.mrf.mxu0
    %v1098 = vadd.f32 0.0, %v1097
    %1099 = vmatmul.bf16.gmra.mxu0 %v1079
    %v1100 = vpop.f32.mrf.mxu0
    %v1101 = vadd.f32 0.0, %v1100
    %v1102 = vpop.f32.mrf.mxu0
    %v1103 = vadd.f32 0.0, %v1102
    %1104 = vdwg.mxu0
    %1105 = vmatpush.bf16.msra.mxu0 0
    %1106 = vmatpush.bf16.msra.mxu0 0
    %1107 = vmatpush.bf16.msra.mxu0 0
    %1108 = vmatpush.bf16.msra.mxu0 0
    %1109 = vmatpush.bf16.msra.mxu0 0
    %1110 = vmatpush.bf16.msra.mxu0 0
    %1111 = vmatpush.bf16.msra.mxu0 0
    %1112 = vmatpush.bf16.msra.mxu0 %v1056
    %1113 = vmatmul.bf16.gmra.mxu0 %v1073
    %v1114 = vpop.f32.mrf.mxu0
    %v1115 = vadd.f32 0.0, %v1114
    %v1116 = vpop.f32.mrf.mxu0
    %v1117 = vadd.f32 0.0, %v1116
    %1118 = vmatmul.bf16.gmra.mxu0 %v1076
    %v1119 = vpop.f32.mrf.mxu0
    %v1120 = vadd.f32 0.0, %v1119
    %v1121 = vpop.f32.mrf.mxu0
    %v1122 = vadd.f32 0.0, %v1121
    %1123 = vmatmul.bf16.gmra.mxu0 %v1079
    %v1124 = vpop.f32.mrf.mxu0
    %v1125 = vadd.f32 0.0, %v1124
    %v1126 = vpop.f32.mrf.mxu0
    %v1127 = vadd.f32 0.0, %v1126
    %1128 = vdwg.mxu0
    %v1129 = vpack.c.bf16 %v1091, %v1091
    %v1130 = vpack.c.bf16 %v1115, %v1115
    %v1131 = vpack.c.bf16 %v1093, %v1093
    %v1132 = vpack.c.bf16 %v1117, %v1117
    %v1133 = vpack.c.bf16 %v1096, %v1096
    %v1134 = vpack.c.bf16 %v1120, %v1120
    %v1135 = vpack.c.bf16 %v1098, %v1098
    %v1136 = vpack.c.bf16 %v1122, %v1122
    %v1137 = vpack.c.bf16 %v1101, %v1101
    %v1138 = vpack.c.bf16 %v1125, %v1125
    %v1139 = vpack.c.bf16 %v1103, %v1103
    %v1140 = vpack.c.bf16 %v1127, %v1127
    %v1141 = vld [vmem:[%s9] sm:$0xf]
    %v1142 = vld [vmem:[%s9 + $0x4] sm:$0xf]
    %v1143 = vld [vmem:[%s9 + $0x8] sm:$0xf]
    %v1144 = vld [vmem:[%s9 + $0xc] sm:$0xf]
    %v1145 = vld [vmem:[%s9 + $0x10] sm:$0xf]
    %v1146 = vld [vmem:[%s9 + $0x14] sm:$0xf]
    %v1147 = vld [vmem:[%s9 + $0x18] sm:$0xf]
    %v1148 = vld [vmem:[%s9 + $0x1c] sm:$0xf]
    %v1149 = vld [vmem:[%s9 + $0x20] sm:$0xf]
    %v1150 = vld [vmem:[%s9 + $0x24] sm:$0xf]
    %v1151 = vld [vmem:[%s9 + $0x28] sm:$0xf]
    %v1152 = vld [vmem:[%s9 + $0x2c] sm:$0xf]
    %v1153 = vld [vmem:[%s9 + $0x30] sm:$0xf]
    %v1154 = vld [vmem:[%s9 + $0x34] sm:$0xf]
    %v1155 = vld [vmem:[%s9 + $0x38] sm:$0xf]
    %v1156 = vld [vmem:[%s9 + $0x3c] sm:$0xf]
    %v1157 = vld [vmem:[%s9 + $0x40] sm:$0xf]
    %v1158 = vld [vmem:[%s9 + $0x44] sm:$0xf]
    %v1159 = vld [vmem:[%s9 + $0x48] sm:$0xf]
    %v1160 = vld [vmem:[%s9 + $0x4c] sm:$0xf]
    %v1161 = vld [vmem:[%s9 + $0x50] sm:$0xf]
    %v1162 = vld [vmem:[%s9 + $0x54] sm:$0xf]
    %v1163 = vld [vmem:[%s9 + $0x58] sm:$0xf]
    %v1164 = vld [vmem:[%s9 + $0x5c] sm:$0xf]
    %v1165 = vld [vmem:[%s9 + $0x60] sm:$0xf]
    %v1166 = vld [vmem:[%s9 + $0x64] sm:$0xf]
    %v1167 = vld [vmem:[%s9 + $0x68] sm:$0xf]
    %v1168 = vld [vmem:[%s9 + $0x6c] sm:$0xf]
    %v1169 = vld [vmem:[%s9 + $0x70] sm:$0xf]
    %v1170 = vld [vmem:[%s9 + $0x74] sm:$0xf]
    %v1171 = vld [vmem:[%s9 + $0x78] sm:$0xf]
    %v1172 = vld [vmem:[%s9 + $0x7c] sm:$0xf]
    %v1173 = vld [vmem:[%s9 + $0x80] sm:$0xf]
    %v1174 = vld [vmem:[%s9 + $0x84] sm:$0xf]
    %v1175 = vld [vmem:[%s9 + $0x88] sm:$0xf]
    %v1176 = vld [vmem:[%s9 + $0x8c] sm:$0xf]
    %v1177 = vld [vmem:[%s9 + $0x90] sm:$0xf]
    %v1178 = vld [vmem:[%s9 + $0x94] sm:$0xf]
    %v1179 = vld [vmem:[%s9 + $0x98] sm:$0xf]
    %v1180 = vld [vmem:[%s9 + $0x9c] sm:$0xf]
    %v1181 = vld [vmem:[%s9 + $0xa0] sm:$0xf]
    %v1182 = vld [vmem:[%s9 + $0xa4] sm:$0xf]
    %v1183 = vld [vmem:[%s9 + $0xa8] sm:$0xf]
    %v1184 = vld [vmem:[%s9 + $0xac] sm:$0xf]
    %v1185 = vld [vmem:[%s9 + $0xb0] sm:$0xf]
    %v1186 = vld [vmem:[%s9 + $0xb4] sm:$0xf]
    %v1187 = vld [vmem:[%s9 + $0xb8] sm:$0xf]
    %v1188 = vld [vmem:[%s9 + $0xbc] sm:$0xf]
    %v1189 = vld [vmem:[%s9 + $0xc0] sm:$0xf]
    %v1190 = vld [vmem:[%s9 + $0xc4] sm:$0xf]
    %v1191 = vld [vmem:[%s9 + $0xc8] sm:$0xf]
    %v1192 = vld [vmem:[%s9 + $0xcc] sm:$0xf]
    %v1193 = vld [vmem:[%s9 + $0xd0] sm:$0xf]
    %v1194 = vld [vmem:[%s9 + $0xd4] sm:$0xf]
    %v1195 = vld [vmem:[%s9 + $0xd8] sm:$0xf]
    %v1196 = vld [vmem:[%s9 + $0xdc] sm:$0xf]
    %v1197 = vld [vmem:[%s9 + $0xe0] sm:$0xf]
    %v1198 = vld [vmem:[%s9 + $0xe4] sm:$0xf]
    %v1199 = vld [vmem:[%s9 + $0xe8] sm:$0xf]
    %v1200 = vld [vmem:[%s9 + $0xec] sm:$0xf]
    %v1201 = vld [vmem:[%s9 + $0xf0] sm:$0xf]
    %v1202 = vld [vmem:[%s9 + $0xf4] sm:$0xf]
    %v1203 = vld [vmem:[%s9 + $0xf8] sm:$0xf]
    %v1204 = vld [vmem:[%s9 + $0xfc] sm:$0xf]
    %v1205 = vld [vmem:[%s9 + $0x100] sm:$0xf]
    %v1206 = vld [vmem:[%s9 + $0x104] sm:$0xf]
    %v1207 = vld [vmem:[%s9 + $0x108] sm:$0xf]
    %v1208 = vld [vmem:[%s9 + $0x10c] sm:$0xf]
    %v1209 = vld [vmem:[%s9 + $0x110] sm:$0xf]
    %v1210 = vld [vmem:[%s9 + $0x114] sm:$0xf]
    %v1211 = vld [vmem:[%s9 + $0x118] sm:$0xf]
    %v1212 = vld [vmem:[%s9 + $0x11c] sm:$0xf]
    %v1213 = vld [vmem:[%s9 + $0x120] sm:$0xf]
    %v1214 = vld [vmem:[%s9 + $0x124] sm:$0xf]
    %v1215 = vld [vmem:[%s9 + $0x128] sm:$0xf]
    %v1216 = vld [vmem:[%s9 + $0x12c] sm:$0xf]
    %v1217 = vld [vmem:[%s9 + $0x130] sm:$0xf]
    %v1218 = vld [vmem:[%s9 + $0x134] sm:$0xf]
    %v1219 = vld [vmem:[%s9 + $0x138] sm:$0xf]
    %v1220 = vld [vmem:[%s9 + $0x13c] sm:$0xf]
    %v1221 = vld [vmem:[%s9 + $0x140] sm:$0xf]
    %v1222 = vld [vmem:[%s9 + $0x144] sm:$0xf]
    %v1223 = vld [vmem:[%s9 + $0x148] sm:$0xf]
    %v1224 = vld [vmem:[%s9 + $0x14c] sm:$0xf]
    %v1225 = vld [vmem:[%s9 + $0x150] sm:$0xf]
    %v1226 = vld [vmem:[%s9 + $0x154] sm:$0xf]
    %v1227 = vld [vmem:[%s9 + $0x158] sm:$0xf]
    %v1228 = vld [vmem:[%s9 + $0x15c] sm:$0xf]
    %v1229 = vld [vmem:[%s9 + $0x160] sm:$0xf]
    %v1230 = vld [vmem:[%s9 + $0x164] sm:$0xf]
    %v1231 = vld [vmem:[%s9 + $0x168] sm:$0xf]
    %v1232 = vld [vmem:[%s9 + $0x16c] sm:$0xf]
    %v1233 = vld [vmem:[%s9 + $0x170] sm:$0xf]
    %v1234 = vld [vmem:[%s9 + $0x174] sm:$0xf]
    %v1235 = vld [vmem:[%s9 + $0x178] sm:$0xf]
    %v1236 = vld [vmem:[%s9 + $0x17c] sm:$0xf]
    %v1237 = vld [vmem:[%s9 + $0x180] sm:$0xf]
    %v1238 = vld [vmem:[%s9 + $0x184] sm:$0xf]
    %v1239 = vld [vmem:[%s9 + $0x188] sm:$0xf]
    %v1240 = vld [vmem:[%s9 + $0x18c] sm:$0xf]
    %v1241 = vld [vmem:[%s9 + $0x190] sm:$0xf]
    %v1242 = vld [vmem:[%s9 + $0x194] sm:$0xf]
    %v1243 = vld [vmem:[%s9 + $0x198] sm:$0xf]
    %v1244 = vld [vmem:[%s9 + $0x19c] sm:$0xf]
    %v1245 = vld [vmem:[%s9 + $0x1a0] sm:$0xf]
    %v1246 = vld [vmem:[%s9 + $0x1a4] sm:$0xf]
    %v1247 = vld [vmem:[%s9 + $0x1a8] sm:$0xf]
    %v1248 = vld [vmem:[%s9 + $0x1ac] sm:$0xf]
    %v1249 = vld [vmem:[%s9 + $0x1b0] sm:$0xf]
    %v1250 = vld [vmem:[%s9 + $0x1b4] sm:$0xf]
    %v1251 = vld [vmem:[%s9 + $0x1b8] sm:$0xf]
    %v1252 = vld [vmem:[%s9 + $0x1bc] sm:$0xf]
    %v1253 = vld [vmem:[%s9 + $0x1c0] sm:$0xf]
    %v1254 = vld [vmem:[%s9 + $0x1c4] sm:$0xf]
    %v1255 = vld [vmem:[%s9 + $0x1c8] sm:$0xf]
    %v1256 = vld [vmem:[%s9 + $0x1cc] sm:$0xf]
    %v1257 = vld [vmem:[%s9 + $0x1d0] sm:$0xf]
    %v1258 = vld [vmem:[%s9 + $0x1d4] sm:$0xf]
    %v1259 = vld [vmem:[%s9 + $0x1d8] sm:$0xf]
    %v1260 = vld [vmem:[%s9 + $0x1dc] sm:$0xf]
    %v1261 = vld [vmem:[%s9 + $0x1e0] sm:$0xf]
    %v1262 = vld [vmem:[%s9 + $0x1e4] sm:$0xf]
    %v1263 = vld [vmem:[%s9 + $0x1e8] sm:$0xf]
    %v1264 = vld [vmem:[%s9 + $0x1ec] sm:$0xf]
    %v1265 = vld [vmem:[%s9 + $0x1f0] sm:$0xf]
    %v1266 = vld [vmem:[%s9 + $0x1f4] sm:$0xf]
    %v1267 = vld [vmem:[%s9 + $0x1f8] sm:$0xf]
    %v1268 = vld [vmem:[%s9 + $0x1fc] sm:$0xf]
    %v1269 = vld [vmem:[%s9 + $0x200] sm:$0xf]
    %v1270 = vld [vmem:[%s9 + $0x204] sm:$0xf]
    %v1271 = vld [vmem:[%s9 + $0x208] sm:$0xf]
    %v1272 = vld [vmem:[%s9 + $0x20c] sm:$0xf]
    %v1273 = vld [vmem:[%s9 + $0x210] sm:$0xf]
    %v1274 = vld [vmem:[%s9 + $0x214] sm:$0xf]
    %v1275 = vld [vmem:[%s9 + $0x218] sm:$0xf]
    %v1276 = vld [vmem:[%s9 + $0x21c] sm:$0xf]
    %v1277 = vld [vmem:[%s9 + $0x220] sm:$0xf]
    %v1278 = vld [vmem:[%s9 + $0x224] sm:$0xf]
    %v1279 = vld [vmem:[%s9 + $0x228] sm:$0xf]
    %v1280 = vld [vmem:[%s9 + $0x22c] sm:$0xf]
    %v1281 = vld [vmem:[%s9 + $0x230] sm:$0xf]
    %v1282 = vld [vmem:[%s9 + $0x234] sm:$0xf]
    %v1283 = vld [vmem:[%s9 + $0x238] sm:$0xf]
    %v1284 = vld [vmem:[%s9 + $0x23c] sm:$0xf]
    %v1285 = vld [vmem:[%s9 + $0x240] sm:$0xf]
    %v1286 = vld [vmem:[%s9 + $0x244] sm:$0xf]
    %v1287 = vld [vmem:[%s9 + $0x248] sm:$0xf]
    %v1288 = vld [vmem:[%s9 + $0x24c] sm:$0xf]
    %v1289 = vld [vmem:[%s9 + $0x250] sm:$0xf]
    %v1290 = vld [vmem:[%s9 + $0x254] sm:$0xf]
    %v1291 = vld [vmem:[%s9 + $0x258] sm:$0xf]
    %v1292 = vld [vmem:[%s9 + $0x25c] sm:$0xf]
    %v1293 = vld [vmem:[%s9 + $0x260] sm:$0xf]
    %v1294 = vld [vmem:[%s9 + $0x264] sm:$0xf]
    %v1295 = vld [vmem:[%s9 + $0x268] sm:$0xf]
    %v1296 = vld [vmem:[%s9 + $0x26c] sm:$0xf]
    %v1297 = vld [vmem:[%s9 + $0x270] sm:$0xf]
    %v1298 = vld [vmem:[%s9 + $0x274] sm:$0xf]
    %v1299 = vld [vmem:[%s9 + $0x278] sm:$0xf]
    %v1300 = vld [vmem:[%s9 + $0x27c] sm:$0xf]
    %v1301 = vld [vmem:[%s9 + $0x280] sm:$0xf]
    %v1302 = vld [vmem:[%s9 + $0x284] sm:$0xf]
    %v1303 = vld [vmem:[%s9 + $0x288] sm:$0xf]
    %v1304 = vld [vmem:[%s9 + $0x28c] sm:$0xf]
    %v1305 = vld [vmem:[%s9 + $0x290] sm:$0xf]
    %v1306 = vld [vmem:[%s9 + $0x294] sm:$0xf]
    %v1307 = vld [vmem:[%s9 + $0x298] sm:$0xf]
    %v1308 = vld [vmem:[%s9 + $0x29c] sm:$0xf]
    %v1309 = vld [vmem:[%s9 + $0x2a0] sm:$0xf]
    %v1310 = vld [vmem:[%s9 + $0x2a4] sm:$0xf]
    %v1311 = vld [vmem:[%s9 + $0x2a8] sm:$0xf]
    %v1312 = vld [vmem:[%s9 + $0x2ac] sm:$0xf]
    %v1313 = vld [vmem:[%s9 + $0x2b0] sm:$0xf]
    %v1314 = vld [vmem:[%s9 + $0x2b4] sm:$0xf]
    %v1315 = vld [vmem:[%s9 + $0x2b8] sm:$0xf]
    %v1316 = vld [vmem:[%s9 + $0x2bc] sm:$0xf]
    %v1317 = vld [vmem:[%s9 + $0x2c0] sm:$0xf]
    %v1318 = vld [vmem:[%s9 + $0x2c4] sm:$0xf]
    %v1319 = vld [vmem:[%s9 + $0x2c8] sm:$0xf]
    %v1320 = vld [vmem:[%s9 + $0x2cc] sm:$0xf]
    %v1321 = vld [vmem:[%s9 + $0x2d0] sm:$0xf]
    %v1322 = vld [vmem:[%s9 + $0x2d4] sm:$0xf]
    %v1323 = vld [vmem:[%s9 + $0x2d8] sm:$0xf]
    %v1324 = vld [vmem:[%s9 + $0x2dc] sm:$0xf]
    %v1325 = vld [vmem:[%s9 + $0x2e0] sm:$0xf]
    %v1326 = vld [vmem:[%s9 + $0x2e4] sm:$0xf]
    %v1327 = vld [vmem:[%s9 + $0x2e8] sm:$0xf]
    %v1328 = vld [vmem:[%s9 + $0x2ec] sm:$0xf]
    %v1329 = vld [vmem:[%s9 + $0x2f0] sm:$0xf]
    %v1330 = vld [vmem:[%s9 + $0x2f4] sm:$0xf]
    %v1331 = vld [vmem:[%s9 + $0x2f8] sm:$0xf]
    %v1332 = vld [vmem:[%s9 + $0x2fc] sm:$0xf]
    %v1333 = vld [vmem:[#allocation10] sm:$0x1]
    %v1335 = vperm.slane %v1333, 0
    %v1529 = vunpack.c.l.b16 %v1141
    %v1530 = vunpack.c.l.b16 %v1142
    %v1531 = vunpack.c.l.b16 %v1143
    %v1532 = vunpack.c.l.b16 %v1144
    %v1533 = vunpack.c.l.b16 %v1145
    %v1534 = vunpack.c.l.b16 %v1146
    %v1535 = vunpack.c.l.b16 %v1147
    %v1536 = vunpack.c.l.b16 %v1148
    %v1537 = vunpack.c.l.b16 %v1149
    %v1538 = vunpack.c.l.b16 %v1150
    %v1539 = vunpack.c.l.b16 %v1151
    %v1540 = vunpack.c.l.b16 %v1152
    %v1541 = vunpack.c.l.b16 %v1153
    %v1542 = vunpack.c.l.b16 %v1154
    %v1543 = vunpack.c.l.b16 %v1155
    %v1544 = vunpack.c.l.b16 %v1156
    %v1545 = vunpack.c.l.b16 %v1157
    %v1546 = vunpack.c.l.b16 %v1158
    %v1547 = vunpack.c.l.b16 %v1159
    %v1548 = vunpack.c.l.b16 %v1160
    %v1549 = vunpack.c.l.b16 %v1161
    %v1550 = vunpack.c.l.b16 %v1162
    %v1551 = vunpack.c.l.b16 %v1163
    %v1552 = vunpack.c.l.b16 %v1164
    %v1553 = vunpack.c.l.b16 %v1165
    %v1554 = vunpack.c.l.b16 %v1166
    %v1555 = vunpack.c.l.b16 %v1167
    %v1556 = vunpack.c.l.b16 %v1168
    %v1557 = vunpack.c.l.b16 %v1169
    %v1558 = vunpack.c.l.b16 %v1170
    %v1559 = vunpack.c.l.b16 %v1171
    %v1560 = vunpack.c.l.b16 %v1172
    %v1561 = vunpack.c.l.b16 %v1173
    %v1562 = vunpack.c.l.b16 %v1174
    %v1563 = vunpack.c.l.b16 %v1175
    %v1564 = vunpack.c.l.b16 %v1176
    %v1565 = vunpack.c.l.b16 %v1177
    %v1566 = vunpack.c.l.b16 %v1178
    %v1567 = vunpack.c.l.b16 %v1179
    %v1568 = vunpack.c.l.b16 %v1180
    %v1569 = vunpack.c.l.b16 %v1181
    %v1570 = vunpack.c.l.b16 %v1182
    %v1571 = vunpack.c.l.b16 %v1183
    %v1572 = vunpack.c.l.b16 %v1184
    %v1573 = vunpack.c.l.b16 %v1185
    %v1574 = vunpack.c.l.b16 %v1186
    %v1575 = vunpack.c.l.b16 %v1187
    %v1576 = vunpack.c.l.b16 %v1188
    %v1577 = vunpack.c.l.b16 %v1189
    %v1578 = vunpack.c.l.b16 %v1190
    %v1579 = vunpack.c.l.b16 %v1191
    %v1580 = vunpack.c.l.b16 %v1192
    %v1581 = vunpack.c.l.b16 %v1193
    %v1582 = vunpack.c.l.b16 %v1194
    %v1583 = vunpack.c.l.b16 %v1195
    %v1584 = vunpack.c.l.b16 %v1196
    %v1585 = vunpack.c.l.b16 %v1197
    %v1586 = vunpack.c.l.b16 %v1198
    %v1587 = vunpack.c.l.b16 %v1199
    %v1588 = vunpack.c.l.b16 %v1200
    %v1589 = vunpack.c.l.b16 %v1201
    %v1590 = vunpack.c.l.b16 %v1202
    %v1591 = vunpack.c.l.b16 %v1203
    %v1592 = vunpack.c.l.b16 %v1204
    %v1593 = vunpack.c.l.b16 %v1205
    %v1594 = vunpack.c.l.b16 %v1206
    %v1595 = vunpack.c.l.b16 %v1207
    %v1596 = vunpack.c.l.b16 %v1208
    %v1597 = vunpack.c.l.b16 %v1209
    %v1598 = vunpack.c.l.b16 %v1210
    %v1599 = vunpack.c.l.b16 %v1211
    %v1600 = vunpack.c.l.b16 %v1212
    %v1601 = vunpack.c.l.b16 %v1213
    %v1602 = vunpack.c.l.b16 %v1214
    %v1603 = vunpack.c.l.b16 %v1215
    %v1604 = vunpack.c.l.b16 %v1216
    %v1605 = vunpack.c.l.b16 %v1217
    %v1606 = vunpack.c.l.b16 %v1218
    %v1607 = vunpack.c.l.b16 %v1219
    %v1608 = vunpack.c.l.b16 %v1220
    %v1609 = vunpack.c.l.b16 %v1221
    %v1610 = vunpack.c.l.b16 %v1222
    %v1611 = vunpack.c.l.b16 %v1223
    %v1612 = vunpack.c.l.b16 %v1224
    %v1613 = vunpack.c.l.b16 %v1225
    %v1614 = vunpack.c.l.b16 %v1226
    %v1615 = vunpack.c.l.b16 %v1227
    %v1616 = vunpack.c.l.b16 %v1228
    %v1617 = vunpack.c.l.b16 %v1229
    %v1618 = vunpack.c.l.b16 %v1230
    %v1619 = vunpack.c.l.b16 %v1231
    %v1620 = vunpack.c.l.b16 %v1232
    %v1621 = vunpack.c.l.b16 %v1233
    %v1622 = vunpack.c.l.b16 %v1234
    %v1623 = vunpack.c.l.b16 %v1235
    %v1624 = vunpack.c.l.b16 %v1236
    %v1625 = vunpack.c.l.b16 %v1237
    %v1626 = vunpack.c.l.b16 %v1238
    %v1627 = vunpack.c.l.b16 %v1239
    %v1628 = vunpack.c.l.b16 %v1240
    %v1629 = vunpack.c.l.b16 %v1241
    %v1630 = vunpack.c.l.b16 %v1242
    %v1631 = vunpack.c.l.b16 %v1243
    %v1632 = vunpack.c.l.b16 %v1244
    %v1633 = vunpack.c.l.b16 %v1245
    %v1634 = vunpack.c.l.b16 %v1246
    %v1635 = vunpack.c.l.b16 %v1247
    %v1636 = vunpack.c.l.b16 %v1248
    %v1637 = vunpack.c.l.b16 %v1249
    %v1638 = vunpack.c.l.b16 %v1250
    %v1639 = vunpack.c.l.b16 %v1251
    %v1640 = vunpack.c.l.b16 %v1252
    %v1641 = vunpack.c.l.b16 %v1253
    %v1642 = vunpack.c.l.b16 %v1254
    %v1643 = vunpack.c.l.b16 %v1255
    %v1644 = vunpack.c.l.b16 %v1256
    %v1645 = vunpack.c.l.b16 %v1257
    %v1646 = vunpack.c.l.b16 %v1258
    %v1647 = vunpack.c.l.b16 %v1259
    %v1648 = vunpack.c.l.b16 %v1260
    %v1649 = vunpack.c.l.b16 %v1261
    %v1650 = vunpack.c.l.b16 %v1262
    %v1651 = vunpack.c.l.b16 %v1263
    %v1652 = vunpack.c.l.b16 %v1264
    %v1653 = vunpack.c.l.b16 %v1265
    %v1654 = vunpack.c.l.b16 %v1266
    %v1655 = vunpack.c.l.b16 %v1267
    %v1656 = vunpack.c.l.b16 %v1268
    %v1657 = vunpack.c.l.b16 %v1269
    %v1658 = vunpack.c.l.b16 %v1270
    %v1659 = vunpack.c.l.b16 %v1271
    %v1660 = vunpack.c.l.b16 %v1272
    %v1661 = vunpack.c.l.b16 %v1273
    %v1662 = vunpack.c.l.b16 %v1274
    %v1663 = vunpack.c.l.b16 %v1275
    %v1664 = vunpack.c.l.b16 %v1276
    %v1665 = vunpack.c.l.b16 %v1277
    %v1666 = vunpack.c.l.b16 %v1278
    %v1667 = vunpack.c.l.b16 %v1279
    %v1668 = vunpack.c.l.b16 %v1280
    %v1669 = vunpack.c.l.b16 %v1281
    %v1670 = vunpack.c.l.b16 %v1282
    %v1671 = vunpack.c.l.b16 %v1283
    %v1672 = vunpack.c.l.b16 %v1284
    %v1673 = vunpack.c.l.b16 %v1285
    %v1674 = vunpack.c.l.b16 %v1286
    %v1675 = vunpack.c.l.b16 %v1287
    %v1676 = vunpack.c.l.b16 %v1288
    %v1677 = vunpack.c.l.b16 %v1289
    %v1678 = vunpack.c.l.b16 %v1290
    %v1679 = vunpack.c.l.b16 %v1291
    %v1680 = vunpack.c.l.b16 %v1292
    %v1681 = vunpack.c.l.b16 %v1293
    %v1682 = vunpack.c.l.b16 %v1294
    %v1683 = vunpack.c.l.b16 %v1295
    %v1684 = vunpack.c.l.b16 %v1296
    %v1685 = vunpack.c.l.b16 %v1297
    %v1686 = vunpack.c.l.b16 %v1298
    %v1687 = vunpack.c.l.b16 %v1299
    %v1688 = vunpack.c.l.b16 %v1300
    %v1689 = vunpack.c.l.b16 %v1301
    %v1690 = vunpack.c.l.b16 %v1302
    %v1691 = vunpack.c.l.b16 %v1303
    %v1692 = vunpack.c.l.b16 %v1304
    %v1693 = vunpack.c.l.b16 %v1305
    %v1694 = vunpack.c.l.b16 %v1306
    %v1695 = vunpack.c.l.b16 %v1307
    %v1696 = vunpack.c.l.b16 %v1308
    %v1697 = vunpack.c.l.b16 %v1309
    %v1698 = vunpack.c.l.b16 %v1310
    %v1699 = vunpack.c.l.b16 %v1311
    %v1700 = vunpack.c.l.b16 %v1312
    %v1701 = vunpack.c.l.b16 %v1313
    %v1702 = vunpack.c.l.b16 %v1314
    %v1703 = vunpack.c.l.b16 %v1315
    %v1704 = vunpack.c.l.b16 %v1316
    %v1705 = vunpack.c.l.b16 %v1317
    %v1706 = vunpack.c.l.b16 %v1318
    %v1707 = vunpack.c.l.b16 %v1319
    %v1708 = vunpack.c.l.b16 %v1320
    %v1709 = vunpack.c.l.b16 %v1321
    %v1710 = vunpack.c.l.b16 %v1322
    %v1711 = vunpack.c.l.b16 %v1323
    %v1712 = vunpack.c.l.b16 %v1324
    %v1713 = vunpack.c.l.b16 %v1325
    %v1714 = vunpack.c.l.b16 %v1326
    %v1715 = vunpack.c.l.b16 %v1327
    %v1716 = vunpack.c.l.b16 %v1328
    %v1717 = vunpack.c.l.b16 %v1329
    %v1718 = vunpack.c.l.b16 %v1330
    %v1719 = vunpack.c.l.b16 %v1331
    %v1720 = vunpack.c.l.b16 %v1332
    %v1721 = vpack.c.b16 %v1530, %v1529
    %v1722 = vpack.c.b16 %v1532, %v1531
    %v1723 = vpack.c.b16 %v1534, %v1533
    %v1724 = vpack.c.b16 %v1536, %v1535
    %v1725 = vpack.c.b16 %v1538, %v1537
    %v1726 = vpack.c.b16 %v1540, %v1539
    %v1727 = vpack.c.b16 %v1542, %v1541
    %v1728 = vpack.c.b16 %v1544, %v1543
    %v1729 = vpack.c.b16 %v1546, %v1545
    %v1730 = vpack.c.b16 %v1548, %v1547
    %v1731 = vpack.c.b16 %v1550, %v1549
    %v1732 = vpack.c.b16 %v1552, %v1551
    %v1733 = vpack.c.b16 %v1554, %v1553
    %v1734 = vpack.c.b16 %v1556, %v1555
    %v1735 = vpack.c.b16 %v1558, %v1557
    %v1736 = vpack.c.b16 %v1560, %v1559
    %v1737 = vpack.c.b16 %v1562, %v1561
    %v1738 = vpack.c.b16 %v1564, %v1563
    %v1739 = vpack.c.b16 %v1566, %v1565
    %v1740 = vpack.c.b16 %v1568, %v1567
    %v1741 = vpack.c.b16 %v1570, %v1569
    %v1742 = vpack.c.b16 %v1572, %v1571
    %v1743 = vpack.c.b16 %v1574, %v1573
    %v1744 = vpack.c.b16 %v1576, %v1575
    %v1745 = vpack.c.b16 %v1578, %v1577
    %v1746 = vpack.c.b16 %v1580, %v1579
    %v1747 = vpack.c.b16 %v1582, %v1581
    %v1748 = vpack.c.b16 %v1584, %v1583
    %v1749 = vpack.c.b16 %v1586, %v1585
    %v1750 = vpack.c.b16 %v1588, %v1587
    %v1751 = vpack.c.b16 %v1590, %v1589
    %v1752 = vpack.c.b16 %v1592, %v1591
    %v1753 = vpack.c.b16 %v1594, %v1593
    %v1754 = vpack.c.b16 %v1596, %v1595
    %v1755 = vpack.c.b16 %v1598, %v1597
    %v1756 = vpack.c.b16 %v1600, %v1599
    %v1757 = vpack.c.b16 %v1602, %v1601
    %v1758 = vpack.c.b16 %v1604, %v1603
    %v1759 = vpack.c.b16 %v1606, %v1605
    %v1760 = vpack.c.b16 %v1608, %v1607
    %v1761 = vpack.c.b16 %v1610, %v1609
    %v1762 = vpack.c.b16 %v1612, %v1611
    %v1763 = vpack.c.b16 %v1614, %v1613
    %v1764 = vpack.c.b16 %v1616, %v1615
    %v1765 = vpack.c.b16 %v1618, %v1617
    %v1766 = vpack.c.b16 %v1620, %v1619
    %v1767 = vpack.c.b16 %v1622, %v1621
    %v1768 = vpack.c.b16 %v1624, %v1623
    %v1769 = vpack.c.b16 %v1626, %v1625
    %v1770 = vpack.c.b16 %v1628, %v1627
    %v1771 = vpack.c.b16 %v1630, %v1629
    %v1772 = vpack.c.b16 %v1632, %v1631
    %v1773 = vpack.c.b16 %v1634, %v1633
    %v1774 = vpack.c.b16 %v1636, %v1635
    %v1775 = vpack.c.b16 %v1638, %v1637
    %v1776 = vpack.c.b16 %v1640, %v1639
    %v1777 = vpack.c.b16 %v1642, %v1641
    %v1778 = vpack.c.b16 %v1644, %v1643
    %v1779 = vpack.c.b16 %v1646, %v1645
    %v1780 = vpack.c.b16 %v1648, %v1647
    %v1781 = vpack.c.b16 %v1650, %v1649
    %v1782 = vpack.c.b16 %v1652, %v1651
    %v1783 = vpack.c.b16 %v1654, %v1653
    %v1784 = vpack.c.b16 %v1656, %v1655
    %v1785 = vpack.c.b16 %v1658, %v1657
    %v1786 = vpack.c.b16 %v1660, %v1659
    %v1787 = vpack.c.b16 %v1662, %v1661
    %v1788 = vpack.c.b16 %v1664, %v1663
    %v1789 = vpack.c.b16 %v1666, %v1665
    %v1790 = vpack.c.b16 %v1668, %v1667
    %v1791 = vpack.c.b16 %v1670, %v1669
    %v1792 = vpack.c.b16 %v1672, %v1671
    %v1793 = vpack.c.b16 %v1674, %v1673
    %v1794 = vpack.c.b16 %v1676, %v1675
    %v1795 = vpack.c.b16 %v1678, %v1677
    %v1796 = vpack.c.b16 %v1680, %v1679
    %v1797 = vpack.c.b16 %v1682, %v1681
    %v1798 = vpack.c.b16 %v1684, %v1683
    %v1799 = vpack.c.b16 %v1686, %v1685
    %v1800 = vpack.c.b16 %v1688, %v1687
    %v1801 = vpack.c.b16 %v1690, %v1689
    %v1802 = vpack.c.b16 %v1692, %v1691
    %v1803 = vpack.c.b16 %v1694, %v1693
    %v1804 = vpack.c.b16 %v1696, %v1695
    %v1805 = vpack.c.b16 %v1698, %v1697
    %v1806 = vpack.c.b16 %v1700, %v1699
    %v1807 = vpack.c.b16 %v1702, %v1701
    %v1808 = vpack.c.b16 %v1704, %v1703
    %v1809 = vpack.c.b16 %v1706, %v1705
    %v1810 = vpack.c.b16 %v1708, %v1707
    %v1811 = vpack.c.b16 %v1710, %v1709
    %v1812 = vpack.c.b16 %v1712, %v1711
    %v1813 = vpack.c.b16 %v1714, %v1713
    %v1814 = vpack.c.b16 %v1716, %v1715
    %v1815 = vpack.c.b16 %v1718, %v1717
    %v1816 = vpack.c.b16 %v1720, %v1719
    %1913 = vmatpush.bf16.msra.mxu0 %v1728
    %1914 = vmatpush.bf16.msra.mxu0 %v1727
    %1915 = vmatpush.bf16.msra.mxu0 %v1726
    %1916 = vmatpush.bf16.msra.mxu0 %v1725
    %1917 = vmatpush.bf16.msra.mxu0 %v1724
    %1918 = vmatpush.bf16.msra.mxu0 %v1723
    %1919 = vmatpush.bf16.msra.mxu0 %v1722
    %1920 = vmatpush.bf16.msra.mxu0 %v1721
    %1921 = vmatmul.bf16.gmra.mxu0 %v1129
    %v1922 = vpop.f32.mrf.mxu0
    %v1923 = vadd.f32 %v1335, %v1922
    %v1924 = vpop.f32.mrf.mxu0
    %1925 = vdwg.mxu0
    %1926 = vmatpush.bf16.msra.mxu0 %v1736
    %1927 = vmatpush.bf16.msra.mxu0 %v1735
    %1928 = vmatpush.bf16.msra.mxu0 %v1734
    %1929 = vmatpush.bf16.msra.mxu0 %v1733
    %1930 = vmatpush.bf16.msra.mxu0 %v1732
    %1931 = vmatpush.bf16.msra.mxu0 %v1731
    %1932 = vmatpush.bf16.msra.mxu0 %v1730
    %1933 = vmatpush.bf16.msra.mxu0 %v1729
    %1934 = vmatmul.bf16.gmra.mxu0 %v1130
    %v1935 = vpop.f32.mrf.mxu0
    %v1936 = vadd.f32 %v1923, %v1935
    %v1937 = vpop.f32.mrf.mxu0
    %1938 = vdwg.mxu0
    %1939 = vmatpush.bf16.msra.mxu0 %v1744
    %1940 = vmatpush.bf16.msra.mxu0 %v1743
    %1941 = vmatpush.bf16.msra.mxu0 %v1742
    %1942 = vmatpush.bf16.msra.mxu0 %v1741
    %1943 = vmatpush.bf16.msra.mxu0 %v1740
    %1944 = vmatpush.bf16.msra.mxu0 %v1739
    %1945 = vmatpush.bf16.msra.mxu0 %v1738
    %1946 = vmatpush.bf16.msra.mxu0 %v1737
    %1947 = vmatmul.bf16.gmra.mxu0 %v1131
    %v1948 = vpop.f32.mrf.mxu0
    %v1949 = vadd.f32 %v1936, %v1948
    %v1950 = vpop.f32.mrf.mxu0
    %1951 = vdwg.mxu0
    %1952 = vmatpush.bf16.msra.mxu0 %v1752
    %1953 = vmatpush.bf16.msra.mxu0 %v1751
    %1954 = vmatpush.bf16.msra.mxu0 %v1750
    %1955 = vmatpush.bf16.msra.mxu0 %v1749
    %1956 = vmatpush.bf16.msra.mxu0 %v1748
    %1957 = vmatpush.bf16.msra.mxu0 %v1747
    %1958 = vmatpush.bf16.msra.mxu0 %v1746
    %1959 = vmatpush.bf16.msra.mxu0 %v1745
    %1960 = vmatmul.bf16.gmra.mxu0 %v1132
    %v1961 = vpop.f32.mrf.mxu0
    %v1962 = vadd.f32 %v1949, %v1961
    %v1963 = vpop.f32.mrf.mxu0
    %1964 = vdwg.mxu0
    %1965 = vmatpush.bf16.msra.mxu0 %v1760
    %1966 = vmatpush.bf16.msra.mxu0 %v1759
    %1967 = vmatpush.bf16.msra.mxu0 %v1758
    %1968 = vmatpush.bf16.msra.mxu0 %v1757
    %1969 = vmatpush.bf16.msra.mxu0 %v1756
    %1970 = vmatpush.bf16.msra.mxu0 %v1755
    %1971 = vmatpush.bf16.msra.mxu0 %v1754
    %1972 = vmatpush.bf16.msra.mxu0 %v1753
    %1973 = vmatmul.bf16.gmra.mxu0 %v1133
    %v1974 = vpop.f32.mrf.mxu0
    %v1975 = vadd.f32 %v1962, %v1974
    %v1976 = vpop.f32.mrf.mxu0
    %1977 = vdwg.mxu0
    %1978 = vmatpush.bf16.msra.mxu0 %v1768
    %1979 = vmatpush.bf16.msra.mxu0 %v1767
    %1980 = vmatpush.bf16.msra.mxu0 %v1766
    %1981 = vmatpush.bf16.msra.mxu0 %v1765
    %1982 = vmatpush.bf16.msra.mxu0 %v1764
    %1983 = vmatpush.bf16.msra.mxu0 %v1763
    %1984 = vmatpush.bf16.msra.mxu0 %v1762
    %1985 = vmatpush.bf16.msra.mxu0 %v1761
    %1986 = vmatmul.bf16.gmra.mxu0 %v1134
    %v1987 = vpop.f32.mrf.mxu0
    %v1988 = vadd.f32 %v1975, %v1987
    %v1989 = vpop.f32.mrf.mxu0
    %1990 = vdwg.mxu0
    %1991 = vmatpush.bf16.msra.mxu0 %v1776
    %1992 = vmatpush.bf16.msra.mxu0 %v1775
    %1993 = vmatpush.bf16.msra.mxu0 %v1774
    %1994 = vmatpush.bf16.msra.mxu0 %v1773
    %1995 = vmatpush.bf16.msra.mxu0 %v1772
    %1996 = vmatpush.bf16.msra.mxu0 %v1771
    %1997 = vmatpush.bf16.msra.mxu0 %v1770
    %1998 = vmatpush.bf16.msra.mxu0 %v1769
    %1999 = vmatmul.bf16.gmra.mxu0 %v1135
    %v2000 = vpop.f32.mrf.mxu0
    %v2001 = vadd.f32 %v1988, %v2000
    %v2002 = vpop.f32.mrf.mxu0
    %2003 = vdwg.mxu0
    %2004 = vmatpush.bf16.msra.mxu0 %v1784
    %2005 = vmatpush.bf16.msra.mxu0 %v1783
    %2006 = vmatpush.bf16.msra.mxu0 %v1782
    %2007 = vmatpush.bf16.msra.mxu0 %v1781
    %2008 = vmatpush.bf16.msra.mxu0 %v1780
    %2009 = vmatpush.bf16.msra.mxu0 %v1779
    %2010 = vmatpush.bf16.msra.mxu0 %v1778
    %2011 = vmatpush.bf16.msra.mxu0 %v1777
    %2012 = vmatmul.bf16.gmra.mxu0 %v1136
    %v2013 = vpop.f32.mrf.mxu0
    %v2014 = vadd.f32 %v2001, %v2013
    %v2015 = vpop.f32.mrf.mxu0
    %2016 = vdwg.mxu0
    %2017 = vmatpush.bf16.msra.mxu0 %v1792
    %2018 = vmatpush.bf16.msra.mxu0 %v1791
    %2019 = vmatpush.bf16.msra.mxu0 %v1790
    %2020 = vmatpush.bf16.msra.mxu0 %v1789
    %2021 = vmatpush.bf16.msra.mxu0 %v1788
    %2022 = vmatpush.bf16.msra.mxu0 %v1787
    %2023 = vmatpush.bf16.msra.mxu0 %v1786
    %2024 = vmatpush.bf16.msra.mxu0 %v1785
    %2025 = vmatmul.bf16.gmra.mxu0 %v1137
    %v2026 = vpop.f32.mrf.mxu0
    %v2027 = vadd.f32 %v2014, %v2026
    %v2028 = vpop.f32.mrf.mxu0
    %2029 = vdwg.mxu0
    %2030 = vmatpush.bf16.msra.mxu0 %v1800
    %2031 = vmatpush.bf16.msra.mxu0 %v1799
    %2032 = vmatpush.bf16.msra.mxu0 %v1798
    %2033 = vmatpush.bf16.msra.mxu0 %v1797
    %2034 = vmatpush.bf16.msra.mxu0 %v1796
    %2035 = vmatpush.bf16.msra.mxu0 %v1795
    %2036 = vmatpush.bf16.msra.mxu0 %v1794
    %2037 = vmatpush.bf16.msra.mxu0 %v1793
    %2038 = vmatmul.bf16.gmra.mxu0 %v1138
    %v2039 = vpop.f32.mrf.mxu0
    %v2040 = vadd.f32 %v2027, %v2039
    %v2041 = vpop.f32.mrf.mxu0
    %2042 = vdwg.mxu0
    %2043 = vmatpush.bf16.msra.mxu0 %v1808
    %2044 = vmatpush.bf16.msra.mxu0 %v1807
    %2045 = vmatpush.bf16.msra.mxu0 %v1806
    %2046 = vmatpush.bf16.msra.mxu0 %v1805
    %2047 = vmatpush.bf16.msra.mxu0 %v1804
    %2048 = vmatpush.bf16.msra.mxu0 %v1803
    %2049 = vmatpush.bf16.msra.mxu0 %v1802
    %2050 = vmatpush.bf16.msra.mxu0 %v1801
    %2051 = vmatmul.bf16.gmra.mxu0 %v1139
    %v2052 = vpop.f32.mrf.mxu0
    %v2053 = vadd.f32 %v2040, %v2052
    %v2054 = vpop.f32.mrf.mxu0
    %2055 = vdwg.mxu0
    %2056 = vmatpush.bf16.msra.mxu0 %v1816
    %2057 = vmatpush.bf16.msra.mxu0 %v1815
    %2058 = vmatpush.bf16.msra.mxu0 %v1814
    %2059 = vmatpush.bf16.msra.mxu0 %v1813
    %2060 = vmatpush.bf16.msra.mxu0 %v1812
    %2061 = vmatpush.bf16.msra.mxu0 %v1811
    %2062 = vmatpush.bf16.msra.mxu0 %v1810
    %2063 = vmatpush.bf16.msra.mxu0 %v1809
    %2064 = vmatmul.bf16.gmra.mxu0 %v1140
    %v2065 = vpop.f32.mrf.mxu0
    %v2066 = vadd.f32 %v2053, %v2065
    %v2067 = vpop.f32.mrf.mxu0
    %2068 = vdwg.mxu0
    %v2069 = vld [vmem:[%s11] sm:$0xf]
    %v2070 = vld [vmem:[#allocation12] sm:$0xff]
    %v2071 = vld [vmem:[#allocation13] sm:$0x3]
    %v2073 = vperm.slane %v2071, 0
    %v2074 = vperm.slane %v2071, 1
    %v2078 = vunpack.c.l.b16 %v2070
    %v2079 = vunpack.c.h.b16 %v2070
    %v2080 = vpack.c.b16 %v2078, %v2078
    %v2081 = vpack.c.b16 %v2079, %v2079
    %v2083 = vsel %vm381, %v2069, 0
    %v2086 = vsel %vm385, %v2080, 0
    %v2089 = vsel %vm385, %v2081, 0
    %2091 = vmatpush.bf16.msra.mxu0 0
    %2092 = vmatpush.bf16.msra.mxu0 0
    %2093 = vmatpush.bf16.msra.mxu0 0
    %2094 = vmatpush.bf16.msra.mxu0 0
    %2095 = vmatpush.bf16.msra.mxu0 0
    %2096 = vmatpush.bf16.msra.mxu0 0
    %2097 = vmatpush.bf16.msra.mxu0 0
    %2098 = vmatpush.bf16.msra.mxu0 %v2086
    %2099 = vmatmul.bf16.gmra.mxu0 %v2083
    %v2100 = vpop.f32.mrf.mxu0
    %v2101 = vadd.f32 %v2073, %v2100
    %v2102 = vpop.f32.mrf.mxu0
    %2103 = vdwg.mxu0
    %2104 = vmatpush.bf16.msra.mxu0 0
    %2105 = vmatpush.bf16.msra.mxu0 0
    %2106 = vmatpush.bf16.msra.mxu0 0
    %2107 = vmatpush.bf16.msra.mxu0 0
    %2108 = vmatpush.bf16.msra.mxu0 0
    %2109 = vmatpush.bf16.msra.mxu0 0
    %2110 = vmatpush.bf16.msra.mxu0 0
    %2111 = vmatpush.bf16.msra.mxu0 %v2089
    %2112 = vmatmul.bf16.gmra.mxu0 %v2083
    %v2113 = vpop.f32.mrf.mxu0
    %v2114 = vadd.f32 %v2074, %v2113
    %v2115 = vpop.f32.mrf.mxu0
    %2116 = vdwg.mxu0
    %vm2117 = vcmask 261120
    %v2118 = vsel %vm2117, %v2066, 0.0
    %2119 = vadd.xlane.f32.xlu0 %v2118
    %v2120 = vpop.xlane.xlu0 %2119
    %v2121 = vadd.f32 %v2101, %v2114
    %2122 = vadd.xlane.f32.xlu0 %v2121
    %v2123 = vpop.xlane.xlu0 %2122
    %v2124 = vadd.f32 %v2120, %v2123
    %v2125 = vrcp.pop 288.0
    %v2126 = vmul.f32 288.0, %v2125
    %v2127 = vsub.f32 1.0, %v2126
    %v2128 = vmul.f32 %v2125, %v2127
    %v2129 = vadd.f32 %v2125, %v2128
    %vm2130 = vweird.f32 %v2125
    %v2131 = vsel %vm2130, %v2125, %v2129
    %v2132 = vmul.f32 %v2124, %v2131
    %v2133 = vsub.f32 %v2066, %v2132
    %v2134 = vmul.f32 %v2133, %v2133
    %v2135 = vsel %vm2117, %v2134, 0.0
    %2136 = vadd.xlane.f32.xlu0 %v2135
    %v2137 = vpop.xlane.xlu0 %2136
    %v2138 = vsub.f32 %v2101, %v2132
    %v2139 = vsub.f32 %v2114, %v2132
    %v2140 = vmul.f32 %v2138, %v2138
    %v2141 = vmul.f32 %v2139, %v2139
    %v2142 = vadd.f32 %v2140, %v2141
    %2143 = vadd.xlane.f32.xlu0 %v2142
    %v2144 = vpop.xlane.xlu0 %2143
    %v2145 = vadd.f32 %v2137, %v2144
    %v2146 = vmul.f32 %v2145, %v2131
    %v2147 = vadd.f32 %v2146, 1e-05
    %v2148 = vrsqrt.pop %v2147
    %v2149 = vmul.f32 %v2148, %v2147
    %v2150 = vmul.f32 %v2149, %v2148
    %v2151 = vmul.f32 0.5, %v2150
    %v2152 = vsub.f32 1.5, %v2151
    %v2153 = vmul.f32 %v2148, %v2152
    %vm2154 = vweird.f32 %v2147
    %vm2155 = vweird.f32 %v2148
    %vm2156 = vmor %vm2154, %vm2155
    %v2157 = vsel %vm2156, %v2148, %v2153
    %v2158 = vmul.f32 %v2133, %v2157
    %v2159 = vld [vmem:[#allocation15] sm:$0x1]
    %v2161 = vperm.slane %v2159, 0
    %v2163 = vmul.f32 %v2158, %v2161
    %v2164 = vld [vmem:[#allocation16] sm:$0x1]
    %v2166 = vperm.slane %v2164, 0
    %v2168 = vadd.f32 %v2163, %v2166
    %v2169 = vxor.u32 %v2168, 2147483648
    %v2170 = vmul.f32 %v2169, 1.442695
    %v2171 = vpow.pop %v2170
    %v2172 = vadd.f32 %v2171, 1.0
    %v2173 = vrcp.pop %v2172
    %v2174 = vmul.f32 %v2172, %v2173
    %v2175 = vsub.f32 1.0, %v2174
    %v2176 = vmul.f32 %v2173, %v2175
    %v2177 = vadd.f32 %v2173, %v2176
    %vm2178 = vweird.f32 %v2172
    %vm2179 = vweird.f32 %v2173
    %vm2180 = vmor %vm2178, %vm2179
    %v2181 = vsel %vm2180, %v2173, %v2177
    %v2182 = vand.u32 2147483647, %v2172
    %vm2183 = vcmp.eq.f32.partialorder %v2182, 8.507059e+37
    %v2184 = vand.u32 %v2172, 2147483648
    %v2185 = vor.u32 1.1754944e-38, %v2184
    %v2186 = vsel %vm2183, %v2185, %v2181
    %v2187 = vmul.f32 1.0, %v2186
    %v2188 = vmul.f32 %v2168, %v2187
    %v2189 = vmul.f32 %v2138, %v2157
    %v2190 = vmul.f32 %v2139, %v2157
    %v2191 = vld [vmem:[#allocation18] sm:$0x3]
    %v2193 = vperm.slane %v2191, 0
    %v2194 = vperm.slane %v2191, 1
    %v2197 = vmul.f32 %v2189, %v2193
    %v2198 = vmul.f32 %v2190, %v2194
    %v2199 = vld [vmem:[#allocation19] sm:$0x3]
    %v2201 = vperm.slane %v2199, 0
    %v2202 = vperm.slane %v2199, 1
    %v2205 = vadd.f32 %v2197, %v2201
    %v2206 = vadd.f32 %v2198, %v2202
    %v2207 = vxor.u32 %v2205, 2147483648
    %v2208 = vxor.u32 %v2206, 2147483648
    %v2209 = vmul.f32 %v2207, 1.442695
    %v2210 = vpow.pop %v2209
    %v2211 = vmul.f32 %v2208, 1.442695
    %v2212 = vpow.pop %v2211
    %v2213 = vadd.f32 %v2210, 1.0
    %v2214 = vadd.f32 %v2212, 1.0
    %v2215 = vrcp.pop %v2213
    %v2216 = vmul.f32 %v2213, %v2215
    %v2217 = vsub.f32 1.0, %v2216
    %v2218 = vmul.f32 %v2215, %v2217
    %v2219 = vadd.f32 %v2215, %v2218
    %vm2220 = vweird.f32 %v2213
    %vm2221 = vweird.f32 %v2215
    %vm2222 = vmor %vm2220, %vm2221
    %v2223 = vsel %vm2222, %v2215, %v2219
    %v2224 = vand.u32 2147483647, %v2213
    %vm2225 = vcmp.eq.f32.partialorder %v2224, 8.507059e+37
    %v2226 = vand.u32 %v2213, 2147483648
    %v2227 = vor.u32 1.1754944e-38, %v2226
    %v2228 = vsel %vm2225, %v2227, %v2223
    %v2229 = vmul.f32 1.0, %v2228
    %v2230 = vrcp.pop %v2214
    %v2231 = vmul.f32 %v2214, %v2230
    %v2232 = vsub.f32 1.0, %v2231
    %v2233 = vmul.f32 %v2230, %v2232
    %v2234 = vadd.f32 %v2230, %v2233
    %vm2235 = vweird.f32 %v2214
    %vm2236 = vweird.f32 %v2230
    %vm2237 = vmor %vm2235, %vm2236
    %v2238 = vsel %vm2237, %v2230, %v2234
    %v2239 = vand.u32 2147483647, %v2214
    %vm2240 = vcmp.eq.f32.partialorder %v2239, 8.507059e+37
    %v2241 = vand.u32 %v2214, 2147483648
    %v2242 = vor.u32 1.1754944e-38, %v2241
    %v2243 = vsel %vm2240, %v2242, %v2238
    %v2244 = vmul.f32 1.0, %v2243
    %v2245 = vmul.f32 %v2205, %v2229
    %v2246 = vmul.f32 %v2206, %v2244
    %v2247 = vpack.c.bf16 %v2188, %v2188
    %v2248 = vld [vmem:[#allocation21] sm:$0xff]
    %v2249 = vld [vmem:[#allocation21 + $0x8] sm:$0xff]
    %v2250 = vld [vmem:[#allocation21 + $0x10] sm:$0xff]
    %v2251 = vld [vmem:[#allocation21 + $0x18] sm:$0xff]
    %v2252 = vld [vmem:[#allocation21 + $0x20] sm:$0xff]
    %v2253 = vld [vmem:[#allocation21 + $0x28] sm:$0xff]
    %v2254 = vld [vmem:[#allocation21 + $0x30] sm:$0xff]
    %v2255 = vld [vmem:[#allocation21 + $0x38] sm:$0xff]
    %v2256 = vpack.c.bf16 %v2245, %v2245
    %v2257 = vpack.c.bf16 %v2246, %v2246
    %v2258 = vld [vmem:[#allocation22] sm:$0xff]
    %v2259 = vld [vmem:[#allocation22 + $0x8] sm:$0xff]
    %v2260 = vld [vmem:[#allocation22 + $0x10] sm:$0xff]
    %v2261 = vld [vmem:[#allocation22 + $0x18] sm:$0xff]
    %v2262 = vld [vmem:[#allocation22 + $0x20] sm:$0xff]
    %v2263 = vld [vmem:[#allocation22 + $0x28] sm:$0xff]
    %v2264 = vld [vmem:[#allocation22 + $0x30] sm:$0xff]
    %v2265 = vld [vmem:[#allocation22 + $0x38] sm:$0xff]
    %v2266 = vld [vmem:[#allocation22 + $0x40] sm:$0xff]
    %v2267 = vld [vmem:[#allocation22 + $0x48] sm:$0xff]
    %v2268 = vld [vmem:[#allocation22 + $0x50] sm:$0xff]
    %v2269 = vld [vmem:[#allocation22 + $0x58] sm:$0xff]
    %v2270 = vld [vmem:[#allocation22 + $0x60] sm:$0xff]
    %v2271 = vld [vmem:[#allocation22 + $0x68] sm:$0xff]
    %v2272 = vld [vmem:[#allocation22 + $0x70] sm:$0xff]
    %v2273 = vld [vmem:[#allocation22 + $0x78] sm:$0xff]
    %v2274 = vld [vmem:[#allocation22 + $0x80] sm:$0xff]
    %v2275 = vld [vmem:[#allocation22 + $0x88] sm:$0xff]
    %v2276 = vld [vmem:[#allocation22 + $0x90] sm:$0xff]
    %v2277 = vld [vmem:[#allocation22 + $0x98] sm:$0xff]
    %v2278 = vld [vmem:[#allocation22 + $0xa0] sm:$0xff]
    %v2279 = vld [vmem:[#allocation22 + $0xa8] sm:$0xff]
    %v2280 = vld [vmem:[#allocation22 + $0xb0] sm:$0xff]
    %v2281 = vld [vmem:[#allocation22 + $0xb8] sm:$0xff]
    %v2282 = vld [vmem:[#allocation22 + $0xc0] sm:$0xff]
    %v2283 = vld [vmem:[#allocation22 + $0xc8] sm:$0xff]
    %v2284 = vld [vmem:[#allocation22 + $0xd0] sm:$0xff]
    %v2285 = vld [vmem:[#allocation22 + $0xd8] sm:$0xff]
    %v2286 = vld [vmem:[#allocation22 + $0xe0] sm:$0xff]
    %v2287 = vld [vmem:[#allocation22 + $0xe8] sm:$0xff]
    %v2288 = vld [vmem:[#allocation22 + $0xf0] sm:$0xff]
    %v2289 = vld [vmem:[#allocation22 + $0xf8] sm:$0xff]
    %v2290 = vld [vmem:[#allocation22 + $0x100] sm:$0xff]
    %v2291 = vld [vmem:[#allocation22 + $0x108] sm:$0xff]
    %v2292 = vld [vmem:[#allocation22 + $0x110] sm:$0xff]
    %v2293 = vld [vmem:[#allocation22 + $0x118] sm:$0xff]
    %v2294 = vld [vmem:[#allocation22 + $0x120] sm:$0xff]
    %v2295 = vld [vmem:[#allocation22 + $0x128] sm:$0xff]
    %v2296 = vld [vmem:[#allocation22 + $0x130] sm:$0xff]
    %v2297 = vld [vmem:[#allocation22 + $0x138] sm:$0xff]
    %v2298 = vld [vmem:[#allocation22 + $0x140] sm:$0xff]
    %v2299 = vld [vmem:[#allocation22 + $0x148] sm:$0xff]
    %v2300 = vld [vmem:[#allocation22 + $0x150] sm:$0xff]
    %v2301 = vld [vmem:[#allocation22 + $0x158] sm:$0xff]
    %v2302 = vld [vmem:[#allocation22 + $0x160] sm:$0xff]
    %v2303 = vld [vmem:[#allocation22 + $0x168] sm:$0xff]
    %v2304 = vld [vmem:[#allocation22 + $0x170] sm:$0xff]
    %v2305 = vld [vmem:[#allocation22 + $0x178] sm:$0xff]
    %v2306 = vld [vmem:[#allocation22 + $0x180] sm:$0xff]
    %v2307 = vld [vmem:[#allocation22 + $0x188] sm:$0xff]
    %v2308 = vld [vmem:[#allocation22 + $0x190] sm:$0xff]
    %v2309 = vld [vmem:[#allocation22 + $0x198] sm:$0xff]
    %v2310 = vld [vmem:[#allocation22 + $0x1a0] sm:$0xff]
    %v2311 = vld [vmem:[#allocation22 + $0x1a8] sm:$0xff]
    %v2312 = vld [vmem:[#allocation22 + $0x1b0] sm:$0xff]
    %v2313 = vld [vmem:[#allocation22 + $0x1b8] sm:$0xff]
    %v2314 = vld [vmem:[#allocation22 + $0x1c0] sm:$0xff]
    %v2315 = vld [vmem:[#allocation22 + $0x1c8] sm:$0xff]
    %v2316 = vld [vmem:[#allocation22 + $0x1d0] sm:$0xff]
    %v2317 = vld [vmem:[#allocation22 + $0x1d8] sm:$0xff]
    %v2318 = vld [vmem:[#allocation22 + $0x1e0] sm:$0xff]
    %v2319 = vld [vmem:[#allocation22 + $0x1e8] sm:$0xff]
    %v2320 = vld [vmem:[#allocation22 + $0x1f0] sm:$0xff]
    %v2321 = vld [vmem:[#allocation22 + $0x1f8] sm:$0xff]
    %v2386 = vunpack.c.l.b16 %v2258
    %v2387 = vunpack.c.h.b16 %v2258
    %v2388 = vunpack.c.l.b16 %v2259
    %v2389 = vunpack.c.h.b16 %v2259
    %v2390 = vunpack.c.l.b16 %v2260
    %v2391 = vunpack.c.h.b16 %v2260
    %v2392 = vunpack.c.l.b16 %v2261
    %v2393 = vunpack.c.h.b16 %v2261
    %v2394 = vunpack.c.l.b16 %v2262
    %v2395 = vunpack.c.h.b16 %v2262
    %v2396 = vunpack.c.l.b16 %v2263
    %v2397 = vunpack.c.h.b16 %v2263
    %v2398 = vunpack.c.l.b16 %v2264
    %v2399 = vunpack.c.h.b16 %v2264
    %v2400 = vunpack.c.l.b16 %v2265
    %v2401 = vunpack.c.h.b16 %v2265
    %v2402 = vunpack.c.l.b16 %v2266
    %v2403 = vunpack.c.h.b16 %v2266
    %v2404 = vunpack.c.l.b16 %v2267
    %v2405 = vunpack.c.h.b16 %v2267
    %v2406 = vunpack.c.l.b16 %v2268
    %v2407 = vunpack.c.h.b16 %v2268
    %v2408 = vunpack.c.l.b16 %v2269
    %v2409 = vunpack.c.h.b16 %v2269
    %v2410 = vunpack.c.l.b16 %v2270
    %v2411 = vunpack.c.h.b16 %v2270
    %v2412 = vunpack.c.l.b16 %v2271
    %v2413 = vunpack.c.h.b16 %v2271
    %v2414 = vunpack.c.l.b16 %v2272
    %v2415 = vunpack.c.h.b16 %v2272
    %v2416 = vunpack.c.l.b16 %v2273
    %v2417 = vunpack.c.h.b16 %v2273
    %v2418 = vunpack.c.l.b16 %v2274
    %v2419 = vunpack.c.h.b16 %v2274
    %v2420 = vunpack.c.l.b16 %v2275
    %v2421 = vunpack.c.h.b16 %v2275
    %v2422 = vunpack.c.l.b16 %v2276
    %v2423 = vunpack.c.h.b16 %v2276
    %v2424 = vunpack.c.l.b16 %v2277
    %v2425 = vunpack.c.h.b16 %v2277
    %v2426 = vunpack.c.l.b16 %v2278
    %v2427 = vunpack.c.h.b16 %v2278
    %v2428 = vunpack.c.l.b16 %v2279
    %v2429 = vunpack.c.h.b16 %v2279
    %v2430 = vunpack.c.l.b16 %v2280
    %v2431 = vunpack.c.h.b16 %v2280
    %v2432 = vunpack.c.l.b16 %v2281
    %v2433 = vunpack.c.h.b16 %v2281
    %v2434 = vunpack.c.l.b16 %v2282
    %v2435 = vunpack.c.h.b16 %v2282
    %v2436 = vunpack.c.l.b16 %v2283
    %v2437 = vunpack.c.h.b16 %v2283
    %v2438 = vunpack.c.l.b16 %v2284
    %v2439 = vunpack.c.h.b16 %v2284
    %v2440 = vunpack.c.l.b16 %v2285
    %v2441 = vunpack.c.h.b16 %v2285
    %v2442 = vunpack.c.l.b16 %v2286
    %v2443 = vunpack.c.h.b16 %v2286
    %v2444 = vunpack.c.l.b16 %v2287
    %v2445 = vunpack.c.h.b16 %v2287
    %v2446 = vunpack.c.l.b16 %v2288
    %v2447 = vunpack.c.h.b16 %v2288
    %v2448 = vunpack.c.l.b16 %v2289
    %v2449 = vunpack.c.h.b16 %v2289
    %v2450 = vunpack.c.l.b16 %v2290
    %v2451 = vunpack.c.h.b16 %v2290
    %v2452 = vunpack.c.l.b16 %v2291
    %v2453 = vunpack.c.h.b16 %v2291
    %v2454 = vunpack.c.l.b16 %v2292
    %v2455 = vunpack.c.h.b16 %v2292
    %v2456 = vunpack.c.l.b16 %v2293
    %v2457 = vunpack.c.h.b16 %v2293
    %v2458 = vunpack.c.l.b16 %v2294
    %v2459 = vunpack.c.h.b16 %v2294
    %v2460 = vunpack.c.l.b16 %v2295
    %v2461 = vunpack.c.h.b16 %v2295
    %v2462 = vunpack.c.l.b16 %v2296
    %v2463 = vunpack.c.h.b16 %v2296
    %v2464 = vunpack.c.l.b16 %v2297
    %v2465 = vunpack.c.h.b16 %v2297
    %v2466 = vunpack.c.l.b16 %v2298
    %v2467 = vunpack.c.h.b16 %v2298
    %v2468 = vunpack.c.l.b16 %v2299
    %v2469 = vunpack.c.h.b16 %v2299
    %v2470 = vunpack.c.l.b16 %v2300
    %v2471 = vunpack.c.h.b16 %v2300
    %v2472 = vunpack.c.l.b16 %v2301
    %v2473 = vunpack.c.h.b16 %v2301
    %v2474 = vunpack.c.l.b16 %v2302
    %v2475 = vunpack.c.h.b16 %v2302
    %v2476 = vunpack.c.l.b16 %v2303
    %v2477 = vunpack.c.h.b16 %v2303
    %v2478 = vunpack.c.l.b16 %v2304
    %v2479 = vunpack.c.h.b16 %v2304
    %v2480 = vunpack.c.l.b16 %v2305
    %v2481 = vunpack.c.h.b16 %v2305
    %v2482 = vunpack.c.l.b16 %v2306
    %v2483 = vunpack.c.h.b16 %v2306
    %v2484 = vunpack.c.l.b16 %v2307
    %v2485 = vunpack.c.h.b16 %v2307
    %v2486 = vunpack.c.l.b16 %v2308
    %v2487 = vunpack.c.h.b16 %v2308
    %v2488 = vunpack.c.l.b16 %v2309
    %v2489 = vunpack.c.h.b16 %v2309
    %v2490 = vunpack.c.l.b16 %v2310
    %v2491 = vunpack.c.h.b16 %v2310
    %v2492 = vunpack.c.l.b16 %v2311
    %v2493 = vunpack.c.h.b16 %v2311
    %v2494 = vunpack.c.l.b16 %v2312
    %v2495 = vunpack.c.h.b16 %v2312
    %v2496 = vunpack.c.l.b16 %v2313
    %v2497 = vunpack.c.h.b16 %v2313
    %v2498 = vunpack.c.l.b16 %v2314
    %v2499 = vunpack.c.h.b16 %v2314
    %v2500 = vunpack.c.l.b16 %v2315
    %v2501 = vunpack.c.h.b16 %v2315
    %v2502 = vunpack.c.l.b16 %v2316
    %v2503 = vunpack.c.h.b16 %v2316
    %v2504 = vunpack.c.l.b16 %v2317
    %v2505 = vunpack.c.h.b16 %v2317
    %v2506 = vunpack.c.l.b16 %v2318
    %v2507 = vunpack.c.h.b16 %v2318
    %v2508 = vunpack.c.l.b16 %v2319
    %v2509 = vunpack.c.h.b16 %v2319
    %v2510 = vunpack.c.l.b16 %v2320
    %v2511 = vunpack.c.h.b16 %v2320
    %v2512 = vunpack.c.l.b16 %v2321
    %v2513 = vunpack.c.h.b16 %v2321
    %v2514 = vpack.c.b16 %v2390, %v2386
    %v2515 = vpack.c.b16 %v2391, %v2387
    %v2516 = vpack.c.b16 %v2392, %v2388
    %v2517 = vpack.c.b16 %v2393, %v2389
    %v2518 = vpack.c.b16 %v2398, %v2394
    %v2519 = vpack.c.b16 %v2399, %v2395
    %v2520 = vpack.c.b16 %v2400, %v2396
    %v2521 = vpack.c.b16 %v2401, %v2397
    %v2522 = vpack.c.b16 %v2406, %v2402
    %v2523 = vpack.c.b16 %v2407, %v2403
    %v2524 = vpack.c.b16 %v2408, %v2404
    %v2525 = vpack.c.b16 %v2409, %v2405
    %v2526 = vpack.c.b16 %v2414, %v2410
    %v2527 = vpack.c.b16 %v2415, %v2411
    %v2528 = vpack.c.b16 %v2416, %v2412
    %v2529 = vpack.c.b16 %v2417, %v2413
    %v2530 = vpack.c.b16 %v2422, %v2418
    %v2531 = vpack.c.b16 %v2423, %v2419
    %v2532 = vpack.c.b16 %v2424, %v2420
    %v2533 = vpack.c.b16 %v2425, %v2421
    %v2534 = vpack.c.b16 %v2430, %v2426
    %v2535 = vpack.c.b16 %v2431, %v2427
    %v2536 = vpack.c.b16 %v2432, %v2428
    %v2537 = vpack.c.b16 %v2433, %v2429
    %v2538 = vpack.c.b16 %v2438, %v2434
    %v2539 = vpack.c.b16 %v2439, %v2435
    %v2540 = vpack.c.b16 %v2440, %v2436
    %v2541 = vpack.c.b16 %v2441, %v2437
    %v2542 = vpack.c.b16 %v2446, %v2442
    %v2543 = vpack.c.b16 %v2447, %v2443
    %v2544 = vpack.c.b16 %v2448, %v2444
    %v2545 = vpack.c.b16 %v2449, %v2445
    %v2546 = vpack.c.b16 %v2454, %v2450
    %v2547 = vpack.c.b16 %v2455, %v2451
    %v2548 = vpack.c.b16 %v2456, %v2452
    %v2549 = vpack.c.b16 %v2457, %v2453
    %v2550 = vpack.c.b16 %v2462, %v2458
    %v2551 = vpack.c.b16 %v2463, %v2459
    %v2552 = vpack.c.b16 %v2464, %v2460
    %v2553 = vpack.c.b16 %v2465, %v2461
    %v2554 = vpack.c.b16 %v2470, %v2466
    %v2555 = vpack.c.b16 %v2471, %v2467
    %v2556 = vpack.c.b16 %v2472, %v2468
    %v2557 = vpack.c.b16 %v2473, %v2469
    %v2558 = vpack.c.b16 %v2478, %v2474
    %v2559 = vpack.c.b16 %v2479, %v2475
    %v2560 = vpack.c.b16 %v2480, %v2476
    %v2561 = vpack.c.b16 %v2481, %v2477
    %v2562 = vpack.c.b16 %v2486, %v2482
    %v2563 = vpack.c.b16 %v2487, %v2483
    %v2564 = vpack.c.b16 %v2488, %v2484
    %v2565 = vpack.c.b16 %v2489, %v2485
    %v2566 = vpack.c.b16 %v2494, %v2490
    %v2567 = vpack.c.b16 %v2495, %v2491
    %v2568 = vpack.c.b16 %v2496, %v2492
    %v2569 = vpack.c.b16 %v2497, %v2493
    %v2570 = vpack.c.b16 %v2502, %v2498
    %v2571 = vpack.c.b16 %v2503, %v2499
    %v2572 = vpack.c.b16 %v2504, %v2500
    %v2573 = vpack.c.b16 %v2505, %v2501
    %v2574 = vpack.c.b16 %v2510, %v2506
    %v2575 = vpack.c.b16 %v2511, %v2507
    %v2576 = vpack.c.b16 %v2512, %v2508
    %v2577 = vpack.c.b16 %v2513, %v2509
    %2642 = vmatpush.bf16.msra.mxu0 %v2542
    %2643 = vmatpush.bf16.msra.mxu0 %v2538
    %2644 = vmatpush.bf16.msra.mxu0 %v2534
    %2645 = vmatpush.bf16.msra.mxu0 %v2530
    %2646 = vmatpush.bf16.msra.mxu0 %v2526
    %2647 = vmatpush.bf16.msra.mxu0 %v2522
    %2648 = vmatpush.bf16.msra.mxu0 %v2518
    %2649 = vmatpush.bf16.msra.mxu0 %v2514
    %2650 = vmatmul.bf16.gmra.mxu0 %v2256
    %v2651 = vpop.f32.mrf.mxu0
    %v2652 = vadd.f32 0.0, %v2651
    %v2653 = vpop.f32.mrf.mxu0
    %2654 = vdwg.mxu0
    %2655 = vmatpush.bf16.msra.mxu0 %v2574
    %2656 = vmatpush.bf16.msra.mxu0 %v2570
    %2657 = vmatpush.bf16.msra.mxu0 %v2566
    %2658 = vmatpush.bf16.msra.mxu0 %v2562
    %2659 = vmatpush.bf16.msra.mxu0 %v2558
    %2660 = vmatpush.bf16.msra.mxu0 %v2554
    %2661 = vmatpush.bf16.msra.mxu0 %v2550
    %2662 = vmatpush.bf16.msra.mxu0 %v2546
    %2663 = vmatmul.bf16.gmra.mxu0 %v2257
    %v2664 = vpop.f32.mrf.mxu0
    %v2665 = vadd.f32 %v2652, %v2664
    %v2666 = vpop.f32.mrf.mxu0
    %2667 = vdwg.mxu0
    %2668 = vmatpush.bf16.msra.mxu0 %v2543
    %2669 = vmatpush.bf16.msra.mxu0 %v2539
    %2670 = vmatpush.bf16.msra.mxu0 %v2535
    %2671 = vmatpush.bf16.msra.mxu0 %v2531
    %2672 = vmatpush.bf16.msra.mxu0 %v2527
    %2673 = vmatpush.bf16.msra.mxu0 %v2523
    %2674 = vmatpush.bf16.msra.mxu0 %v2519
    %2675 = vmatpush.bf16.msra.mxu0 %v2515
    %2676 = vmatmul.bf16.gmra.mxu0 %v2256
    %v2677 = vpop.f32.mrf.mxu0
    %v2678 = vadd.f32 0.0, %v2677
    %v2679 = vpop.f32.mrf.mxu0
    %2680 = vdwg.mxu0
    %2681 = vmatpush.bf16.msra.mxu0 %v2575
    %2682 = vmatpush.bf16.msra.mxu0 %v2571
    %2683 = vmatpush.bf16.msra.mxu0 %v2567
    %2684 = vmatpush.bf16.msra.mxu0 %v2563
    %2685 = vmatpush.bf16.msra.mxu0 %v2559
    %2686 = vmatpush.bf16.msra.mxu0 %v2555
    %2687 = vmatpush.bf16.msra.mxu0 %v2551
    %2688 = vmatpush.bf16.msra.mxu0 %v2547
    %2689 = vmatmul.bf16.gmra.mxu0 %v2257
    %v2690 = vpop.f32.mrf.mxu0
    %v2691 = vadd.f32 %v2678, %v2690
    %v2692 = vpop.f32.mrf.mxu0
    %2693 = vdwg.mxu0
    %2694 = vmatpush.bf16.msra.mxu0 %v2544
    %2695 = vmatpush.bf16.msra.mxu0 %v2540
    %2696 = vmatpush.bf16.msra.mxu0 %v2536
    %2697 = vmatpush.bf16.msra.mxu0 %v2532
    %2698 = vmatpush.bf16.msra.mxu0 %v2528
    %2699 = vmatpush.bf16.msra.mxu0 %v2524
    %2700 = vmatpush.bf16.msra.mxu0 %v2520
    %2701 = vmatpush.bf16.msra.mxu0 %v2516
    %2702 = vmatmul.bf16.gmra.mxu0 %v2256
    %v2703 = vpop.f32.mrf.mxu0
    %v2704 = vadd.f32 0.0, %v2703
    %v2705 = vpop.f32.mrf.mxu0
    %2706 = vdwg.mxu0
    %2707 = vmatpush.bf16.msra.mxu0 %v2576
    %2708 = vmatpush.bf16.msra.mxu0 %v2572
    %2709 = vmatpush.bf16.msra.mxu0 %v2568
    %2710 = vmatpush.bf16.msra.mxu0 %v2564
    %2711 = vmatpush.bf16.msra.mxu0 %v2560
    %2712 = vmatpush.bf16.msra.mxu0 %v2556
    %2713 = vmatpush.bf16.msra.mxu0 %v2552
    %2714 = vmatpush.bf16.msra.mxu0 %v2548
    %2715 = vmatmul.bf16.gmra.mxu0 %v2257
    %v2716 = vpop.f32.mrf.mxu0
    %v2717 = vadd.f32 %v2704, %v2716
    %v2718 = vpop.f32.mrf.mxu0
    %2719 = vdwg.mxu0
    %2720 = vmatpush.bf16.msra.mxu0 %v2545
    %2721 = vmatpush.bf16.msra.mxu0 %v2541
    %2722 = vmatpush.bf16.msra.mxu0 %v2537
    %2723 = vmatpush.bf16.msra.mxu0 %v2533
    %2724 = vmatpush.bf16.msra.mxu0 %v2529
    %2725 = vmatpush.bf16.msra.mxu0 %v2525
    %2726 = vmatpush.bf16.msra.mxu0 %v2521
    %2727 = vmatpush.bf16.msra.mxu0 %v2517
    %2728 = vmatmul.bf16.gmra.mxu0 %v2256
    %v2729 = vpop.f32.mrf.mxu0
    %v2730 = vadd.f32 0.0, %v2729
    %v2731 = vpop.f32.mrf.mxu0
    %2732 = vdwg.mxu0
    %2733 = vmatpush.bf16.msra.mxu0 %v2577
    %2734 = vmatpush.bf16.msra.mxu0 %v2573
    %2735 = vmatpush.bf16.msra.mxu0 %v2569
    %2736 = vmatpush.bf16.msra.mxu0 %v2565
    %2737 = vmatpush.bf16.msra.mxu0 %v2561
    %2738 = vmatpush.bf16.msra.mxu0 %v2557
    %2739 = vmatpush.bf16.msra.mxu0 %v2553
    %2740 = vmatpush.bf16.msra.mxu0 %v2549
    %2741 = vmatmul.bf16.gmra.mxu0 %v2257
    %v2742 = vpop.f32.mrf.mxu0
    %v2743 = vadd.f32 %v2730, %v2742
    %v2744 = vpop.f32.mrf.mxu0
    %2745 = vdwg.mxu0
    %v2754 = vunpack.c.l.b16 %v2248
    %v2755 = vunpack.c.h.b16 %v2248
    %v2756 = vunpack.c.l.b16 %v2249
    %v2757 = vunpack.c.h.b16 %v2249
    %v2758 = vunpack.c.l.b16 %v2250
    %v2759 = vunpack.c.h.b16 %v2250
    %v2760 = vunpack.c.l.b16 %v2251
    %v2761 = vunpack.c.h.b16 %v2251
    %v2762 = vunpack.c.l.b16 %v2252
    %v2763 = vunpack.c.h.b16 %v2252
    %v2764 = vunpack.c.l.b16 %v2253
    %v2765 = vunpack.c.h.b16 %v2253
    %v2766 = vunpack.c.l.b16 %v2254
    %v2767 = vunpack.c.h.b16 %v2254
    %v2768 = vunpack.c.l.b16 %v2255
    %v2769 = vunpack.c.h.b16 %v2255
    %v2770 = vpack.c.b16 %v2758, %v2754
    %v2771 = vpack.c.b16 %v2759, %v2755
    %v2772 = vpack.c.b16 %v2760, %v2756
    %v2773 = vpack.c.b16 %v2761, %v2757
    %v2774 = vpack.c.b16 %v2766, %v2762
    %v2775 = vpack.c.b16 %v2767, %v2763
    %v2776 = vpack.c.b16 %v2768, %v2764
    %v2777 = vpack.c.b16 %v2769, %v2765
    %v2787 = vsel %vm2117, %v2247, 0
    %2789 = vmatpush.bf16.msra.mxu0 0
    %2790 = vmatpush.bf16.msra.mxu0 0
    %2791 = vmatpush.bf16.msra.mxu0 0
    %2792 = vmatpush.bf16.msra.mxu0 0
    %2793 = vmatpush.bf16.msra.mxu0 0
    %2794 = vmatpush.bf16.msra.mxu0 0
    %2795 = vmatpush.bf16.msra.mxu0 %v2774
    %2796 = vmatpush.bf16.msra.mxu0 %v2770
    %2797 = vmatmul.bf16.gmra.mxu0 %v2787
    %v2798 = vpop.f32.mrf.mxu0
    %v2799 = vadd.f32 %v2665, %v2798
    %v2800 = vpop.f32.mrf.mxu0
    %2801 = vdwg.mxu0
    %2802 = vmatpush.bf16.msra.mxu0 0
    %2803 = vmatpush.bf16.msra.mxu0 0
    %2804 = vmatpush.bf16.msra.mxu0 0
    %2805 = vmatpush.bf16.msra.mxu0 0
    %2806 = vmatpush.bf16.msra.mxu0 0
    %2807 = vmatpush.bf16.msra.mxu0 0
    %2808 = vmatpush.bf16.msra.mxu0 %v2775
    %2809 = vmatpush.bf16.msra.mxu0 %v2771
    %2810 = vmatmul.bf16.gmra.mxu0 %v2787
    %v2811 = vpop.f32.mrf.mxu0
    %v2812 = vadd.f32 %v2691, %v2811
    %v2813 = vpop.f32.mrf.mxu0
    %2814 = vdwg.mxu0
    %2815 = vmatpush.bf16.msra.mxu0 0
    %2816 = vmatpush.bf16.msra.mxu0 0
    %2817 = vmatpush.bf16.msra.mxu0 0
    %2818 = vmatpush.bf16.msra.mxu0 0
    %2819 = vmatpush.bf16.msra.mxu0 0
    %2820 = vmatpush.bf16.msra.mxu0 0
    %2821 = vmatpush.bf16.msra.mxu0 %v2776
    %2822 = vmatpush.bf16.msra.mxu0 %v2772
    %2823 = vmatmul.bf16.gmra.mxu0 %v2787
    %v2824 = vpop.f32.mrf.mxu0
    %v2825 = vadd.f32 %v2717, %v2824
    %v2826 = vpop.f32.mrf.mxu0
    %2827 = vdwg.mxu0
    %2828 = vmatpush.bf16.msra.mxu0 0
    %2829 = vmatpush.bf16.msra.mxu0 0
    %2830 = vmatpush.bf16.msra.mxu0 0
    %2831 = vmatpush.bf16.msra.mxu0 0
    %2832 = vmatpush.bf16.msra.mxu0 0
    %2833 = vmatpush.bf16.msra.mxu0 0
    %2834 = vmatpush.bf16.msra.mxu0 %v2777
    %2835 = vmatpush.bf16.msra.mxu0 %v2773
    %2836 = vmatmul.bf16.gmra.mxu0 %v2787
    %v2837 = vpop.f32.mrf.mxu0
    %v2838 = vadd.f32 %v2743, %v2837
    %v2839 = vpop.f32.mrf.mxu0
    %2840 = vdwg.mxu0
    %v2841 = vld [vmem:[#allocation24] sm:$0xf]
    %v2843 = vperm.slane %v2841, 0
    %v2844 = vperm.slane %v2841, 1
    %v2845 = vperm.slane %v2841, 2
    %v2846 = vperm.slane %v2841, 3
    %v2851 = vadd.f32 %v2799, %v2843
    %v2852 = vadd.f32 %v2812, %v2844
    %v2853 = vadd.f32 %v2825, %v2845
    %v2854 = vadd.f32 %v2838, %v2846
    %v2855 = vld [vmem:[#allocation25] sm:$0xf]
    %v2856 = vld [vmem:[#allocation27] sm:$0xf]
    %v2857 = vadd.f32 %v2851, %v2852
    %v2858 = vadd.f32 %v2857, %v2853
    %v2859 = vadd.f32 %v2858, %v2854
    %2860 = vadd.xlane.f32.xlu0 %v2859
    %v2861 = vpop.xlane.xlu0 %2860
    %v2862 = vrcp.pop 512.0
    %v2863 = vmul.f32 512.0, %v2862
    %v2864 = vsub.f32 1.0, %v2863
    %v2865 = vmul.f32 %v2862, %v2864
    %v2866 = vadd.f32 %v2862, %v2865
    %vm2867 = vweird.f32 %v2862
    %v2868 = vsel %vm2867, %v2862, %v2866
    %v2869 = vmul.f32 %v2861, %v2868
    %v2870 = vsub.f32 %v2851, %v2869
    %v2871 = vsub.f32 %v2852, %v2869
    %v2872 = vsub.f32 %v2853, %v2869
    %v2873 = vsub.f32 %v2854, %v2869
    %v2874 = vmul.f32 %v2870, %v2870
    %v2875 = vmul.f32 %v2871, %v2871
    %v2876 = vmul.f32 %v2872, %v2872
    %v2877 = vmul.f32 %v2873, %v2873
    %v2878 = vadd.f32 %v2874, %v2875
    %v2879 = vadd.f32 %v2878, %v2876
    %v2880 = vadd.f32 %v2879, %v2877
    %2881 = vadd.xlane.f32.xlu0 %v2880
    %v2882 = vpop.xlane.xlu0 %2881
    %v2883 = vmul.f32 %v2882, %v2868
    %v2884 = vadd.f32 %v2883, 1e-05
    %v2885 = vrsqrt.pop %v2884
    %v2886 = vmul.f32 %v2885, %v2884
    %v2887 = vmul.f32 %v2886, %v2885
    %v2888 = vmul.f32 0.5, %v2887
    %v2889 = vsub.f32 1.5, %v2888
    %v2890 = vmul.f32 %v2885, %v2889
    %vm2891 = vweird.f32 %v2884
    %vm2892 = vweird.f32 %v2885
    %vm2893 = vmor %vm2891, %vm2892
    %v2894 = vsel %vm2893, %v2885, %v2890
    %v2895 = vmul.f32 %v2870, %v2894
    %v2896 = vmul.f32 %v2871, %v2894
    %v2897 = vmul.f32 %v2872, %v2894
    %v2898 = vmul.f32 %v2873, %v2894
    %v2900 = vperm.slane %v2855, 0
    %v2901 = vperm.slane %v2855, 1
    %v2902 = vperm.slane %v2855, 2
    %v2903 = vperm.slane %v2855, 3
    %v2908 = vmul.f32 %v2895, %v2900
    %v2909 = vmul.f32 %v2896, %v2901
    %v2910 = vmul.f32 %v2897, %v2902
    %v2911 = vmul.f32 %v2898, %v2903
    %v2913 = vperm.slane %v2856, 0
    %v2914 = vperm.slane %v2856, 1
    %v2915 = vperm.slane %v2856, 2
    %v2916 = vperm.slane %v2856, 3
    %v2921 = vadd.f32 %v2908, %v2913
    %v2922 = vadd.f32 %v2909, %v2914
    %v2923 = vadd.f32 %v2910, %v2915
    %v2924 = vadd.f32 %v2911, %v2916
    %v2925 = vxor.u32 %v2921, 2147483648
    %v2926 = vxor.u32 %v2922, 2147483648
    %v2927 = vxor.u32 %v2923, 2147483648
    %v2928 = vxor.u32 %v2924, 2147483648
    %v2929 = vmul.f32 %v2925, 1.442695
    %v2930 = vpow.pop %v2929
    %v2931 = vmul.f32 %v2926, 1.442695
    %v2932 = vpow.pop %v2931
    %v2933 = vmul.f32 %v2927, 1.442695
    %v2934 = vpow.pop %v2933
    %v2935 = vmul.f32 %v2928, 1.442695
    %v2936 = vpow.pop %v2935
    %v2937 = vadd.f32 %v2930, 1.0
    %v2938 = vadd.f32 %v2932, 1.0
    %v2939 = vadd.f32 %v2934, 1.0
    %v2940 = vadd.f32 %v2936, 1.0
    %v2941 = vrcp.pop %v2937
    %v2942 = vmul.f32 %v2937, %v2941
    %v2943 = vsub.f32 1.0, %v2942
    %v2944 = vmul.f32 %v2941, %v2943
    %v2945 = vadd.f32 %v2941, %v2944
    %vm2946 = vweird.f32 %v2937
    %vm2947 = vweird.f32 %v2941
    %vm2948 = vmor %vm2946, %vm2947
    %v2949 = vsel %vm2948, %v2941, %v2945
    %v2950 = vand.u32 2147483647, %v2937
    %vm2951 = vcmp.eq.f32.partialorder %v2950, 8.507059e+37
    %v2952 = vand.u32 %v2937, 2147483648
    %v2953 = vor.u32 1.1754944e-38, %v2952
    %v2954 = vsel %vm2951, %v2953, %v2949
    %v2955 = vmul.f32 1.0, %v2954
    %v2956 = vrcp.pop %v2938
    %v2957 = vmul.f32 %v2938, %v2956
    %v2958 = vsub.f32 1.0, %v2957
    %v2959 = vmul.f32 %v2956, %v2958
    %v2960 = vadd.f32 %v2956, %v2959
    %vm2961 = vweird.f32 %v2938
    %vm2962 = vweird.f32 %v2956
    %vm2963 = vmor %vm2961, %vm2962
    %v2964 = vsel %vm2963, %v2956, %v2960
    %v2965 = vand.u32 2147483647, %v2938
    %vm2966 = vcmp.eq.f32.partialorder %v2965, 8.507059e+37
    %v2967 = vand.u32 %v2938, 2147483648
    %v2968 = vor.u32 1.1754944e-38, %v2967
    %v2969 = vsel %vm2966, %v2968, %v2964
    %v2970 = vmul.f32 1.0, %v2969
    %v2971 = vrcp.pop %v2939
    %v2972 = vmul.f32 %v2939, %v2971
    %v2973 = vsub.f32 1.0, %v2972
    %v2974 = vmul.f32 %v2971, %v2973
    %v2975 = vadd.f32 %v2971, %v2974
    %vm2976 = vweird.f32 %v2939
    %vm2977 = vweird.f32 %v2971
    %vm2978 = vmor %vm2976, %vm2977
    %v2979 = vsel %vm2978, %v2971, %v2975
    %v2980 = vand.u32 2147483647, %v2939
    %vm2981 = vcmp.eq.f32.partialorder %v2980, 8.507059e+37
    %v2982 = vand.u32 %v2939, 2147483648
    %v2983 = vor.u32 1.1754944e-38, %v2982
    %v2984 = vsel %vm2981, %v2983, %v2979
    %v2985 = vmul.f32 1.0, %v2984
    %v2986 = vrcp.pop %v2940
    %v2987 = vmul.f32 %v2940, %v2986
    %v2988 = vsub.f32 1.0, %v2987
    %v2989 = vmul.f32 %v2986, %v2988
    %v2990 = vadd.f32 %v2986, %v2989
    %vm2991 = vweird.f32 %v2940
    %vm2992 = vweird.f32 %v2986
    %vm2993 = vmor %vm2991, %vm2992
    %v2994 = vsel %vm2993, %v2986, %v2990
    %v2995 = vand.u32 2147483647, %v2940
    %vm2996 = vcmp.eq.f32.partialorder %v2995, 8.507059e+37
    %v2997 = vand.u32 %v2940, 2147483648
    %v2998 = vor.u32 1.1754944e-38, %v2997
    %v2999 = vsel %vm2996, %v2998, %v2994
    %v3000 = vmul.f32 1.0, %v2999
    %v3001 = vmul.f32 %v2921, %v2955
    %v3002 = vmul.f32 %v2922, %v2970
    %v3003 = vmul.f32 %v2923, %v2985
    %v3004 = vmul.f32 %v2924, %v3000
    %v3005 = vpack.c.bf16 %v3001, %v3001
    %v3006 = vpack.c.bf16 %v3002, %v3002
    %v3007 = vpack.c.bf16 %v3003, %v3003
    %v3008 = vpack.c.bf16 %v3004, %v3004
    %v3009 = vld [vmem:[%s23] sm:$0xff]
    %v3010 = vld [vmem:[%s23 + $0x8] sm:$0xff]
    %v3011 = vld [vmem:[%s23 + $0x10] sm:$0xff]
    %v3012 = vld [vmem:[%s23 + $0x18] sm:$0xff]
    %v3013 = vld [vmem:[%s23 + $0x20] sm:$0xff]
    %v3014 = vld [vmem:[%s23 + $0x28] sm:$0xff]
    %v3015 = vld [vmem:[%s23 + $0x30] sm:$0xff]
    %v3016 = vld [vmem:[%s23 + $0x38] sm:$0xff]
    %v3017 = vld [vmem:[%s23 + $0x40] sm:$0xff]
    %v3018 = vld [vmem:[%s23 + $0x48] sm:$0xff]
    %v3019 = vld [vmem:[%s23 + $0x50] sm:$0xff]
    %v3020 = vld [vmem:[%s23 + $0x58] sm:$0xff]
    %v3021 = vld [vmem:[%s23 + $0x60] sm:$0xff]
    %v3022 = vld [vmem:[%s23 + $0x68] sm:$0xff]
    %v3023 = vld [vmem:[%s23 + $0x70] sm:$0xff]
    %v3024 = vld [vmem:[%s23 + $0x78] sm:$0xff]
    %v3025 = vld [vmem:[%s23 + $0x80] sm:$0xff]
    %v3026 = vld [vmem:[%s23 + $0x88] sm:$0xff]
    %v3027 = vld [vmem:[%s23 + $0x90] sm:$0xff]
    %v3028 = vld [vmem:[%s23 + $0x98] sm:$0xff]
    %v3029 = vld [vmem:[%s23 + $0xa0] sm:$0xff]
    %v3030 = vld [vmem:[%s23 + $0xa8] sm:$0xff]
    %v3031 = vld [vmem:[%s23 + $0xb0] sm:$0xff]
    %v3032 = vld [vmem:[%s23 + $0xb8] sm:$0xff]
    %v3033 = vld [vmem:[%s23 + $0xc0] sm:$0xff]
    %v3034 = vld [vmem:[%s23 + $0xc8] sm:$0xff]
    %v3035 = vld [vmem:[%s23 + $0xd0] sm:$0xff]
    %v3036 = vld [vmem:[%s23 + $0xd8] sm:$0xff]
    %v3037 = vld [vmem:[%s23 + $0xe0] sm:$0xff]
    %v3038 = vld [vmem:[%s23 + $0xe8] sm:$0xff]
    %v3039 = vld [vmem:[%s23 + $0xf0] sm:$0xff]
    %v3040 = vld [vmem:[%s23 + $0xf8] sm:$0xff]
    %v3041 = vld [vmem:[%s23 + $0x100] sm:$0xff]
    %v3042 = vld [vmem:[%s23 + $0x108] sm:$0xff]
    %v3043 = vld [vmem:[%s23 + $0x110] sm:$0xff]
    %v3044 = vld [vmem:[%s23 + $0x118] sm:$0xff]
    %v3045 = vld [vmem:[%s23 + $0x120] sm:$0xff]
    %v3046 = vld [vmem:[%s23 + $0x128] sm:$0xff]
    %v3047 = vld [vmem:[%s23 + $0x130] sm:$0xff]
    %v3048 = vld [vmem:[%s23 + $0x138] sm:$0xff]
    %v3049 = vld [vmem:[%s23 + $0x140] sm:$0xff]
    %v3050 = vld [vmem:[%s23 + $0x148] sm:$0xff]
    %v3051 = vld [vmem:[%s23 + $0x150] sm:$0xff]
    %v3052 = vld [vmem:[%s23 + $0x158] sm:$0xff]
    %v3053 = vld [vmem:[%s23 + $0x160] sm:$0xff]
    %v3054 = vld [vmem:[%s23 + $0x168] sm:$0xff]
    %v3055 = vld [vmem:[%s23 + $0x170] sm:$0xff]
    %v3056 = vld [vmem:[%s23 + $0x178] sm:$0xff]
    %v3057 = vld [vmem:[%s23 + $0x180] sm:$0xff]
    %v3058 = vld [vmem:[%s23 + $0x188] sm:$0xff]
    %v3059 = vld [vmem:[%s23 + $0x190] sm:$0xff]
    %v3060 = vld [vmem:[%s23 + $0x198] sm:$0xff]
    %v3061 = vld [vmem:[%s23 + $0x1a0] sm:$0xff]
    %v3062 = vld [vmem:[%s23 + $0x1a8] sm:$0xff]
    %v3063 = vld [vmem:[%s23 + $0x1b0] sm:$0xff]
    %v3064 = vld [vmem:[%s23 + $0x1b8] sm:$0xff]
    %v3065 = vld [vmem:[%s23 + $0x1c0] sm:$0xff]
    %v3066 = vld [vmem:[%s23 + $0x1c8] sm:$0xff]
    %v3067 = vld [vmem:[%s23 + $0x1d0] sm:$0xff]
    %v3068 = vld [vmem:[%s23 + $0x1d8] sm:$0xff]
    %v3069 = vld [vmem:[%s23 + $0x1e0] sm:$0xff]
    %v3070 = vld [vmem:[%s23 + $0x1e8] sm:$0xff]
    %v3071 = vld [vmem:[%s23 + $0x1f0] sm:$0xff]
    %v3072 = vld [vmem:[%s23 + $0x1f8] sm:$0xff]
    %v3073 = vld [vmem:[%s23 + $0x200] sm:$0xff]
    %v3074 = vld [vmem:[%s23 + $0x208] sm:$0xff]
    %v3075 = vld [vmem:[%s23 + $0x210] sm:$0xff]
    %v3076 = vld [vmem:[%s23 + $0x218] sm:$0xff]
    %v3077 = vld [vmem:[%s23 + $0x220] sm:$0xff]
    %v3078 = vld [vmem:[%s23 + $0x228] sm:$0xff]
    %v3079 = vld [vmem:[%s23 + $0x230] sm:$0xff]
    %v3080 = vld [vmem:[%s23 + $0x238] sm:$0xff]
    %v3081 = vld [vmem:[%s23 + $0x240] sm:$0xff]
    %v3082 = vld [vmem:[%s23 + $0x248] sm:$0xff]
    %v3083 = vld [vmem:[%s23 + $0x250] sm:$0xff]
    %v3084 = vld [vmem:[%s23 + $0x258] sm:$0xff]
    %v3085 = vld [vmem:[%s23 + $0x260] sm:$0xff]
    %v3086 = vld [vmem:[%s23 + $0x268] sm:$0xff]
    %v3087 = vld [vmem:[%s23 + $0x270] sm:$0xff]
    %v3088 = vld [vmem:[%s23 + $0x278] sm:$0xff]
    %v3089 = vld [vmem:[%s23 + $0x280] sm:$0xff]
    %v3090 = vld [vmem:[%s23 + $0x288] sm:$0xff]
    %v3091 = vld [vmem:[%s23 + $0x290] sm:$0xff]
    %v3092 = vld [vmem:[%s23 + $0x298] sm:$0xff]
    %v3093 = vld [vmem:[%s23 + $0x2a0] sm:$0xff]
    %v3094 = vld [vmem:[%s23 + $0x2a8] sm:$0xff]
    %v3095 = vld [vmem:[%s23 + $0x2b0] sm:$0xff]
    %v3096 = vld [vmem:[%s23 + $0x2b8] sm:$0xff]
    %v3097 = vld [vmem:[%s23 + $0x2c0] sm:$0xff]
    %v3098 = vld [vmem:[%s23 + $0x2c8] sm:$0xff]
    %v3099 = vld [vmem:[%s23 + $0x2d0] sm:$0xff]
    %v3100 = vld [vmem:[%s23 + $0x2d8] sm:$0xff]
    %v3101 = vld [vmem:[%s23 + $0x2e0] sm:$0xff]
    %v3102 = vld [vmem:[%s23 + $0x2e8] sm:$0xff]
    %v3103 = vld [vmem:[%s23 + $0x2f0] sm:$0xff]
    %v3104 = vld [vmem:[%s23 + $0x2f8] sm:$0xff]
    %v3105 = vld [vmem:[%s23 + $0x300] sm:$0xff]
    %v3106 = vld [vmem:[%s23 + $0x308] sm:$0xff]
    %v3107 = vld [vmem:[%s23 + $0x310] sm:$0xff]
    %v3108 = vld [vmem:[%s23 + $0x318] sm:$0xff]
    %v3109 = vld [vmem:[%s23 + $0x320] sm:$0xff]
    %v3110 = vld [vmem:[%s23 + $0x328] sm:$0xff]
    %v3111 = vld [vmem:[%s23 + $0x330] sm:$0xff]
    %v3112 = vld [vmem:[%s23 + $0x338] sm:$0xff]
    %v3113 = vld [vmem:[%s23 + $0x340] sm:$0xff]
    %v3114 = vld [vmem:[%s23 + $0x348] sm:$0xff]
    %v3115 = vld [vmem:[%s23 + $0x350] sm:$0xff]
    %v3116 = vld [vmem:[%s23 + $0x358] sm:$0xff]
    %v3117 = vld [vmem:[%s23 + $0x360] sm:$0xff]
    %v3118 = vld [vmem:[%s23 + $0x368] sm:$0xff]
    %v3119 = vld [vmem:[%s23 + $0x370] sm:$0xff]
    %v3120 = vld [vmem:[%s23 + $0x378] sm:$0xff]
    %v3121 = vld [vmem:[%s23 + $0x380] sm:$0xff]
    %v3122 = vld [vmem:[%s23 + $0x388] sm:$0xff]
    %v3123 = vld [vmem:[%s23 + $0x390] sm:$0xff]
    %v3124 = vld [vmem:[%s23 + $0x398] sm:$0xff]
    %v3125 = vld [vmem:[%s23 + $0x3a0] sm:$0xff]
    %v3126 = vld [vmem:[%s23 + $0x3a8] sm:$0xff]
    %v3127 = vld [vmem:[%s23 + $0x3b0] sm:$0xff]
    %v3128 = vld [vmem:[%s23 + $0x3b8] sm:$0xff]
    %v3129 = vld [vmem:[%s23 + $0x3c0] sm:$0xff]
    %v3130 = vld [vmem:[%s23 + $0x3c8] sm:$0xff]
    %v3131 = vld [vmem:[%s23 + $0x3d0] sm:$0xff]
    %v3132 = vld [vmem:[%s23 + $0x3d8] sm:$0xff]
    %v3133 = vld [vmem:[%s23 + $0x3e0] sm:$0xff]
    %v3134 = vld [vmem:[%s23 + $0x3e8] sm:$0xff]
    %v3135 = vld [vmem:[%s23 + $0x3f0] sm:$0xff]
    %v3136 = vld [vmem:[%s23 + $0x3f8] sm:$0xff]
    %v3137 = vld [vmem:[#allocation28] sm:$0xf]
    %v3139 = vperm.slane %v3137, 0
    %v3140 = vperm.slane %v3137, 1
    %v3141 = vperm.slane %v3137, 2
    %v3142 = vperm.slane %v3137, 3
    %v3275 = vunpack.c.l.b16 %v3009
    %v3276 = vunpack.c.h.b16 %v3009
    %v3277 = vunpack.c.l.b16 %v3010
    %v3278 = vunpack.c.h.b16 %v3010
    %v3279 = vunpack.c.l.b16 %v3011
    %v3280 = vunpack.c.h.b16 %v3011
    %v3281 = vunpack.c.l.b16 %v3012
    %v3282 = vunpack.c.h.b16 %v3012
    %v3283 = vunpack.c.l.b16 %v3013
    %v3284 = vunpack.c.h.b16 %v3013
    %v3285 = vunpack.c.l.b16 %v3014
    %v3286 = vunpack.c.h.b16 %v3014
    %v3287 = vunpack.c.l.b16 %v3015
    %v3288 = vunpack.c.h.b16 %v3015
    %v3289 = vunpack.c.l.b16 %v3016
    %v3290 = vunpack.c.h.b16 %v3016
    %v3291 = vunpack.c.l.b16 %v3017
    %v3292 = vunpack.c.h.b16 %v3017
    %v3293 = vunpack.c.l.b16 %v3018
    %v3294 = vunpack.c.h.b16 %v3018
    %v3295 = vunpack.c.l.b16 %v3019
    %v3296 = vunpack.c.h.b16 %v3019
    %v3297 = vunpack.c.l.b16 %v3020
    %v3298 = vunpack.c.h.b16 %v3020
    %v3299 = vunpack.c.l.b16 %v3021
    %v3300 = vunpack.c.h.b16 %v3021
    %v3301 = vunpack.c.l.b16 %v3022
    %v3302 = vunpack.c.h.b16 %v3022
    %v3303 = vunpack.c.l.b16 %v3023
    %v3304 = vunpack.c.h.b16 %v3023
    %v3305 = vunpack.c.l.b16 %v3024
    %v3306 = vunpack.c.h.b16 %v3024
    %v3307 = vunpack.c.l.b16 %v3025
    %v3308 = vunpack.c.h.b16 %v3025
    %v3309 = vunpack.c.l.b16 %v3026
    %v3310 = vunpack.c.h.b16 %v3026
    %v3311 = vunpack.c.l.b16 %v3027
    %v3312 = vunpack.c.h.b16 %v3027
    %v3313 = vunpack.c.l.b16 %v3028
    %v3314 = vunpack.c.h.b16 %v3028
    %v3315 = vunpack.c.l.b16 %v3029
    %v3316 = vunpack.c.h.b16 %v3029
    %v3317 = vunpack.c.l.b16 %v3030
    %v3318 = vunpack.c.h.b16 %v3030
    %v3319 = vunpack.c.l.b16 %v3031
    %v3320 = vunpack.c.h.b16 %v3031
    %v3321 = vunpack.c.l.b16 %v3032
    %v3322 = vunpack.c.h.b16 %v3032
    %v3323 = vunpack.c.l.b16 %v3033
    %v3324 = vunpack.c.h.b16 %v3033
    %v3325 = vunpack.c.l.b16 %v3034
    %v3326 = vunpack.c.h.b16 %v3034
    %v3327 = vunpack.c.l.b16 %v3035
    %v3328 = vunpack.c.h.b16 %v3035
    %v3329 = vunpack.c.l.b16 %v3036
    %v3330 = vunpack.c.h.b16 %v3036
    %v3331 = vunpack.c.l.b16 %v3037
    %v3332 = vunpack.c.h.b16 %v3037
    %v3333 = vunpack.c.l.b16 %v3038
    %v3334 = vunpack.c.h.b16 %v3038
    %v3335 = vunpack.c.l.b16 %v3039
    %v3336 = vunpack.c.h.b16 %v3039
    %v3337 = vunpack.c.l.b16 %v3040
    %v3338 = vunpack.c.h.b16 %v3040
    %v3339 = vunpack.c.l.b16 %v3041
    %v3340 = vunpack.c.h.b16 %v3041
    %v3341 = vunpack.c.l.b16 %v3042
    %v3342 = vunpack.c.h.b16 %v3042
    %v3343 = vunpack.c.l.b16 %v3043
    %v3344 = vunpack.c.h.b16 %v3043
    %v3345 = vunpack.c.l.b16 %v3044
    %v3346 = vunpack.c.h.b16 %v3044
    %v3347 = vunpack.c.l.b16 %v3045
    %v3348 = vunpack.c.h.b16 %v3045
    %v3349 = vunpack.c.l.b16 %v3046
    %v3350 = vunpack.c.h.b16 %v3046
    %v3351 = vunpack.c.l.b16 %v3047
    %v3352 = vunpack.c.h.b16 %v3047
    %v3353 = vunpack.c.l.b16 %v3048
    %v3354 = vunpack.c.h.b16 %v3048
    %v3355 = vunpack.c.l.b16 %v3049
    %v3356 = vunpack.c.h.b16 %v3049
    %v3357 = vunpack.c.l.b16 %v3050
    %v3358 = vunpack.c.h.b16 %v3050
    %v3359 = vunpack.c.l.b16 %v3051
    %v3360 = vunpack.c.h.b16 %v3051
    %v3361 = vunpack.c.l.b16 %v3052
    %v3362 = vunpack.c.h.b16 %v3052
    %v3363 = vunpack.c.l.b16 %v3053
    %v3364 = vunpack.c.h.b16 %v3053
    %v3365 = vunpack.c.l.b16 %v3054
    %v3366 = vunpack.c.h.b16 %v3054
    %v3367 = vunpack.c.l.b16 %v3055
    %v3368 = vunpack.c.h.b16 %v3055
    %v3369 = vunpack.c.l.b16 %v3056
    %v3370 = vunpack.c.h.b16 %v3056
    %v3371 = vunpack.c.l.b16 %v3057
    %v3372 = vunpack.c.h.b16 %v3057
    %v3373 = vunpack.c.l.b16 %v3058
    %v3374 = vunpack.c.h.b16 %v3058
    %v3375 = vunpack.c.l.b16 %v3059
    %v3376 = vunpack.c.h.b16 %v3059
    %v3377 = vunpack.c.l.b16 %v3060
    %v3378 = vunpack.c.h.b16 %v3060
    %v3379 = vunpack.c.l.b16 %v3061
    %v3380 = vunpack.c.h.b16 %v3061
    %v3381 = vunpack.c.l.b16 %v3062
    %v3382 = vunpack.c.h.b16 %v3062
    %v3383 = vunpack.c.l.b16 %v3063
    %v3384 = vunpack.c.h.b16 %v3063
    %v3385 = vunpack.c.l.b16 %v3064
    %v3386 = vunpack.c.h.b16 %v3064
    %v3387 = vunpack.c.l.b16 %v3065
    %v3388 = vunpack.c.h.b16 %v3065
    %v3389 = vunpack.c.l.b16 %v3066
    %v3390 = vunpack.c.h.b16 %v3066
    %v3391 = vunpack.c.l.b16 %v3067
    %v3392 = vunpack.c.h.b16 %v3067
    %v3393 = vunpack.c.l.b16 %v3068
    %v3394 = vunpack.c.h.b16 %v3068
    %v3395 = vunpack.c.l.b16 %v3069
    %v3396 = vunpack.c.h.b16 %v3069
    %v3397 = vunpack.c.l.b16 %v3070
    %v3398 = vunpack.c.h.b16 %v3070
    %v3399 = vunpack.c.l.b16 %v3071
    %v3400 = vunpack.c.h.b16 %v3071
    %v3401 = vunpack.c.l.b16 %v3072
    %v3402 = vunpack.c.h.b16 %v3072
    %v3403 = vunpack.c.l.b16 %v3073
    %v3404 = vunpack.c.h.b16 %v3073
    %v3405 = vunpack.c.l.b16 %v3074
    %v3406 = vunpack.c.h.b16 %v3074
    %v3407 = vunpack.c.l.b16 %v3075
    %v3408 = vunpack.c.h.b16 %v3075
    %v3409 = vunpack.c.l.b16 %v3076
    %v3410 = vunpack.c.h.b16 %v3076
    %v3411 = vunpack.c.l.b16 %v3077
    %v3412 = vunpack.c.h.b16 %v3077
    %v3413 = vunpack.c.l.b16 %v3078
    %v3414 = vunpack.c.h.b16 %v3078
    %v3415 = vunpack.c.l.b16 %v3079
    %v3416 = vunpack.c.h.b16 %v3079
    %v3417 = vunpack.c.l.b16 %v3080
    %v3418 = vunpack.c.h.b16 %v3080
    %v3419 = vunpack.c.l.b16 %v3081
    %v3420 = vunpack.c.h.b16 %v3081
    %v3421 = vunpack.c.l.b16 %v3082
    %v3422 = vunpack.c.h.b16 %v3082
    %v3423 = vunpack.c.l.b16 %v3083
    %v3424 = vunpack.c.h.b16 %v3083
    %v3425 = vunpack.c.l.b16 %v3084
    %v3426 = vunpack.c.h.b16 %v3084
    %v3427 = vunpack.c.l.b16 %v3085
    %v3428 = vunpack.c.h.b16 %v3085
    %v3429 = vunpack.c.l.b16 %v3086
    %v3430 = vunpack.c.h.b16 %v3086
    %v3431 = vunpack.c.l.b16 %v3087
    %v3432 = vunpack.c.h.b16 %v3087
    %v3433 = vunpack.c.l.b16 %v3088
    %v3434 = vunpack.c.h.b16 %v3088
    %v3435 = vunpack.c.l.b16 %v3089
    %v3436 = vunpack.c.h.b16 %v3089
    %v3437 = vunpack.c.l.b16 %v3090
    %v3438 = vunpack.c.h.b16 %v3090
    %v3439 = vunpack.c.l.b16 %v3091
    %v3440 = vunpack.c.h.b16 %v3091
    %v3441 = vunpack.c.l.b16 %v3092
    %v3442 = vunpack.c.h.b16 %v3092
    %v3443 = vunpack.c.l.b16 %v3093
    %v3444 = vunpack.c.h.b16 %v3093
    %v3445 = vunpack.c.l.b16 %v3094
    %v3446 = vunpack.c.h.b16 %v3094
    %v3447 = vunpack.c.l.b16 %v3095
    %v3448 = vunpack.c.h.b16 %v3095
    %v3449 = vunpack.c.l.b16 %v3096
    %v3450 = vunpack.c.h.b16 %v3096
    %v3451 = vunpack.c.l.b16 %v3097
    %v3452 = vunpack.c.h.b16 %v3097
    %v3453 = vunpack.c.l.b16 %v3098
    %v3454 = vunpack.c.h.b16 %v3098
    %v3455 = vunpack.c.l.b16 %v3099
    %v3456 = vunpack.c.h.b16 %v3099
    %v3457 = vunpack.c.l.b16 %v3100
    %v3458 = vunpack.c.h.b16 %v3100
    %v3459 = vunpack.c.l.b16 %v3101
    %v3460 = vunpack.c.h.b16 %v3101
    %v3461 = vunpack.c.l.b16 %v3102
    %v3462 = vunpack.c.h.b16 %v3102
    %v3463 = vunpack.c.l.b16 %v3103
    %v3464 = vunpack.c.h.b16 %v3103
    %v3465 = vunpack.c.l.b16 %v3104
    %v3466 = vunpack.c.h.b16 %v3104
    %v3467 = vunpack.c.l.b16 %v3105
    %v3468 = vunpack.c.h.b16 %v3105
    %v3469 = vunpack.c.l.b16 %v3106
    %v3470 = vunpack.c.h.b16 %v3106
    %v3471 = vunpack.c.l.b16 %v3107
    %v3472 = vunpack.c.h.b16 %v3107
    %v3473 = vunpack.c.l.b16 %v3108
    %v3474 = vunpack.c.h.b16 %v3108
    %v3475 = vunpack.c.l.b16 %v3109
    %v3476 = vunpack.c.h.b16 %v3109
    %v3477 = vunpack.c.l.b16 %v3110
    %v3478 = vunpack.c.h.b16 %v3110
    %v3479 = vunpack.c.l.b16 %v3111
    %v3480 = vunpack.c.h.b16 %v3111
    %v3481 = vunpack.c.l.b16 %v3112
    %v3482 = vunpack.c.h.b16 %v3112
    %v3483 = vunpack.c.l.b16 %v3113
    %v3484 = vunpack.c.h.b16 %v3113
    %v3485 = vunpack.c.l.b16 %v3114
    %v3486 = vunpack.c.h.b16 %v3114
    %v3487 = vunpack.c.l.b16 %v3115
    %v3488 = vunpack.c.h.b16 %v3115
    %v3489 = vunpack.c.l.b16 %v3116
    %v3490 = vunpack.c.h.b16 %v3116
    %v3491 = vunpack.c.l.b16 %v3117
    %v3492 = vunpack.c.h.b16 %v3117
    %v3493 = vunpack.c.l.b16 %v3118
    %v3494 = vunpack.c.h.b16 %v3118
    %v3495 = vunpack.c.l.b16 %v3119
    %v3496 = vunpack.c.h.b16 %v3119
    %v3497 = vunpack.c.l.b16 %v3120
    %v3498 = vunpack.c.h.b16 %v3120
    %v3499 = vunpack.c.l.b16 %v3121
    %v3500 = vunpack.c.h.b16 %v3121
    %v3501 = vunpack.c.l.b16 %v3122
    %v3502 = vunpack.c.h.b16 %v3122
    %v3503 = vunpack.c.l.b16 %v3123
    %v3504 = vunpack.c.h.b16 %v3123
    %v3505 = vunpack.c.l.b16 %v3124
    %v3506 = vunpack.c.h.b16 %v3124
    %v3507 = vunpack.c.l.b16 %v3125
    %v3508 = vunpack.c.h.b16 %v3125
    %v3509 = vunpack.c.l.b16 %v3126
    %v3510 = vunpack.c.h.b16 %v3126
    %v3511 = vunpack.c.l.b16 %v3127
    %v3512 = vunpack.c.h.b16 %v3127
    %v3513 = vunpack.c.l.b16 %v3128
    %v3514 = vunpack.c.h.b16 %v3128
    %v3515 = vunpack.c.l.b16 %v3129
    %v3516 = vunpack.c.h.b16 %v3129
    %v3517 = vunpack.c.l.b16 %v3130
    %v3518 = vunpack.c.h.b16 %v3130
    %v3519 = vunpack.c.l.b16 %v3131
    %v3520 = vunpack.c.h.b16 %v3131
    %v3521 = vunpack.c.l.b16 %v3132
    %v3522 = vunpack.c.h.b16 %v3132
    %v3523 = vunpack.c.l.b16 %v3133
    %v3524 = vunpack.c.h.b16 %v3133
    %v3525 = vunpack.c.l.b16 %v3134
    %v3526 = vunpack.c.h.b16 %v3134
    %v3527 = vunpack.c.l.b16 %v3135
    %v3528 = vunpack.c.h.b16 %v3135
    %v3529 = vunpack.c.l.b16 %v3136
    %v3530 = vunpack.c.h.b16 %v3136
    %v3531 = vpack.c.b16 %v3279, %v3275
    %v3532 = vpack.c.b16 %v3280, %v3276
    %v3533 = vpack.c.b16 %v3281, %v3277
    %v3534 = vpack.c.b16 %v3282, %v3278
    %v3535 = vpack.c.b16 %v3287, %v3283
    %v3536 = vpack.c.b16 %v3288, %v3284
    %v3537 = vpack.c.b16 %v3289, %v3285
    %v3538 = vpack.c.b16 %v3290, %v3286
    %v3539 = vpack.c.b16 %v3295, %v3291
    %v3540 = vpack.c.b16 %v3296, %v3292
    %v3541 = vpack.c.b16 %v3297, %v3293
    %v3542 = vpack.c.b16 %v3298, %v3294
    %v3543 = vpack.c.b16 %v3303, %v3299
    %v3544 = vpack.c.b16 %v3304, %v3300
    %v3545 = vpack.c.b16 %v3305, %v3301
    %v3546 = vpack.c.b16 %v3306, %v3302
    %v3547 = vpack.c.b16 %v3311, %v3307
    %v3548 = vpack.c.b16 %v3312, %v3308
    %v3549 = vpack.c.b16 %v3313, %v3309
    %v3550 = vpack.c.b16 %v3314, %v3310
    %v3551 = vpack.c.b16 %v3319, %v3315
    %v3552 = vpack.c.b16 %v3320, %v3316
    %v3553 = vpack.c.b16 %v3321, %v3317
    %v3554 = vpack.c.b16 %v3322, %v3318
    %v3555 = vpack.c.b16 %v3327, %v3323
    %v3556 = vpack.c.b16 %v3328, %v3324
    %v3557 = vpack.c.b16 %v3329, %v3325
    %v3558 = vpack.c.b16 %v3330, %v3326
    %v3559 = vpack.c.b16 %v3335, %v3331
    %v3560 = vpack.c.b16 %v3336, %v3332
    %v3561 = vpack.c.b16 %v3337, %v3333
    %v3562 = vpack.c.b16 %v3338, %v3334
    %v3563 = vpack.c.b16 %v3343, %v3339
    %v3564 = vpack.c.b16 %v3344, %v3340
    %v3565 = vpack.c.b16 %v3345, %v3341
    %v3566 = vpack.c.b16 %v3346, %v3342
    %v3567 = vpack.c.b16 %v3351, %v3347
    %v3568 = vpack.c.b16 %v3352, %v3348
    %v3569 = vpack.c.b16 %v3353, %v3349
    %v3570 = vpack.c.b16 %v3354, %v3350
    %v3571 = vpack.c.b16 %v3359, %v3355
    %v3572 = vpack.c.b16 %v3360, %v3356
    %v3573 = vpack.c.b16 %v3361, %v3357
    %v3574 = vpack.c.b16 %v3362, %v3358
    %v3575 = vpack.c.b16 %v3367, %v3363
    %v3576 = vpack.c.b16 %v3368, %v3364
    %v3577 = vpack.c.b16 %v3369, %v3365
    %v3578 = vpack.c.b16 %v3370, %v3366
    %v3579 = vpack.c.b16 %v3375, %v3371
    %v3580 = vpack.c.b16 %v3376, %v3372
    %v3581 = vpack.c.b16 %v3377, %v3373
    %v3582 = vpack.c.b16 %v3378, %v3374
    %v3583 = vpack.c.b16 %v3383, %v3379
    %v3584 = vpack.c.b16 %v3384, %v3380
    %v3585 = vpack.c.b16 %v3385, %v3381
    %v3586 = vpack.c.b16 %v3386, %v3382
    %v3587 = vpack.c.b16 %v3391, %v3387
    %v3588 = vpack.c.b16 %v3392, %v3388
    %v3589 = vpack.c.b16 %v3393, %v3389
    %v3590 = vpack.c.b16 %v3394, %v3390
    %v3591 = vpack.c.b16 %v3399, %v3395
    %v3592 = vpack.c.b16 %v3400, %v3396
    %v3593 = vpack.c.b16 %v3401, %v3397
    %v3594 = vpack.c.b16 %v3402, %v3398
    %v3595 = vpack.c.b16 %v3407, %v3403
    %v3596 = vpack.c.b16 %v3408, %v3404
    %v3597 = vpack.c.b16 %v3409, %v3405
    %v3598 = vpack.c.b16 %v3410, %v3406
    %v3599 = vpack.c.b16 %v3415, %v3411
    %v3600 = vpack.c.b16 %v3416, %v3412
    %v3601 = vpack.c.b16 %v3417, %v3413
    %v3602 = vpack.c.b16 %v3418, %v3414
    %v3603 = vpack.c.b16 %v3423, %v3419
    %v3604 = vpack.c.b16 %v3424, %v3420
    %v3605 = vpack.c.b16 %v3425, %v3421
    %v3606 = vpack.c.b16 %v3426, %v3422
    %v3607 = vpack.c.b16 %v3431, %v3427
    %v3608 = vpack.c.b16 %v3432, %v3428
    %v3609 = vpack.c.b16 %v3433, %v3429
    %v3610 = vpack.c.b16 %v3434, %v3430
    %v3611 = vpack.c.b16 %v3439, %v3435
    %v3612 = vpack.c.b16 %v3440, %v3436
    %v3613 = vpack.c.b16 %v3441, %v3437
    %v3614 = vpack.c.b16 %v3442, %v3438
    %v3615 = vpack.c.b16 %v3447, %v3443
    %v3616 = vpack.c.b16 %v3448, %v3444
    %v3617 = vpack.c.b16 %v3449, %v3445
    %v3618 = vpack.c.b16 %v3450, %v3446
    %v3619 = vpack.c.b16 %v3455, %v3451
    %v3620 = vpack.c.b16 %v3456, %v3452
    %v3621 = vpack.c.b16 %v3457, %v3453
    %v3622 = vpack.c.b16 %v3458, %v3454
    %v3623 = vpack.c.b16 %v3463, %v3459
    %v3624 = vpack.c.b16 %v3464, %v3460
    %v3625 = vpack.c.b16 %v3465, %v3461
    %v3626 = vpack.c.b16 %v3466, %v3462
    %v3627 = vpack.c.b16 %v3471, %v3467
    %v3628 = vpack.c.b16 %v3472, %v3468
    %v3629 = vpack.c.b16 %v3473, %v3469
    %v3630 = vpack.c.b16 %v3474, %v3470
    %v3631 = vpack.c.b16 %v3479, %v3475
    %v3632 = vpack.c.b16 %v3480, %v3476
    %v3633 = vpack.c.b16 %v3481, %v3477
    %v3634 = vpack.c.b16 %v3482, %v3478
    %v3635 = vpack.c.b16 %v3487, %v3483
    %v3636 = vpack.c.b16 %v3488, %v3484
    %v3637 = vpack.c.b16 %v3489, %v3485
    %v3638 = vpack.c.b16 %v3490, %v3486
    %v3639 = vpack.c.b16 %v3495, %v3491
    %v3640 = vpack.c.b16 %v3496, %v3492
    %v3641 = vpack.c.b16 %v3497, %v3493
    %v3642 = vpack.c.b16 %v3498, %v3494
    %v3643 = vpack.c.b16 %v3503, %v3499
    %v3644 = vpack.c.b16 %v3504, %v3500
    %v3645 = vpack.c.b16 %v3505, %v3501
    %v3646 = vpack.c.b16 %v3506, %v3502
    %v3647 = vpack.c.b16 %v3511, %v3507
    %v3648 = vpack.c.b16 %v3512, %v3508
    %v3649 = vpack.c.b16 %v3513, %v3509
    %v3650 = vpack.c.b16 %v3514, %v3510
    %v3651 = vpack.c.b16 %v3519, %v3515
    %v3652 = vpack.c.b16 %v3520, %v3516
    %v3653 = vpack.c.b16 %v3521, %v3517
    %v3654 = vpack.c.b16 %v3522, %v3518
    %v3655 = vpack.c.b16 %v3527, %v3523
    %v3656 = vpack.c.b16 %v3528, %v3524
    %v3657 = vpack.c.b16 %v3529, %v3525
    %v3658 = vpack.c.b16 %v3530, %v3526
    %3787 = vmatpush.bf16.msra.mxu0 %v3559
    %3788 = vmatpush.bf16.msra.mxu0 %v3555
    %3789 = vmatpush.bf16.msra.mxu0 %v3551
    %3790 = vmatpush.bf16.msra.mxu0 %v3547
    %3791 = vmatpush.bf16.msra.mxu0 %v3543
    %3792 = vmatpush.bf16.msra.mxu0 %v3539
    %3793 = vmatpush.bf16.msra.mxu0 %v3535
    %3794 = vmatpush.bf16.msra.mxu0 %v3531
    %3795 = vmatmul.bf16.gmra.mxu0 %v3005
    %v3796 = vpop.f32.mrf.mxu0
    %v3797 = vadd.f32 %v3139, %v3796
    %v3798 = vpop.f32.mrf.mxu0
    %3799 = vdwg.mxu0
    %3800 = vmatpush.bf16.msra.mxu0 %v3591
    %3801 = vmatpush.bf16.msra.mxu0 %v3587
    %3802 = vmatpush.bf16.msra.mxu0 %v3583
    %3803 = vmatpush.bf16.msra.mxu0 %v3579
    %3804 = vmatpush.bf16.msra.mxu0 %v3575
    %3805 = vmatpush.bf16.msra.mxu0 %v3571
    %3806 = vmatpush.bf16.msra.mxu0 %v3567
    %3807 = vmatpush.bf16.msra.mxu0 %v3563
    %3808 = vmatmul.bf16.gmra.mxu0 %v3006
    %v3809 = vpop.f32.mrf.mxu0
    %v3810 = vadd.f32 %v3797, %v3809
    %v3811 = vpop.f32.mrf.mxu0
    %3812 = vdwg.mxu0
    %3813 = vmatpush.bf16.msra.mxu0 %v3623
    %3814 = vmatpush.bf16.msra.mxu0 %v3619
    %3815 = vmatpush.bf16.msra.mxu0 %v3615
    %3816 = vmatpush.bf16.msra.mxu0 %v3611
    %3817 = vmatpush.bf16.msra.mxu0 %v3607
    %3818 = vmatpush.bf16.msra.mxu0 %v3603
    %3819 = vmatpush.bf16.msra.mxu0 %v3599
    %3820 = vmatpush.bf16.msra.mxu0 %v3595
    %3821 = vmatmul.bf16.gmra.mxu0 %v3007
    %v3822 = vpop.f32.mrf.mxu0
    %v3823 = vadd.f32 %v3810, %v3822
    %v3824 = vpop.f32.mrf.mxu0
    %3825 = vdwg.mxu0
    %3826 = vmatpush.bf16.msra.mxu0 %v3655
    %3827 = vmatpush.bf16.msra.mxu0 %v3651
    %3828 = vmatpush.bf16.msra.mxu0 %v3647
    %3829 = vmatpush.bf16.msra.mxu0 %v3643
    %3830 = vmatpush.bf16.msra.mxu0 %v3639
    %3831 = vmatpush.bf16.msra.mxu0 %v3635
    %3832 = vmatpush.bf16.msra.mxu0 %v3631
    %3833 = vmatpush.bf16.msra.mxu0 %v3627
    %3834 = vmatmul.bf16.gmra.mxu0 %v3008
    %v3835 = vpop.f32.mrf.mxu0
    %v3836 = vadd.f32 %v3823, %v3835
    %v3837 = vpop.f32.mrf.mxu0
    %3838 = vdwg.mxu0
    %3839 = vmatpush.bf16.msra.mxu0 %v3560
    %3840 = vmatpush.bf16.msra.mxu0 %v3556
    %3841 = vmatpush.bf16.msra.mxu0 %v3552
    %3842 = vmatpush.bf16.msra.mxu0 %v3548
    %3843 = vmatpush.bf16.msra.mxu0 %v3544
    %3844 = vmatpush.bf16.msra.mxu0 %v3540
    %3845 = vmatpush.bf16.msra.mxu0 %v3536
    %3846 = vmatpush.bf16.msra.mxu0 %v3532
    %3847 = vmatmul.bf16.gmra.mxu0 %v3005
    %v3848 = vpop.f32.mrf.mxu0
    %v3849 = vadd.f32 %v3140, %v3848
    %v3850 = vpop.f32.mrf.mxu0
    %3851 = vdwg.mxu0
    %3852 = vmatpush.bf16.msra.mxu0 %v3592
    %3853 = vmatpush.bf16.msra.mxu0 %v3588
    %3854 = vmatpush.bf16.msra.mxu0 %v3584
    %3855 = vmatpush.bf16.msra.mxu0 %v3580
    %3856 = vmatpush.bf16.msra.mxu0 %v3576
    %3857 = vmatpush.bf16.msra.mxu0 %v3572
    %3858 = vmatpush.bf16.msra.mxu0 %v3568
    %3859 = vmatpush.bf16.msra.mxu0 %v3564
    %3860 = vmatmul.bf16.gmra.mxu0 %v3006
    %v3861 = vpop.f32.mrf.mxu0
    %v3862 = vadd.f32 %v3849, %v3861
    %v3863 = vpop.f32.mrf.mxu0
    %3864 = vdwg.mxu0
    %3865 = vmatpush.bf16.msra.mxu0 %v3624
    %3866 = vmatpush.bf16.msra.mxu0 %v3620
    %3867 = vmatpush.bf16.msra.mxu0 %v3616
    %3868 = vmatpush.bf16.msra.mxu0 %v3612
    %3869 = vmatpush.bf16.msra.mxu0 %v3608
    %3870 = vmatpush.bf16.msra.mxu0 %v3604
    %3871 = vmatpush.bf16.msra.mxu0 %v3600
    %3872 = vmatpush.bf16.msra.mxu0 %v3596
    %3873 = vmatmul.bf16.gmra.mxu0 %v3007
    %v3874 = vpop.f32.mrf.mxu0
    %v3875 = vadd.f32 %v3862, %v3874
    %v3876 = vpop.f32.mrf.mxu0
    %3877 = vdwg.mxu0
    %3878 = vmatpush.bf16.msra.mxu0 %v3656
    %3879 = vmatpush.bf16.msra.mxu0 %v3652
    %3880 = vmatpush.bf16.msra.mxu0 %v3648
    %3881 = vmatpush.bf16.msra.mxu0 %v3644
    %3882 = vmatpush.bf16.msra.mxu0 %v3640
    %3883 = vmatpush.bf16.msra.mxu0 %v3636
    %3884 = vmatpush.bf16.msra.mxu0 %v3632
    %3885 = vmatpush.bf16.msra.mxu0 %v3628
    %3886 = vmatmul.bf16.gmra.mxu0 %v3008
    %v3887 = vpop.f32.mrf.mxu0
    %v3888 = vadd.f32 %v3875, %v3887
    %v3889 = vpop.f32.mrf.mxu0
    %3890 = vdwg.mxu0
    %3891 = vmatpush.bf16.msra.mxu0 %v3561
    %3892 = vmatpush.bf16.msra.mxu0 %v3557
    %3893 = vmatpush.bf16.msra.mxu0 %v3553
    %3894 = vmatpush.bf16.msra.mxu0 %v3549
    %3895 = vmatpush.bf16.msra.mxu0 %v3545
    %3896 = vmatpush.bf16.msra.mxu0 %v3541
    %3897 = vmatpush.bf16.msra.mxu0 %v3537
    %3898 = vmatpush.bf16.msra.mxu0 %v3533
    %3899 = vmatmul.bf16.gmra.mxu0 %v3005
    %v3900 = vpop.f32.mrf.mxu0
    %v3901 = vadd.f32 %v3141, %v3900
    %v3902 = vpop.f32.mrf.mxu0
    %3903 = vdwg.mxu0
    %3904 = vmatpush.bf16.msra.mxu0 %v3593
    %3905 = vmatpush.bf16.msra.mxu0 %v3589
    %3906 = vmatpush.bf16.msra.mxu0 %v3585
    %3907 = vmatpush.bf16.msra.mxu0 %v3581
    %3908 = vmatpush.bf16.msra.mxu0 %v3577
    %3909 = vmatpush.bf16.msra.mxu0 %v3573
    %3910 = vmatpush.bf16.msra.mxu0 %v3569
    %3911 = vmatpush.bf16.msra.mxu0 %v3565
    %3912 = vmatmul.bf16.gmra.mxu0 %v3006
    %v3913 = vpop.f32.mrf.mxu0
    %v3914 = vadd.f32 %v3901, %v3913
    %v3915 = vpop.f32.mrf.mxu0
    %3916 = vdwg.mxu0
    %3917 = vmatpush.bf16.msra.mxu0 %v3625
    %3918 = vmatpush.bf16.msra.mxu0 %v3621
    %3919 = vmatpush.bf16.msra.mxu0 %v3617
    %3920 = vmatpush.bf16.msra.mxu0 %v3613
    %3921 = vmatpush.bf16.msra.mxu0 %v3609
    %3922 = vmatpush.bf16.msra.mxu0 %v3605
    %3923 = vmatpush.bf16.msra.mxu0 %v3601
    %3924 = vmatpush.bf16.msra.mxu0 %v3597
    %3925 = vmatmul.bf16.gmra.mxu0 %v3007
    %v3926 = vpop.f32.mrf.mxu0
    %v3927 = vadd.f32 %v3914, %v3926
    %v3928 = vpop.f32.mrf.mxu0
    %3929 = vdwg.mxu0
    %3930 = vmatpush.bf16.msra.mxu0 %v3657
    %3931 = vmatpush.bf16.msra.mxu0 %v3653
    %3932 = vmatpush.bf16.msra.mxu0 %v3649
    %3933 = vmatpush.bf16.msra.mxu0 %v3645
    %3934 = vmatpush.bf16.msra.mxu0 %v3641
    %3935 = vmatpush.bf16.msra.mxu0 %v3637
    %3936 = vmatpush.bf16.msra.mxu0 %v3633
    %3937 = vmatpush.bf16.msra.mxu0 %v3629
    %3938 = vmatmul.bf16.gmra.mxu0 %v3008
    %v3939 = vpop.f32.mrf.mxu0
    %v3940 = vadd.f32 %v3927, %v3939
    %v3941 = vpop.f32.mrf.mxu0
    %3942 = vdwg.mxu0
    %3943 = vmatpush.bf16.msra.mxu0 %v3562
    %3944 = vmatpush.bf16.msra.mxu0 %v3558
    %3945 = vmatpush.bf16.msra.mxu0 %v3554
    %3946 = vmatpush.bf16.msra.mxu0 %v3550
    %3947 = vmatpush.bf16.msra.mxu0 %v3546
    %3948 = vmatpush.bf16.msra.mxu0 %v3542
    %3949 = vmatpush.bf16.msra.mxu0 %v3538
    %3950 = vmatpush.bf16.msra.mxu0 %v3534
    %3951 = vmatmul.bf16.gmra.mxu0 %v3005
    %v3952 = vpop.f32.mrf.mxu0
    %v3953 = vadd.f32 %v3142, %v3952
    %v3954 = vpop.f32.mrf.mxu0
    %3955 = vdwg.mxu0
    %3956 = vmatpush.bf16.msra.mxu0 %v3594
    %3957 = vmatpush.bf16.msra.mxu0 %v3590
    %3958 = vmatpush.bf16.msra.mxu0 %v3586
    %3959 = vmatpush.bf16.msra.mxu0 %v3582
    %3960 = vmatpush.bf16.msra.mxu0 %v3578
    %3961 = vmatpush.bf16.msra.mxu0 %v3574
    %3962 = vmatpush.bf16.msra.mxu0 %v3570
    %3963 = vmatpush.bf16.msra.mxu0 %v3566
    %3964 = vmatmul.bf16.gmra.mxu0 %v3006
    %v3965 = vpop.f32.mrf.mxu0
    %v3966 = vadd.f32 %v3953, %v3965
    %v3967 = vpop.f32.mrf.mxu0
    %3968 = vdwg.mxu0
    %3969 = vmatpush.bf16.msra.mxu0 %v3626
    %3970 = vmatpush.bf16.msra.mxu0 %v3622
    %3971 = vmatpush.bf16.msra.mxu0 %v3618
    %3972 = vmatpush.bf16.msra.mxu0 %v3614
    %3973 = vmatpush.bf16.msra.mxu0 %v3610
    %3974 = vmatpush.bf16.msra.mxu0 %v3606
    %3975 = vmatpush.bf16.msra.mxu0 %v3602
    %3976 = vmatpush.bf16.msra.mxu0 %v3598
    %3977 = vmatmul.bf16.gmra.mxu0 %v3007
    %v3978 = vpop.f32.mrf.mxu0
    %v3979 = vadd.f32 %v3966, %v3978
    %v3980 = vpop.f32.mrf.mxu0
    %3981 = vdwg.mxu0
    %3982 = vmatpush.bf16.msra.mxu0 %v3658
    %3983 = vmatpush.bf16.msra.mxu0 %v3654
    %3984 = vmatpush.bf16.msra.mxu0 %v3650
    %3985 = vmatpush.bf16.msra.mxu0 %v3646
    %3986 = vmatpush.bf16.msra.mxu0 %v3642
    %3987 = vmatpush.bf16.msra.mxu0 %v3638
    %3988 = vmatpush.bf16.msra.mxu0 %v3634
    %3989 = vmatpush.bf16.msra.mxu0 %v3630
    %3990 = vmatmul.bf16.gmra.mxu0 %v3008
    %v3991 = vpop.f32.mrf.mxu0
    %v3992 = vadd.f32 %v3979, %v3991
    %v3993 = vpop.f32.mrf.mxu0
    %3994 = vdwg.mxu0
    %v3995 = vld [vmem:[#allocation30] sm:$0xf]
    %v3996 = vld [vmem:[#allocation31] sm:$0xf]
    %v3997 = vadd.f32 %v3836, %v3888
    %v3998 = vadd.f32 %v3997, %v3940
    %v3999 = vadd.f32 %v3998, %v3992
    %4000 = vadd.xlane.f32.xlu0 %v3999
    %v4001 = vpop.xlane.xlu0 %4000
    %v4002 = vmul.f32 %v4001, %v2868
    %v4003 = vsub.f32 %v3836, %v4002
    %v4004 = vsub.f32 %v3888, %v4002
    %v4005 = vsub.f32 %v3940, %v4002
    %v4006 = vsub.f32 %v3992, %v4002
    %v4007 = vmul.f32 %v4003, %v4003
    %v4008 = vmul.f32 %v4004, %v4004
    %v4009 = vmul.f32 %v4005, %v4005
    %v4010 = vmul.f32 %v4006, %v4006
    %v4011 = vadd.f32 %v4007, %v4008
    %v4012 = vadd.f32 %v4011, %v4009
    %v4013 = vadd.f32 %v4012, %v4010
    %4014 = vadd.xlane.f32.xlu0 %v4013
    %v4015 = vpop.xlane.xlu0 %4014
    %v4016 = vmul.f32 %v4015, %v2868
    %v4017 = vadd.f32 %v4016, 1e-05
    %v4018 = vrsqrt.pop %v4017
    %v4019 = vmul.f32 %v4018, %v4017
    %v4020 = vmul.f32 %v4019, %v4018
    %v4021 = vmul.f32 0.5, %v4020
    %v4022 = vsub.f32 1.5, %v4021
    %v4023 = vmul.f32 %v4018, %v4022
    %vm4024 = vweird.f32 %v4017
    %vm4025 = vweird.f32 %v4018
    %vm4026 = vmor %vm4024, %vm4025
    %v4027 = vsel %vm4026, %v4018, %v4023
    %v4028 = vmul.f32 %v4003, %v4027
    %v4029 = vmul.f32 %v4004, %v4027
    %v4030 = vmul.f32 %v4005, %v4027
    %v4031 = vmul.f32 %v4006, %v4027
    %v4033 = vperm.slane %v3995, 0
    %v4034 = vperm.slane %v3995, 1
    %v4035 = vperm.slane %v3995, 2
    %v4036 = vperm.slane %v3995, 3
    %v4041 = vmul.f32 %v4028, %v4033
    %v4042 = vmul.f32 %v4029, %v4034
    %v4043 = vmul.f32 %v4030, %v4035
    %v4044 = vmul.f32 %v4031, %v4036
    %v4046 = vperm.slane %v3996, 0
    %v4047 = vperm.slane %v3996, 1
    %v4048 = vperm.slane %v3996, 2
    %v4049 = vperm.slane %v3996, 3
    %v4054 = vadd.f32 %v4041, %v4046
    %v4055 = vadd.f32 %v4042, %v4047
    %v4056 = vadd.f32 %v4043, %v4048
    %v4057 = vadd.f32 %v4044, %v4049
    %v4058 = vxor.u32 %v4054, 2147483648
    %v4059 = vxor.u32 %v4055, 2147483648
    %v4060 = vxor.u32 %v4056, 2147483648
    %v4061 = vxor.u32 %v4057, 2147483648
    %v4062 = vmul.f32 %v4058, 1.442695
    %v4063 = vpow.pop %v4062
    %v4064 = vmul.f32 %v4059, 1.442695
    %v4065 = vpow.pop %v4064
    %v4066 = vmul.f32 %v4060, 1.442695
    %v4067 = vpow.pop %v4066
    %v4068 = vmul.f32 %v4061, 1.442695
    %v4069 = vpow.pop %v4068
    %v4070 = vadd.f32 %v4063, 1.0
    %v4071 = vadd.f32 %v4065, 1.0
    %v4072 = vadd.f32 %v4067, 1.0
    %v4073 = vadd.f32 %v4069, 1.0
    %v4074 = vrcp.pop %v4070
    %v4075 = vmul.f32 %v4070, %v4074
    %v4076 = vsub.f32 1.0, %v4075
    %v4077 = vmul.f32 %v4074, %v4076
    %v4078 = vadd.f32 %v4074, %v4077
    %vm4079 = vweird.f32 %v4070
    %vm4080 = vweird.f32 %v4074
    %vm4081 = vmor %vm4079, %vm4080
    %v4082 = vsel %vm4081, %v4074, %v4078
    %v4083 = vand.u32 2147483647, %v4070
    %vm4084 = vcmp.eq.f32.partialorder %v4083, 8.507059e+37
    %v4085 = vand.u32 %v4070, 2147483648
    %v4086 = vor.u32 1.1754944e-38, %v4085
    %v4087 = vsel %vm4084, %v4086, %v4082
    %v4088 = vmul.f32 1.0, %v4087
    %v4089 = vrcp.pop %v4071
    %v4090 = vmul.f32 %v4071, %v4089
    %v4091 = vsub.f32 1.0, %v4090
    %v4092 = vmul.f32 %v4089, %v4091
    %v4093 = vadd.f32 %v4089, %v4092
    %vm4094 = vweird.f32 %v4071
    %vm4095 = vweird.f32 %v4089
    %vm4096 = vmor %vm4094, %vm4095
    %v4097 = vsel %vm4096, %v4089, %v4093
    %v4098 = vand.u32 2147483647, %v4071
    %vm4099 = vcmp.eq.f32.partialorder %v4098, 8.507059e+37
    %v4100 = vand.u32 %v4071, 2147483648
    %v4101 = vor.u32 1.1754944e-38, %v4100
    %v4102 = vsel %vm4099, %v4101, %v4097
    %v4103 = vmul.f32 1.0, %v4102
    %v4104 = vrcp.pop %v4072
    %v4105 = vmul.f32 %v4072, %v4104
    %v4106 = vsub.f32 1.0, %v4105
    %v4107 = vmul.f32 %v4104, %v4106
    %v4108 = vadd.f32 %v4104, %v4107
    %vm4109 = vweird.f32 %v4072
    %vm4110 = vweird.f32 %v4104
    %vm4111 = vmor %vm4109, %vm4110
    %v4112 = vsel %vm4111, %v4104, %v4108
    %v4113 = vand.u32 2147483647, %v4072
    %vm4114 = vcmp.eq.f32.partialorder %v4113, 8.507059e+37
    %v4115 = vand.u32 %v4072, 2147483648
    %v4116 = vor.u32 1.1754944e-38, %v4115
    %v4117 = vsel %vm4114, %v4116, %v4112
    %v4118 = vmul.f32 1.0, %v4117
    %v4119 = vrcp.pop %v4073
    %v4120 = vmul.f32 %v4073, %v4119
    %v4121 = vsub.f32 1.0, %v4120
    %v4122 = vmul.f32 %v4119, %v4121
    %v4123 = vadd.f32 %v4119, %v4122
    %vm4124 = vweird.f32 %v4073
    %vm4125 = vweird.f32 %v4119
    %vm4126 = vmor %vm4124, %vm4125
    %v4127 = vsel %vm4126, %v4119, %v4123
    %v4128 = vand.u32 2147483647, %v4073
    %vm4129 = vcmp.eq.f32.partialorder %v4128, 8.507059e+37
    %v4130 = vand.u32 %v4073, 2147483648
    %v4131 = vor.u32 1.1754944e-38, %v4130
    %v4132 = vsel %vm4129, %v4131, %v4127
    %v4133 = vmul.f32 1.0, %v4132
    %v4134 = vmul.f32 %v4054, %v4088
    %v4135 = vmul.f32 %v4055, %v4103
    %v4136 = vmul.f32 %v4056, %v4118
    %v4137 = vmul.f32 %v4057, %v4133
    %4138 = vst [vmem:[%s27] sm:$0xff] %v4134
    %4139 = vst [vmem:[%s27 + $0x8] sm:$0xff] %v4135
    %4140 = vst [vmem:[%s27 + $0x10] sm:$0xff] %v4136
    %4141 = vst [vmem:[%s27 + $0x18] sm:$0xff] %v4137
    // Predicated region
    $region190: #{gcn_forward.1} parent=1 // pred_check
      _
    $region191: #{gcn_forward.1} parent=1 // pred_check_branch
      %4143 = sbr.rel (0) target = $region193
    $region192: #{gcn_forward.1} parent=1 // pred_region
      _
    $region193: #{gcn_forward.1} parent=1 // pred_fallthru
      _
    // Predicated region
    $region194: #{gcn_forward.1} parent=1 // pred_check
      _
    $region195: #{gcn_forward.1} parent=1 // pred_check_branch
      %4145 = sbr.rel (0) target = $region197
    $region196: #{gcn_forward.1} parent=1 // pred_region
      _
    $region197: #{gcn_forward.1} parent=1 // pred_fallthru
      _
    %4146 = vsyncpa [#allocation3], 1
    %4147 = vsyncpa [#allocation5], 1
    %4148 = vsyncpa [#allocation8], 1
    %4149 = vsyncpa [#allocation11], 1
    %4150 = vsyncpa [#allocation14], 1
    %4151 = vsyncpa [#allocation17], 1
    %4152 = vsyncpa [#allocation20], 1
    %4153 = vsyncpa [#allocation23], 1
    %4154 = vsyncpa [#allocation26], 1
    %4155 = vsyncpa [#allocation29], 1
    %4156 = vsyncpa [#allocation32], 1

</llo_original>
